<compile_context>
chip_gen: v7x
topology: tpu7x:2x2x1
jax: 0.10.0
libtpu: 0.0.40
codegen_flags: <defaults>
</compile_context>

<pallas_src>
import functools

import jax
import jax.numpy as jnp
from jax.experimental import pallas as pl
from jax.experimental.pallas import tpu as pltpu


def _round_up(n, m):
    return ((n + m - 1) // m) * m


# --------------------------------------------------------------------------
# Pallas kernels
# --------------------------------------------------------------------------
def _lstm_seq_layer_kernel(x_ref, wih_ref, whh_ref, b_ref, out_ref,
                           xw_scr, h_scr, c_scr):
    """One time-chunk of an LSTM layer, emitting the hidden-state sequence.

    x_ref  : (tt*Bp, D)     time-major, batch-padded chunk of layer input
    wih_ref: (D, 4*Hp)      input->gate weights  (gate order [i, f, o, g])
    whh_ref: (Hp, 4*Hp)     hidden->gate weights (gate order [i, f, o, g])
    b_ref  : (1, 4*Hp)      b_ih + b_hh
    out_ref: (tt*Bp, Hp)    hidden states for every step of this chunk
    xw_scr : (tt*Bp, 4*Hp)  scratch for the hoisted input projection
    h_scr, c_scr : (Bp, Hp) recurrent state, persists across time chunks
    """
    bp, hp = h_scr.shape
    tt = x_ref.shape[0] // bp

    @pl.when(pl.program_id(0) == 0)
    def _():
        h_scr[...] = jnp.zeros_like(h_scr)   # h0 = 0
        c_scr[...] = jnp.zeros_like(c_scr)   # c0 = 0

    # Hoisted input projection (+ bias) for the whole chunk: one big MXU matmul.
    xw_scr[...] = (
        jnp.dot(x_ref[...], wih_ref[...], preferred_element_type=jnp.float32)
        + b_ref[...]
    )
    whh = whh_ref[...]  # hoist the recurrent-weight load out of the loop

    # Fully unrolled recurrence with static, tile-aligned slices.
    for t in range(tt):
        r = t * bp
        gates = xw_scr[r:r + bp, :] + jnp.dot(
            h_scr[...], whh, preferred_element_type=jnp.float32)
        ifo = jax.nn.sigmoid(gates[:, :3 * hp])     # one contiguous EUP region
        g = jnp.tanh(gates[:, 3 * hp:])
        i = ifo[:, 0 * hp:1 * hp]
        f = ifo[:, 1 * hp:2 * hp]
        o = ifo[:, 2 * hp:3 * hp]
        c_new = f * c_scr[...] + i * g
        h_new = o * jnp.tanh(c_new)
        c_scr[...] = c_new
        h_scr[...] = h_new
        out_ref[r:r + bp, :] = h_new                # unmasked (8,128) store


def _lstm_last_layer_kernel(x_ref, wih_ref, whh_ref, b_ref, wlin_ref, blin_ref,
                            out_ref, xw_scr, h_scr, c_scr):
    """Last LSTM layer with the final Linear fused as an epilogue.

    Emits only (Bp, O) = h_last @ W_lin + b_lin; never writes the (T,B,H) seq.
    """
    bp, hp = h_scr.shape
    tt = x_ref.shape[0] // bp

    @pl.when(pl.program_id(0) == 0)
    def _():
        h_scr[...] = jnp.zeros_like(h_scr)
        c_scr[...] = jnp.zeros_like(c_scr)

    xw_scr[...] = (
        jnp.dot(x_ref[...], wih_ref[...], preferred_element_type=jnp.float32)
        + b_ref[...]
    )
    whh = whh_ref[...]

    for t in range(tt):
        r = t * bp
        gates = xw_scr[r:r + bp, :] + jnp.dot(
            h_scr[...], whh, preferred_element_type=jnp.float32)
        ifo = jax.nn.sigmoid(gates[:, :3 * hp])
        g = jnp.tanh(gates[:, 3 * hp:])
        i = ifo[:, 0 * hp:1 * hp]
        f = ifo[:, 1 * hp:2 * hp]
        o = ifo[:, 2 * hp:3 * hp]
        c_new = f * c_scr[...] + i * g
        h_new = o * jnp.tanh(c_new)
        c_scr[...] = c_new
        h_scr[...] = h_new

    @pl.when(pl.program_id(0) == pl.num_programs(0) - 1)
    def _():
        out_ref[...] = (
            jnp.dot(h_scr[...], wlin_ref[...], preferred_element_type=jnp.float32)
            + blin_ref[...]
        )


# --------------------------------------------------------------------------
# pallas_call wrappers
# --------------------------------------------------------------------------
def _vmem_limit_bytes(in_out_block_elems, scratch_elems):
    # f32 blocks, double-buffered pipeline buffers + scratch + generous margin.
    need = 4 * (2 * in_out_block_elems + scratch_elems)
    return int(max(need + (4 << 20), 8 << 20))


def lstm_seq_layer(x2d, w_ih_t, w_hh_t, b, *, tt, bp):
    tbp, d = x2d.shape
    hp = w_hh_t.shape[0]
    n_chunks = (tbp // bp) // tt
    blk = tt * bp * d + d * 4 * hp + hp * 4 * hp + 4 * hp + tt * bp * hp
    scr = tt * bp * 4 * hp + 2 * bp * hp
    return pl.pallas_call(
        _lstm_seq_layer_kernel,
        out_shape=jax.ShapeDtypeStruct((tbp, hp), jnp.float32),
        grid_spec=pltpu.PrefetchScalarGridSpec(
            num_scalar_prefetch=0,
            grid=(n_chunks,),
            in_specs=[
                pl.BlockSpec((tt * bp, d), lambda i: (i, 0)),
                pl.BlockSpec((d, 4 * hp), lambda i: (0, 0)),
                pl.BlockSpec((hp, 4 * hp), lambda i: (0, 0)),
                pl.BlockSpec((1, 4 * hp), lambda i: (0, 0)),
            ],
            out_specs=pl.BlockSpec((tt * bp, hp), lambda i: (i, 0)),
            scratch_shapes=[
                pltpu.VMEM((tt * bp, 4 * hp), jnp.float32),   # xw
                pltpu.VMEM((bp, hp), jnp.float32),            # h
                pltpu.VMEM((bp, hp), jnp.float32),            # c
            ],
        ),
        compiler_params=pltpu.CompilerParams(
            dimension_semantics=("arbitrary",),   # sequential recurrence over time
            vmem_limit_bytes=_vmem_limit_bytes(blk, scr),
        ),
    )(x2d, w_ih_t, w_hh_t, b)


def lstm_last_layer(x2d, w_ih_t, w_hh_t, b, w_lin_t, b_lin, *, tt, bp):
    tbp, d = x2d.shape
    hp = w_hh_t.shape[0]
    o = w_lin_t.shape[1]
    n_chunks = (tbp // bp) // tt
    blk = tt * bp * d + d * 4 * hp + hp * 4 * hp + 4 * hp + hp * o + o + bp * o
    scr = tt * bp * 4 * hp + 2 * bp * hp
    return pl.pallas_call(
        _lstm_last_layer_kernel,
        out_shape=jax.ShapeDtypeStruct((bp, o), jnp.float32),
        grid_spec=pltpu.PrefetchScalarGridSpec(
            num_scalar_prefetch=0,
            grid=(n_chunks,),
            in_specs=[
                pl.BlockSpec((tt * bp, d), lambda i: (i, 0)),
                pl.BlockSpec((d, 4 * hp), lambda i: (0, 0)),
                pl.BlockSpec((hp, 4 * hp), lambda i: (0, 0)),
                pl.BlockSpec((1, 4 * hp), lambda i: (0, 0)),
                pl.BlockSpec((hp, o), lambda i: (0, 0)),
                pl.BlockSpec((1, o), lambda i: (0, 0)),
            ],
            out_specs=pl.BlockSpec((bp, o), lambda i: (0, 0)),  # resident accumulator
            scratch_shapes=[
                pltpu.VMEM((tt * bp, 4 * hp), jnp.float32),
                pltpu.VMEM((bp, hp), jnp.float32),
                pltpu.VMEM((bp, hp), jnp.float32),
            ],
        ),
        compiler_params=pltpu.CompilerParams(
            dimension_semantics=("arbitrary",),
            vmem_limit_bytes=_vmem_limit_bytes(blk, scr),
        ),
    )(x2d, w_ih_t, w_hh_t, b, w_lin_t, b_lin)


# --------------------------------------------------------------------------
# Parameter init (PyTorch layout), one-time kernel-layout preparation
# --------------------------------------------------------------------------
def init_lstm_model_params(key, input_size, hidden_size, num_layers, output_size):
    """PyTorch parameter shapes:
       per layer l: W_ih (4H, D_l), W_hh (4H, H), b_ih (4H,), b_hh (4H,)
       linear: W (O, H), b (O,)
    """
    k = 1.0 / jnp.sqrt(jnp.float32(hidden_size))
    params = {"layers": []}
    for l in range(num_layers):
        d_in = input_size if l == 0 else hidden_size
        key, k1, k2, k3, k4 = jax.random.split(key, 5)
        params["layers"].append(dict(
            w_ih=jax.random.uniform(k1, (4 * hidden_size, d_in), jnp.float32, -k, k),
            w_hh=jax.random.uniform(k2, (4 * hidden_size, hidden_size), jnp.float32, -k, k),
            b_ih=jax.random.uniform(k3, (4 * hidden_size,), jnp.float32, -k, k),
            b_hh=jax.random.uniform(k4, (4 * hidden_size,), jnp.float32, -k, k),
        ))
    key, k5, k6 = jax.random.split(key, 3)
    params["linear_w"] = jax.random.uniform(k5, (output_size, hidden_size), jnp.float32, -k, k)
    params["linear_b"] = jax.random.uniform(k6, (output_size,), jnp.float32, -k, k)
    return params


def _prep_gate_weight(w, rows_pad, h, hp):
    """PyTorch (4H, d_in) -> transposed (rows_pad, 4Hp), gates [i,f,o,g], zero-padded."""
    d_in = w.shape[1]
    wt = w.T.astype(jnp.float32)                       # (d_in, 4H), gates [i,f,g,o]
    out = jnp.zeros((rows_pad, 4 * hp), jnp.float32)
    for k, s in enumerate((0, 1, 3, 2)):               # -> [i, f, o, g]
        out = out.at[:d_in, k * hp:k * hp + h].set(wt[:, s * h:(s + 1) * h])
    return out


def _prep_gate_bias(b, h, hp):
    out = jnp.zeros((1, 4 * hp), jnp.float32)
    for k, s in enumerate((0, 1, 3, 2)):
        out = out.at[0, k * hp:k * hp + h].set(b[s * h:(s + 1) * h].astype(jnp.float32))
    return out


def prepare_params(params, hidden_size):
    """One-time conversion to kernel layout: transpose, gate-reorder, zero-pad."""
    h = hidden_size
    hp = _round_up(h, 128)
    prep = {"layers": []}
    for l, layer in enumerate(params["layers"]):
        d_in = layer["w_ih"].shape[1]
        rows_pad = d_in if l == 0 else hp              # layer>0 input is already Hp-padded
        prep["layers"].append(dict(
            w_ih_t=_prep_gate_weight(layer["w_ih"], rows_pad, h, hp),
            w_hh_t=_prep_gate_weight(layer["w_hh"], hp, h, hp),
            b=_prep_gate_bias(layer["b_ih"] + layer["b_hh"], h, hp),
        ))
    o = params["linear_w"].shape[0]
    prep["linear_w_t"] = jnp.zeros((hp, o), jnp.float32).at[:h, :].set(
        params["linear_w"].T.astype(jnp.float32))
    prep["linear_b"] = params["linear_b"].reshape(1, o).astype(jnp.float32)
    return prep


# --------------------------------------------------------------------------
# Forward (mirrors the PyTorch module)
# --------------------------------------------------------------------------
def _pick_time_chunk(T, requested):
    if requested is not None:
        if T % requested != 0:
            raise ValueError(f"time_chunk={requested} must divide seq_len={T}")
        return requested
    for cand in (16, 8, 4, 2, 1):
        if cand <= T and T % cand == 0:
            return cand
    return 1


@functools.partial(jax.jit, static_argnames=("time_chunk",))
def lstm_model_forward(prepared, x, *, time_chunk=None):
    """x: (batch, seq, input_size) -> (batch, output_size)"""
    B, T, D = x.shape
    bp = _round_up(B, 8)                     # sublane-aligned batch
    tt = _pick_time_chunk(T, time_chunk)

    # Layout plumbing: time-major, batch padded, flattened to 2D (T*Bp, D).
    xt = jnp.transpose(x.astype(jnp.float32), (1, 0, 2))     # (T, B, D)
    xt = jnp.pad(xt, ((0, 0), (0, bp - B), (0, 0)))          # (T, Bp, D)
    h2d = xt.reshape(T * bp, D)

    for layer in prepared["layers"][:-1]:
        h2d = lstm_seq_layer(h2d, layer["w_ih_t"], layer["w_hh_t"], layer["b"],
                             tt=tt, bp=bp)
    last = prepared["layers"][-1]
    out_p = lstm_last_layer(h2d, last["w_ih_t"], last["w_hh_t"], last["b"],
                            prepared["linear_w_t"], prepared["linear_b"],
                            tt=tt, bp=bp)                    # (Bp, O)
    return out_p[:B, :]


# --------------------------------------------------------------------------
# Pure-JAX reference (PyTorch semantics) for validation
# --------------------------------------------------------------------------
def lstm_model_ref(params, x):
    B, T, _ = x.shape
    H = params["layers"][0]["w_hh"].shape[1]
    seq = x.astype(jnp.float32)
    for layer in params["layers"]:
        w_ih_t = jnp.transpose(layer["w_ih"])
        w_hh_t = jnp.transpose(layer["w_hh"])
        b = layer["b_ih"] + layer["b_hh"]
        h = jnp.zeros((B, H), jnp.float32)
        c = jnp.zeros((B, H), jnp.float32)
        outs = []
        for t in range(T):
            gates = seq[:, t, :] @ w_ih_t + h @ w_hh_t + b
            i = jax.nn.sigmoid(gates[:, 0 * H:1 * H])
            f = jax.nn.sigmoid(gates[:, 1 * H:2 * H])
            g = jnp.tanh(gates[:, 2 * H:3 * H])
            o = jax.nn.sigmoid(gates[:, 3 * H:4 * H])
            c = f * c + i * g
            h = o * jnp.tanh(c)
            outs.append(h)
        seq = jnp.stack(outs, axis=1)
    return seq[:, -1, :] @ jnp.transpose(params["linear_w"]) + params["linear_b"]


# --------------------------------------------------------------------------
if __name__ == "__main__":
    batch, seq_len = 2, 8
    input_size, hidden_size, num_layers, output_size = 8, 32, 2, 4

    key = jax.random.PRNGKey(0)
    key, xkey, pkey = jax.random.split(key, 3)
    x = jax.random.normal(xkey, (batch, seq_len, input_size), jnp.float32)
    params = init_lstm_model_params(
        pkey, input_size, hidden_size, num_layers, output_size)
    prepared = prepare_params(params, hidden_size)

    # time_chunk=4 -> grid of 2 time chunks, exercising the persistent h/c path.
    out = lstm_model_forward(prepared, x, time_chunk=4)
    out = jax.block_until_ready(out)
    assert out.shape == (batch, output_size), out.shape

    ref = lstm_model_ref(params, x)
    assert jnp.allclose(out, ref, atol=1e-4, rtol=1e-4), (
        float(jnp.max(jnp.abs(out - ref))))

    print("KERNEL_OK")
</pallas_src>

<mosaic_0001>
module attributes {stable_mosaic.version = 11 : i64} {
  func.func @_lstm_seq_layer_kernel(%arg0: i32, %arg1: memref<32x8xf32, #tpu.memory_space<vmem>>, %arg2: memref<8x512xf32, #tpu.memory_space<vmem>>, %arg3: memref<128x512xf32, #tpu.memory_space<vmem>>, %arg4: memref<1x512xf32, #tpu.memory_space<vmem>>, %arg5: memref<32x128xf32, #tpu.memory_space<vmem>>, %arg6: memref<32x512xf32, #tpu.memory_space<vmem>>, %arg7: memref<8x128xf32, #tpu.memory_space<vmem>>, %arg8: memref<8x128xf32, #tpu.memory_space<vmem>>) attributes {dimension_semantics = [#tpu.dimension_semantics<arbitrary>], iteration_bounds = array<i64: 2>, scalar_prefetch = 0 : i64, scratch_operands = 3 : i64, tpu.core_type = #tpu.core_type<tc>, window_params = [{transform_indices = @transform_0, window_bounds = array<i64: 32, 8>}, {pipeline_mode = #tpu.pipeline_mode<synchronous>, transform_indices = @transform_1, window_bounds = array<i64: 8, 512>}, {pipeline_mode = #tpu.pipeline_mode<synchronous>, transform_indices = @transform_2, window_bounds = array<i64: 128, 512>}, {pipeline_mode = #tpu.pipeline_mode<synchronous>, transform_indices = @transform_3, window_bounds = array<i64: 1, 512>}, {transform_indices = @transform_4, window_bounds = array<i64: 32, 128>}]} {
    %c0_i32 = arith.constant 0 : i32
    %0 = arith.cmpi eq, %arg0, %c0_i32 : i32
    %1 = arith.extui %0 : i1 to i32
    %c0_i32_0 = arith.constant 0 : i32
    %2 = arith.cmpi ne, %1, %c0_i32_0 : i32
    scf.if %2 {
      %cst_63 = arith.constant 0.000000e+00 : f32
      %107 = vector.broadcast %cst_63 : f32 to vector<8x128xf32>
      %c0_64 = arith.constant 0 : index
      %c0_65 = arith.constant 0 : index
      %108 = vector.load %arg7[%c0_64, %c0_65] : memref<8x128xf32, #tpu.memory_space<vmem>>, vector<8x128xf32>
      tpu.vector_store %arg7[%c0_64, %c0_65], %107 {strides = array<i32>} : memref<8x128xf32, #tpu.memory_space<vmem>>, vector<8x128xf32>,
      %cst_66 = arith.constant 0.000000e+00 : f32
      %109 = vector.broadcast %cst_66 : f32 to vector<8x128xf32>
      %c0_67 = arith.constant 0 : index
      %c0_68 = arith.constant 0 : index
      %110 = vector.load %arg8[%c0_67, %c0_68] : memref<8x128xf32, #tpu.memory_space<vmem>>, vector<8x128xf32>
      tpu.vector_store %arg8[%c0_67, %c0_68], %109 {strides = array<i32>} : memref<8x128xf32, #tpu.memory_space<vmem>>, vector<8x128xf32>,
    } else {
    }
    %c0 = arith.constant 0 : index
    %c0_1 = arith.constant 0 : index
    %3 = vector.load %arg1[%c0, %c0_1] : memref<32x8xf32, #tpu.memory_space<vmem>>, vector<32x8xf32>
    %c0_2 = arith.constant 0 : index
    %c0_3 = arith.constant 0 : index
    %4 = vector.load %arg2[%c0_2, %c0_3] : memref<8x512xf32, #tpu.memory_space<vmem>>, vector<8x512xf32>
    %cst = arith.constant dense<0.000000e+00> : vector<32x512xf32>
    %5 = tpu.matmul %3, %4, %cst {dimension_numbers = #tpu.dot_dimension_numbers<[1], [0], [0], [1], [0, 0, 1, 1], [], []>} : vector<32x8xf32>, vector<8x512xf32>, vector<32x512xf32> -> vector<32x512xf32>
    %c0_4 = arith.constant 0 : index
    %c0_5 = arith.constant 0 : index
    %6 = vector.load %arg4[%c0_4, %c0_5] : memref<1x512xf32, #tpu.memory_space<vmem>>, vector<1x512xf32>
    %7 = vector.broadcast %6 : vector<1x512xf32> to vector<32x512xf32>
    %8 = arith.addf %5, %7 : vector<32x512xf32>
    %c0_6 = arith.constant 0 : index
    %c0_7 = arith.constant 0 : index
    %9 = vector.load %arg6[%c0_6, %c0_7] : memref<32x512xf32, #tpu.memory_space<vmem>>, vector<32x512xf32>
    tpu.vector_store %arg6[%c0_6, %c0_7], %8 {strides = array<i32>} : memref<32x512xf32, #tpu.memory_space<vmem>>, vector<32x512xf32>,
    %c0_8 = arith.constant 0 : index
    %c0_9 = arith.constant 0 : index
    %10 = vector.load %arg3[%c0_8, %c0_9] : memref<128x512xf32, #tpu.memory_space<vmem>>, vector<128x512xf32>
    %c0_10 = arith.constant 0 : index
    %c0_11 = arith.constant 0 : index
    %11 = vector.load %arg6[%c0_10, %c0_11] : memref<32x512xf32, #tpu.memory_space<vmem>>, vector<8x512xf32>
    %c0_12 = arith.constant 0 : index
    %c0_13 = arith.constant 0 : index
    %12 = vector.load %arg7[%c0_12, %c0_13] : memref<8x128xf32, #tpu.memory_space<vmem>>, vector<8x128xf32>
    %cst_14 = arith.constant dense<0.000000e+00> : vector<8x512xf32>
    %13 = tpu.matmul %12, %10, %cst_14 {dimension_numbers = #tpu.dot_dimension_numbers<[1], [0], [0], [1], [0, 0, 1, 1], [], []>} : vector<8x128xf32>, vector<128x512xf32>, vector<8x512xf32> -> vector<8x512xf32>
    %14 = arith.addf %11, %13 : vector<8x512xf32>
    %15 = vector.extract_strided_slice %14 {offsets = [0, 0], sizes = [8, 384], strides = [1, 1]} : vector<8x512xf32> to vector<8x384xf32>
    %16 = arith.negf %15 : vector<8x384xf32>
    %17 = math.exp %16 : vector<8x384xf32>
    %cst_15 = arith.constant 1.000000e+00 : f32
    %18 = vector.broadcast %cst_15 : f32 to vector<8x384xf32>
    %19 = arith.addf %18, %17 : vector<8x384xf32>
    %20 = arith.divf %18, %19 : vector<8x384xf32>
    %21 = vector.extract_strided_slice %14 {offsets = [0, 384], sizes = [8, 128], strides = [1, 1]} : vector<8x512xf32> to vector<8x128xf32>
    %22 = math.tanh %21 : vector<8x128xf32>
    %23 = vector.extract_strided_slice %20 {offsets = [0, 0], sizes = [8, 128], strides = [1, 1]} : vector<8x384xf32> to vector<8x128xf32>
    %24 = vector.extract_strided_slice %20 {offsets = [0, 128], sizes = [8, 128], strides = [1, 1]} : vector<8x384xf32> to vector<8x128xf32>
    %25 = vector.extract_strided_slice %20 {offsets = [0, 256], sizes = [8, 128], strides = [1, 1]} : vector<8x384xf32> to vector<8x128xf32>
    %c0_16 = arith.constant 0 : index
    %c0_17 = arith.constant 0 : index
    %26 = vector.load %arg8[%c0_16, %c0_17] : memref<8x128xf32, #tpu.memory_space<vmem>>, vector<8x128xf32>
    %27 = arith.mulf %24, %26 : vector<8x128xf32>
    %28 = arith.mulf %23, %22 : vector<8x128xf32>
    %29 = arith.addf %27, %28 : vector<8x128xf32>
    %30 = math.tanh %29 : vector<8x128xf32>
    %31 = arith.mulf %25, %30 : vector<8x128xf32>
    %c0_18 = arith.constant 0 : index
    %c0_19 = arith.constant 0 : index
    %32 = vector.load %arg8[%c0_18, %c0_19] : memref<8x128xf32, #tpu.memory_space<vmem>>, vector<8x128xf32>
    tpu.vector_store %arg8[%c0_18, %c0_19], %29 {strides = array<i32>} : memref<8x128xf32, #tpu.memory_space<vmem>>, vector<8x128xf32>,
    %c0_20 = arith.constant 0 : index
    %c0_21 = arith.constant 0 : index
    %33 = vector.load %arg7[%c0_20, %c0_21] : memref<8x128xf32, #tpu.memory_space<vmem>>, vector<8x128xf32>
    tpu.vector_store %arg7[%c0_20, %c0_21], %31 {strides = array<i32>} : memref<8x128xf32, #tpu.memory_space<vmem>>, vector<8x128xf32>,
    %c0_22 = arith.constant 0 : index
    %c0_23 = arith.constant 0 : index
    %34 = vector.load %arg5[%c0_22, %c0_23] : memref<32x128xf32, #tpu.memory_space<vmem>>, vector<8x128xf32>
    tpu.vector_store %arg5[%c0_22, %c0_23], %31 {strides = array<i32>} : memref<32x128xf32, #tpu.memory_space<vmem>>, vector<8x128xf32>,
    %c8 = arith.constant 8 : index
    %c0_24 = arith.constant 0 : index
    %35 = vector.load %arg6[%c8, %c0_24] : memref<32x512xf32, #tpu.memory_space<vmem>>, vector<8x512xf32>
    %c0_25 = arith.constant 0 : index
    %c0_26 = arith.constant 0 : index
    %36 = vector.load %arg7[%c0_25, %c0_26] : memref<8x128xf32, #tpu.memory_space<vmem>>, vector<8x128xf32>
    %cst_27 = arith.constant dense<0.000000e+00> : vector<8x512xf32>
    %37 = tpu.matmul %36, %10, %cst_27 {dimension_numbers = #tpu.dot_dimension_numbers<[1], [0], [0], [1], [0, 0, 1, 1], [], []>} : vector<8x128xf32>, vector<128x512xf32>, vector<8x512xf32> -> vector<8x512xf32>
    %38 = arith.addf %35, %37 : vector<8x512xf32>
    %39 = vector.extract_strided_slice %38 {offsets = [0, 0], sizes = [8, 384], strides = [1, 1]} : vector<8x512xf32> to vector<8x384xf32>
    %40 = arith.negf %39 : vector<8x384xf32>
    %41 = math.exp %40 : vector<8x384xf32>
    %cst_28 = arith.constant 1.000000e+00 : f32
    %42 = vector.broadcast %cst_28 : f32 to vector<8x384xf32>
    %43 = arith.addf %42, %41 : vector<8x384xf32>
    %44 = arith.divf %42, %43 : vector<8x384xf32>
    %45 = vector.extract_strided_slice %38 {offsets = [0, 384], sizes = [8, 128], strides = [1, 1]} : vector<8x512xf32> to vector<8x128xf32>
    %46 = math.tanh %45 : vector<8x128xf32>
    %47 = vector.extract_strided_slice %44 {offsets = [0, 0], sizes = [8, 128], strides = [1, 1]} : vector<8x384xf32> to vector<8x128xf32>
    %48 = vector.extract_strided_slice %44 {offsets = [0, 128], sizes = [8, 128], strides = [1, 1]} : vector<8x384xf32> to vector<8x128xf32>
    %49 = vector.extract_strided_slice %44 {offsets = [0, 256], sizes = [8, 128], strides = [1, 1]} : vector<8x384xf32> to vector<8x128xf32>
    %c0_29 = arith.constant 0 : index
    %c0_30 = arith.constant 0 : index
    %50 = vector.load %arg8[%c0_29, %c0_30] : memref<8x128xf32, #tpu.memory_space<vmem>>, vector<8x128xf32>
    %51 = arith.mulf %48, %50 : vector<8x128xf32>
    %52 = arith.mulf %47, %46 : vector<8x128xf32>
    %53 = arith.addf %51, %52 : vector<8x128xf32>
    %54 = math.tanh %53 : vector<8x128xf32>
    %55 = arith.mulf %49, %54 : vector<8x128xf32>
    %c0_31 = arith.constant 0 : index
    %c0_32 = arith.constant 0 : index
    %56 = vector.load %arg8[%c0_31, %c0_32] : memref<8x128xf32, #tpu.memory_space<vmem>>, vector<8x128xf32>
    tpu.vector_store %arg8[%c0_31, %c0_32], %53 {strides = array<i32>} : memref<8x128xf32, #tpu.memory_space<vmem>>, vector<8x128xf32>,
    %c0_33 = arith.constant 0 : index
    %c0_34 = arith.constant 0 : index
    %57 = vector.load %arg7[%c0_33, %c0_34] : memref<8x128xf32, #tpu.memory_space<vmem>>, vector<8x128xf32>
    tpu.vector_store %arg7[%c0_33, %c0_34], %55 {strides = array<i32>} : memref<8x128xf32, #tpu.memory_space<vmem>>, vector<8x128xf32>,
    %c8_35 = arith.constant 8 : index
    %c0_36 = arith.constant 0 : index
    %58 = vector.load %arg5[%c8_35, %c0_36] : memref<32x128xf32, #tpu.memory_space<vmem>>, vector<8x128xf32>
    tpu.vector_store %arg5[%c8_35, %c0_36], %55 {strides = array<i32>} : memref<32x128xf32, #tpu.memory_space<vmem>>, vector<8x128xf32>,
    %c16 = arith.constant 16 : index
    %c0_37 = arith.constant 0 : index
    %59 = vector.load %arg6[%c16, %c0_37] : memref<32x512xf32, #tpu.memory_space<vmem>>, vector<8x512xf32>
    %c0_38 = arith.constant 0 : index
    %c0_39 = arith.constant 0 : index
    %60 = vector.load %arg7[%c0_38, %c0_39] : memref<8x128xf32, #tpu.memory_space<vmem>>, vector<8x128xf32>
    %cst_40 = arith.constant dense<0.000000e+00> : vector<8x512xf32>
    %61 = tpu.matmul %60, %10, %cst_40 {dimension_numbers = #tpu.dot_dimension_numbers<[1], [0], [0], [1], [0, 0, 1, 1], [], []>} : vector<8x128xf32>, vector<128x512xf32>, vector<8x512xf32> -> vector<8x512xf32>
    %62 = arith.addf %59, %61 : vector<8x512xf32>
    %63 = vector.extract_strided_slice %62 {offsets = [0, 0], sizes = [8, 384], strides = [1, 1]} : vector<8x512xf32> to vector<8x384xf32>
    %64 = arith.negf %63 : vector<8x384xf32>
    %65 = math.exp %64 : vector<8x384xf32>
    %cst_41 = arith.constant 1.000000e+00 : f32
    %66 = vector.broadcast %cst_41 : f32 to vector<8x384xf32>
    %67 = arith.addf %66, %65 : vector<8x384xf32>
    %68 = arith.divf %66, %67 : vector<8x384xf32>
    %69 = vector.extract_strided_slice %62 {offsets = [0, 384], sizes = [8, 128], strides = [1, 1]} : vector<8x512xf32> to vector<8x128xf32>
    %70 = math.tanh %69 : vector<8x128xf32>
    %71 = vector.extract_strided_slice %68 {offsets = [0, 0], sizes = [8, 128], strides = [1, 1]} : vector<8x384xf32> to vector<8x128xf32>
    %72 = vector.extract_strided_slice %68 {offsets = [0, 128], sizes = [8, 128], strides = [1, 1]} : vector<8x384xf32> to vector<8x128xf32>
    %73 = vector.extract_strided_slice %68 {offsets = [0, 256], sizes = [8, 128], strides = [1, 1]} : vector<8x384xf32> to vector<8x128xf32>
    %c0_42 = arith.constant 0 : index
    %c0_43 = arith.constant 0 : index
    %74 = vector.load %arg8[%c0_42, %c0_43] : memref<8x128xf32, #tpu.memory_space<vmem>>, vector<8x128xf32>
    %75 = arith.mulf %72, %74 : vector<8x128xf32>
    %76 = arith.mulf %71, %70 : vector<8x128xf32>
    %77 = arith.addf %75, %76 : vector<8x128xf32>
    %78 = math.tanh %77 : vector<8x128xf32>
    %79 = arith.mulf %73, %78 : vector<8x128xf32>
    %c0_44 = arith.constant 0 : index
    %c0_45 = arith.constant 0 : index
    %80 = vector.load %arg8[%c0_44, %c0_45] : memref<8x128xf32, #tpu.memory_space<vmem>>, vector<8x128xf32>
    tpu.vector_store %arg8[%c0_44, %c0_45], %77 {strides = array<i32>} : memref<8x128xf32, #tpu.memory_space<vmem>>, vector<8x128xf32>,
    %c0_46 = arith.constant 0 : index
    %c0_47 = arith.constant 0 : index
    %81 = vector.load %arg7[%c0_46, %c0_47] : memref<8x128xf32, #tpu.memory_space<vmem>>, vector<8x128xf32>
    tpu.vector_store %arg7[%c0_46, %c0_47], %79 {strides = array<i32>} : memref<8x128xf32, #tpu.memory_space<vmem>>, vector<8x128xf32>,
    %c16_48 = arith.constant 16 : index
    %c0_49 = arith.constant 0 : index
    %82 = vector.load %arg5[%c16_48, %c0_49] : memref<32x128xf32, #tpu.memory_space<vmem>>, vector<8x128xf32>
    tpu.vector_store %arg5[%c16_48, %c0_49], %79 {strides = array<i32>} : memref<32x128xf32, #tpu.memory_space<vmem>>, vector<8x128xf32>,
    %c24 = arith.constant 24 : index
    %c0_50 = arith.constant 0 : index
    %83 = vector.load %arg6[%c24, %c0_50] : memref<32x512xf32, #tpu.memory_space<vmem>>, vector<8x512xf32>
    %c0_51 = arith.constant 0 : index
    %c0_52 = arith.constant 0 : index
    %84 = vector.load %arg7[%c0_51, %c0_52] : memref<8x128xf32, #tpu.memory_space<vmem>>, vector<8x128xf32>
    %cst_53 = arith.constant dense<0.000000e+00> : vector<8x512xf32>
    %85 = tpu.matmul %84, %10, %cst_53 {dimension_numbers = #tpu.dot_dimension_numbers<[1], [0], [0], [1], [0, 0, 1, 1], [], []>} : vector<8x128xf32>, vector<128x512xf32>, vector<8x512xf32> -> vector<8x512xf32>
    %86 = arith.addf %83, %85 : vector<8x512xf32>
    %87 = vector.extract_strided_slice %86 {offsets = [0, 0], sizes = [8, 384], strides = [1, 1]} : vector<8x512xf32> to vector<8x384xf32>
    %88 = arith.negf %87 : vector<8x384xf32>
    %89 = math.exp %88 : vector<8x384xf32>
    %cst_54 = arith.constant 1.000000e+00 : f32
    %90 = vector.broadcast %cst_54 : f32 to vector<8x384xf32>
    %91 = arith.addf %90, %89 : vector<8x384xf32>
    %92 = arith.divf %90, %91 : vector<8x384xf32>
    %93 = vector.extract_strided_slice %86 {offsets = [0, 384], sizes = [8, 128], strides = [1, 1]} : vector<8x512xf32> to vector<8x128xf32>
    %94 = math.tanh %93 : vector<8x128xf32>
    %95 = vector.extract_strided_slice %92 {offsets = [0, 0], sizes = [8, 128], strides = [1, 1]} : vector<8x384xf32> to vector<8x128xf32>
    %96 = vector.extract_strided_slice %92 {offsets = [0, 128], sizes = [8, 128], strides = [1, 1]} : vector<8x384xf32> to vector<8x128xf32>
    %97 = vector.extract_strided_slice %92 {offsets = [0, 256], sizes = [8, 128], strides = [1, 1]} : vector<8x384xf32> to vector<8x128xf32>
    %c0_55 = arith.constant 0 : index
    %c0_56 = arith.constant 0 : index
    %98 = vector.load %arg8[%c0_55, %c0_56] : memref<8x128xf32, #tpu.memory_space<vmem>>, vector<8x128xf32>
    %99 = arith.mulf %96, %98 : vector<8x128xf32>
    %100 = arith.mulf %95, %94 : vector<8x128xf32>
    %101 = arith.addf %99, %100 : vector<8x128xf32>
    %102 = math.tanh %101 : vector<8x128xf32>
    %103 = arith.mulf %97, %102 : vector<8x128xf32>
    %c0_57 = arith.constant 0 : index
    %c0_58 = arith.constant 0 : index
    %104 = vector.load %arg8[%c0_57, %c0_58] : memref<8x128xf32, #tpu.memory_space<vmem>>, vector<8x128xf32>
    tpu.vector_store %arg8[%c0_57, %c0_58], %101 {strides = array<i32>} : memref<8x128xf32, #tpu.memory_space<vmem>>, vector<8x128xf32>,
    %c0_59 = arith.constant 0 : index
    %c0_60 = arith.constant 0 : index
    %105 = vector.load %arg7[%c0_59, %c0_60] : memref<8x128xf32, #tpu.memory_space<vmem>>, vector<8x128xf32>
    tpu.vector_store %arg7[%c0_59, %c0_60], %103 {strides = array<i32>} : memref<8x128xf32, #tpu.memory_space<vmem>>, vector<8x128xf32>,
    %c24_61 = arith.constant 24 : index
    %c0_62 = arith.constant 0 : index
    %106 = vector.load %arg5[%c24_61, %c0_62] : memref<32x128xf32, #tpu.memory_space<vmem>>, vector<8x128xf32>
    tpu.vector_store %arg5[%c24_61, %c0_62], %103 {strides = array<i32>} : memref<32x128xf32, #tpu.memory_space<vmem>>, vector<8x128xf32>,
    return
  }
  func.func @transform_0(%arg0: i32) -> (i32, i32) {
    %c0_i32 = arith.constant 0 : i32
    %c0_i32_0 = arith.constant 0 : i32
    return %arg0, %c0_i32 : i32, i32
  }
  func.func @transform_1(%arg0: i32) -> (i32, i32) {
    %c0_i32 = arith.constant 0 : i32
    %c0_i32_0 = arith.constant 0 : i32
    %c0_i32_1 = arith.constant 0 : i32
    return %c0_i32, %c0_i32_0 : i32, i32
  }
  func.func @transform_2(%arg0: i32) -> (i32, i32) {
    %c0_i32 = arith.constant 0 : i32
    %c0_i32_0 = arith.constant 0 : i32
    %c0_i32_1 = arith.constant 0 : i32
    return %c0_i32, %c0_i32_0 : i32, i32
  }
  func.func @transform_3(%arg0: i32) -> (i32, i32) {
    %c0_i32 = arith.constant 0 : i32
    %c0_i32_0 = arith.constant 0 : i32
    %c0_i32_1 = arith.constant 0 : i32
    return %c0_i32, %c0_i32_0 : i32, i32
  }
  func.func @transform_4(%arg0: i32) -> (i32, i32) {
    %c0_i32 = arith.constant 0 : i32
    %c0_i32_0 = arith.constant 0 : i32
    return %arg0, %c0_i32 : i32, i32
  }
}

module attributes {stable_mosaic.version = 11 : i64} {
  func.func @_lstm_last_layer_kernel(%arg0: i32, %arg1: memref<32x128xf32, #tpu.memory_space<vmem>>, %arg2: memref<128x512xf32, #tpu.memory_space<vmem>>, %arg3: memref<128x512xf32, #tpu.memory_space<vmem>>, %arg4: memref<1x512xf32, #tpu.memory_space<vmem>>, %arg5: memref<128x4xf32, #tpu.memory_space<vmem>>, %arg6: memref<1x4xf32, #tpu.memory_space<vmem>>, %arg7: memref<8x4xf32, #tpu.memory_space<vmem>>, %arg8: memref<32x512xf32, #tpu.memory_space<vmem>>, %arg9: memref<8x128xf32, #tpu.memory_space<vmem>>, %arg10: memref<8x128xf32, #tpu.memory_space<vmem>>) attributes {dimension_semantics = [#tpu.dimension_semantics<arbitrary>], iteration_bounds = array<i64: 2>, scalar_prefetch = 0 : i64, scratch_operands = 3 : i64, tpu.core_type = #tpu.core_type<tc>, window_params = [{transform_indices = @transform_0, window_bounds = array<i64: 32, 128>}, {pipeline_mode = #tpu.pipeline_mode<synchronous>, transform_indices = @transform_1, window_bounds = array<i64: 128, 512>}, {pipeline_mode = #tpu.pipeline_mode<synchronous>, transform_indices = @transform_2, window_bounds = array<i64: 128, 512>}, {pipeline_mode = #tpu.pipeline_mode<synchronous>, transform_indices = @transform_3, window_bounds = array<i64: 1, 512>}, {pipeline_mode = #tpu.pipeline_mode<synchronous>, transform_indices = @transform_4, window_bounds = array<i64: 128, 4>}, {pipeline_mode = #tpu.pipeline_mode<synchronous>, transform_indices = @transform_5, window_bounds = array<i64: 1, 4>}, {pipeline_mode = #tpu.pipeline_mode<synchronous>, transform_indices = @transform_6, window_bounds = array<i64: 8, 4>}]} {
    %c0_i32 = arith.constant 0 : i32
    %0 = arith.cmpi eq, %arg0, %c0_i32 : i32
    %1 = arith.extui %0 : i1 to i32
    %c0_i32_0 = arith.constant 0 : i32
    %2 = arith.cmpi ne, %1, %c0_i32_0 : i32
    scf.if %2 {
      %cst_56 = arith.constant 0.000000e+00 : f32
      %106 = vector.broadcast %cst_56 : f32 to vector<8x128xf32>
      %c0_57 = arith.constant 0 : index
      %c0_58 = arith.constant 0 : index
      %107 = vector.load %arg9[%c0_57, %c0_58] : memref<8x128xf32, #tpu.memory_space<vmem>>, vector<8x128xf32>
      tpu.vector_store %arg9[%c0_57, %c0_58], %106 {strides = array<i32>} : memref<8x128xf32, #tpu.memory_space<vmem>>, vector<8x128xf32>,
      %cst_59 = arith.constant 0.000000e+00 : f32
      %108 = vector.broadcast %cst_59 : f32 to vector<8x128xf32>
      %c0_60 = arith.constant 0 : index
      %c0_61 = arith.constant 0 : index
      %109 = vector.load %arg10[%c0_60, %c0_61] : memref<8x128xf32, #tpu.memory_space<vmem>>, vector<8x128xf32>
      tpu.vector_store %arg10[%c0_60, %c0_61], %108 {strides = array<i32>} : memref<8x128xf32, #tpu.memory_space<vmem>>, vector<8x128xf32>,
    } else {
    }
    %c0 = arith.constant 0 : index
    %c0_1 = arith.constant 0 : index
    %3 = vector.load %arg1[%c0, %c0_1] : memref<32x128xf32, #tpu.memory_space<vmem>>, vector<32x128xf32>
    %c0_2 = arith.constant 0 : index
    %c0_3 = arith.constant 0 : index
    %4 = vector.load %arg2[%c0_2, %c0_3] : memref<128x512xf32, #tpu.memory_space<vmem>>, vector<128x512xf32>
    %cst = arith.constant dense<0.000000e+00> : vector<32x512xf32>
    %5 = tpu.matmul %3, %4, %cst {dimension_numbers = #tpu.dot_dimension_numbers<[1], [0], [0], [1], [0, 0, 1, 1], [], []>} : vector<32x128xf32>, vector<128x512xf32>, vector<32x512xf32> -> vector<32x512xf32>
    %c0_4 = arith.constant 0 : index
    %c0_5 = arith.constant 0 : index
    %6 = vector.load %arg4[%c0_4, %c0_5] : memref<1x512xf32, #tpu.memory_space<vmem>>, vector<1x512xf32>
    %7 = vector.broadcast %6 : vector<1x512xf32> to vector<32x512xf32>
    %8 = arith.addf %5, %7 : vector<32x512xf32>
    %c0_6 = arith.constant 0 : index
    %c0_7 = arith.constant 0 : index
    %9 = vector.load %arg8[%c0_6, %c0_7] : memref<32x512xf32, #tpu.memory_space<vmem>>, vector<32x512xf32>
    tpu.vector_store %arg8[%c0_6, %c0_7], %8 {strides = array<i32>} : memref<32x512xf32, #tpu.memory_space<vmem>>, vector<32x512xf32>,
    %c0_8 = arith.constant 0 : index
    %c0_9 = arith.constant 0 : index
    %10 = vector.load %arg3[%c0_8, %c0_9] : memref<128x512xf32, #tpu.memory_space<vmem>>, vector<128x512xf32>
    %c0_10 = arith.constant 0 : index
    %c0_11 = arith.constant 0 : index
    %11 = vector.load %arg8[%c0_10, %c0_11] : memref<32x512xf32, #tpu.memory_space<vmem>>, vector<8x512xf32>
    %c0_12 = arith.constant 0 : index
    %c0_13 = arith.constant 0 : index
    %12 = vector.load %arg9[%c0_12, %c0_13] : memref<8x128xf32, #tpu.memory_space<vmem>>, vector<8x128xf32>
    %cst_14 = arith.constant dense<0.000000e+00> : vector<8x512xf32>
    %13 = tpu.matmul %12, %10, %cst_14 {dimension_numbers = #tpu.dot_dimension_numbers<[1], [0], [0], [1], [0, 0, 1, 1], [], []>} : vector<8x128xf32>, vector<128x512xf32>, vector<8x512xf32> -> vector<8x512xf32>
    %14 = arith.addf %11, %13 : vector<8x512xf32>
    %15 = vector.extract_strided_slice %14 {offsets = [0, 0], sizes = [8, 384], strides = [1, 1]} : vector<8x512xf32> to vector<8x384xf32>
    %16 = arith.negf %15 : vector<8x384xf32>
    %17 = math.exp %16 : vector<8x384xf32>
    %cst_15 = arith.constant 1.000000e+00 : f32
    %18 = vector.broadcast %cst_15 : f32 to vector<8x384xf32>
    %19 = arith.addf %18, %17 : vector<8x384xf32>
    %20 = arith.divf %18, %19 : vector<8x384xf32>
    %21 = vector.extract_strided_slice %14 {offsets = [0, 384], sizes = [8, 128], strides = [1, 1]} : vector<8x512xf32> to vector<8x128xf32>
    %22 = math.tanh %21 : vector<8x128xf32>
    %23 = vector.extract_strided_slice %20 {offsets = [0, 0], sizes = [8, 128], strides = [1, 1]} : vector<8x384xf32> to vector<8x128xf32>
    %24 = vector.extract_strided_slice %20 {offsets = [0, 128], sizes = [8, 128], strides = [1, 1]} : vector<8x384xf32> to vector<8x128xf32>
    %25 = vector.extract_strided_slice %20 {offsets = [0, 256], sizes = [8, 128], strides = [1, 1]} : vector<8x384xf32> to vector<8x128xf32>
    %c0_16 = arith.constant 0 : index
    %c0_17 = arith.constant 0 : index
    %26 = vector.load %arg10[%c0_16, %c0_17] : memref<8x128xf32, #tpu.memory_space<vmem>>, vector<8x128xf32>
    %27 = arith.mulf %24, %26 : vector<8x128xf32>
    %28 = arith.mulf %23, %22 : vector<8x128xf32>
    %29 = arith.addf %27, %28 : vector<8x128xf32>
    %30 = math.tanh %29 : vector<8x128xf32>
    %31 = arith.mulf %25, %30 : vector<8x128xf32>
    %c0_18 = arith.constant 0 : index
    %c0_19 = arith.constant 0 : index
    %32 = vector.load %arg10[%c0_18, %c0_19] : memref<8x128xf32, #tpu.memory_space<vmem>>, vector<8x128xf32>
    tpu.vector_store %arg10[%c0_18, %c0_19], %29 {strides = array<i32>} : memref<8x128xf32, #tpu.memory_space<vmem>>, vector<8x128xf32>,
    %c0_20 = arith.constant 0 : index
    %c0_21 = arith.constant 0 : index
    %33 = vector.load %arg9[%c0_20, %c0_21] : memref<8x128xf32, #tpu.memory_space<vmem>>, vector<8x128xf32>
    tpu.vector_store %arg9[%c0_20, %c0_21], %31 {strides = array<i32>} : memref<8x128xf32, #tpu.memory_space<vmem>>, vector<8x128xf32>,
    %c8 = arith.constant 8 : index
    %c0_22 = arith.constant 0 : index
    %34 = vector.load %arg8[%c8, %c0_22] : memref<32x512xf32, #tpu.memory_space<vmem>>, vector<8x512xf32>
    %c0_23 = arith.constant 0 : index
    %c0_24 = arith.constant 0 : index
    %35 = vector.load %arg9[%c0_23, %c0_24] : memref<8x128xf32, #tpu.memory_space<vmem>>, vector<8x128xf32>
    %cst_25 = arith.constant dense<0.000000e+00> : vector<8x512xf32>
    %36 = tpu.matmul %35, %10, %cst_25 {dimension_numbers = #tpu.dot_dimension_numbers<[1], [0], [0], [1], [0, 0, 1, 1], [], []>} : vector<8x128xf32>, vector<128x512xf32>, vector<8x512xf32> -> vector<8x512xf32>
    %37 = arith.addf %34, %36 : vector<8x512xf32>
    %38 = vector.extract_strided_slice %37 {offsets = [0, 0], sizes = [8, 384], strides = [1, 1]} : vector<8x512xf32> to vector<8x384xf32>
    %39 = arith.negf %38 : vector<8x384xf32>
    %40 = math.exp %39 : vector<8x384xf32>
    %cst_26 = arith.constant 1.000000e+00 : f32
    %41 = vector.broadcast %cst_26 : f32 to vector<8x384xf32>
    %42 = arith.addf %41, %40 : vector<8x384xf32>
    %43 = arith.divf %41, %42 : vector<8x384xf32>
    %44 = vector.extract_strided_slice %37 {offsets = [0, 384], sizes = [8, 128], strides = [1, 1]} : vector<8x512xf32> to vector<8x128xf32>
    %45 = math.tanh %44 : vector<8x128xf32>
    %46 = vector.extract_strided_slice %43 {offsets = [0, 0], sizes = [8, 128], strides = [1, 1]} : vector<8x384xf32> to vector<8x128xf32>
    %47 = vector.extract_strided_slice %43 {offsets = [0, 128], sizes = [8, 128], strides = [1, 1]} : vector<8x384xf32> to vector<8x128xf32>
    %48 = vector.extract_strided_slice %43 {offsets = [0, 256], sizes = [8, 128], strides = [1, 1]} : vector<8x384xf32> to vector<8x128xf32>
    %c0_27 = arith.constant 0 : index
    %c0_28 = arith.constant 0 : index
    %49 = vector.load %arg10[%c0_27, %c0_28] : memref<8x128xf32, #tpu.memory_space<vmem>>, vector<8x128xf32>
    %50 = arith.mulf %47, %49 : vector<8x128xf32>
    %51 = arith.mulf %46, %45 : vector<8x128xf32>
    %52 = arith.addf %50, %51 : vector<8x128xf32>
    %53 = math.tanh %52 : vector<8x128xf32>
    %54 = arith.mulf %48, %53 : vector<8x128xf32>
    %c0_29 = arith.constant 0 : index
    %c0_30 = arith.constant 0 : index
    %55 = vector.load %arg10[%c0_29, %c0_30] : memref<8x128xf32, #tpu.memory_space<vmem>>, vector<8x128xf32>
    tpu.vector_store %arg10[%c0_29, %c0_30], %52 {strides = array<i32>} : memref<8x128xf32, #tpu.memory_space<vmem>>, vector<8x128xf32>,
    %c0_31 = arith.constant 0 : index
    %c0_32 = arith.constant 0 : index
    %56 = vector.load %arg9[%c0_31, %c0_32] : memref<8x128xf32, #tpu.memory_space<vmem>>, vector<8x128xf32>
    tpu.vector_store %arg9[%c0_31, %c0_32], %54 {strides = array<i32>} : memref<8x128xf32, #tpu.memory_space<vmem>>, vector<8x128xf32>,
    %c16 = arith.constant 16 : index
    %c0_33 = arith.constant 0 : index
    %57 = vector.load %arg8[%c16, %c0_33] : memref<32x512xf32, #tpu.memory_space<vmem>>, vector<8x512xf32>
    %c0_34 = arith.constant 0 : index
    %c0_35 = arith.constant 0 : index
    %58 = vector.load %arg9[%c0_34, %c0_35] : memref<8x128xf32, #tpu.memory_space<vmem>>, vector<8x128xf32>
    %cst_36 = arith.constant dense<0.000000e+00> : vector<8x512xf32>
    %59 = tpu.matmul %58, %10, %cst_36 {dimension_numbers = #tpu.dot_dimension_numbers<[1], [0], [0], [1], [0, 0, 1, 1], [], []>} : vector<8x128xf32>, vector<128x512xf32>, vector<8x512xf32> -> vector<8x512xf32>
    %60 = arith.addf %57, %59 : vector<8x512xf32>
    %61 = vector.extract_strided_slice %60 {offsets = [0, 0], sizes = [8, 384], strides = [1, 1]} : vector<8x512xf32> to vector<8x384xf32>
    %62 = arith.negf %61 : vector<8x384xf32>
    %63 = math.exp %62 : vector<8x384xf32>
    %cst_37 = arith.constant 1.000000e+00 : f32
    %64 = vector.broadcast %cst_37 : f32 to vector<8x384xf32>
    %65 = arith.addf %64, %63 : vector<8x384xf32>
    %66 = arith.divf %64, %65 : vector<8x384xf32>
    %67 = vector.extract_strided_slice %60 {offsets = [0, 384], sizes = [8, 128], strides = [1, 1]} : vector<8x512xf32> to vector<8x128xf32>
    %68 = math.tanh %67 : vector<8x128xf32>
    %69 = vector.extract_strided_slice %66 {offsets = [0, 0], sizes = [8, 128], strides = [1, 1]} : vector<8x384xf32> to vector<8x128xf32>
    %70 = vector.extract_strided_slice %66 {offsets = [0, 128], sizes = [8, 128], strides = [1, 1]} : vector<8x384xf32> to vector<8x128xf32>
    %71 = vector.extract_strided_slice %66 {offsets = [0, 256], sizes = [8, 128], strides = [1, 1]} : vector<8x384xf32> to vector<8x128xf32>
    %c0_38 = arith.constant 0 : index
    %c0_39 = arith.constant 0 : index
    %72 = vector.load %arg10[%c0_38, %c0_39] : memref<8x128xf32, #tpu.memory_space<vmem>>, vector<8x128xf32>
    %73 = arith.mulf %70, %72 : vector<8x128xf32>
    %74 = arith.mulf %69, %68 : vector<8x128xf32>
    %75 = arith.addf %73, %74 : vector<8x128xf32>
    %76 = math.tanh %75 : vector<8x128xf32>
    %77 = arith.mulf %71, %76 : vector<8x128xf32>
    %c0_40 = arith.constant 0 : index
    %c0_41 = arith.constant 0 : index
    %78 = vector.load %arg10[%c0_40, %c0_41] : memref<8x128xf32, #tpu.memory_space<vmem>>, vector<8x128xf32>
    tpu.vector_store %arg10[%c0_40, %c0_41], %75 {strides = array<i32>} : memref<8x128xf32, #tpu.memory_space<vmem>>, vector<8x128xf32>,
    %c0_42 = arith.constant 0 : index
    %c0_43 = arith.constant 0 : index
    %79 = vector.load %arg9[%c0_42, %c0_43] : memref<8x128xf32, #tpu.memory_space<vmem>>, vector<8x128xf32>
    tpu.vector_store %arg9[%c0_42, %c0_43], %77 {strides = array<i32>} : memref<8x128xf32, #tpu.memory_space<vmem>>, vector<8x128xf32>,
    %c24 = arith.constant 24 : index
    %c0_44 = arith.constant 0 : index
    %80 = vector.load %arg8[%c24, %c0_44] : memref<32x512xf32, #tpu.memory_space<vmem>>, vector<8x512xf32>
    %c0_45 = arith.constant 0 : index
    %c0_46 = arith.constant 0 : index
    %81 = vector.load %arg9[%c0_45, %c0_46] : memref<8x128xf32, #tpu.memory_space<vmem>>, vector<8x128xf32>
    %cst_47 = arith.constant dense<0.000000e+00> : vector<8x512xf32>
    %82 = tpu.matmul %81, %10, %cst_47 {dimension_numbers = #tpu.dot_dimension_numbers<[1], [0], [0], [1], [0, 0, 1, 1], [], []>} : vector<8x128xf32>, vector<128x512xf32>, vector<8x512xf32> -> vector<8x512xf32>
    %83 = arith.addf %80, %82 : vector<8x512xf32>
    %84 = vector.extract_strided_slice %83 {offsets = [0, 0], sizes = [8, 384], strides = [1, 1]} : vector<8x512xf32> to vector<8x384xf32>
    %85 = arith.negf %84 : vector<8x384xf32>
    %86 = math.exp %85 : vector<8x384xf32>
    %cst_48 = arith.constant 1.000000e+00 : f32
    %87 = vector.broadcast %cst_48 : f32 to vector<8x384xf32>
    %88 = arith.addf %87, %86 : vector<8x384xf32>
    %89 = arith.divf %87, %88 : vector<8x384xf32>
    %90 = vector.extract_strided_slice %83 {offsets = [0, 384], sizes = [8, 128], strides = [1, 1]} : vector<8x512xf32> to vector<8x128xf32>
    %91 = math.tanh %90 : vector<8x128xf32>
    %92 = vector.extract_strided_slice %89 {offsets = [0, 0], sizes = [8, 128], strides = [1, 1]} : vector<8x384xf32> to vector<8x128xf32>
    %93 = vector.extract_strided_slice %89 {offsets = [0, 128], sizes = [8, 128], strides = [1, 1]} : vector<8x384xf32> to vector<8x128xf32>
    %94 = vector.extract_strided_slice %89 {offsets = [0, 256], sizes = [8, 128], strides = [1, 1]} : vector<8x384xf32> to vector<8x128xf32>
    %c0_49 = arith.constant 0 : index
    %c0_50 = arith.constant 0 : index
    %95 = vector.load %arg10[%c0_49, %c0_50] : memref<8x128xf32, #tpu.memory_space<vmem>>, vector<8x128xf32>
    %96 = arith.mulf %93, %95 : vector<8x128xf32>
    %97 = arith.mulf %92, %91 : vector<8x128xf32>
    %98 = arith.addf %96, %97 : vector<8x128xf32>
    %99 = math.tanh %98 : vector<8x128xf32>
    %100 = arith.mulf %94, %99 : vector<8x128xf32>
    %c0_51 = arith.constant 0 : index
    %c0_52 = arith.constant 0 : index
    %101 = vector.load %arg10[%c0_51, %c0_52] : memref<8x128xf32, #tpu.memory_space<vmem>>, vector<8x128xf32>
    tpu.vector_store %arg10[%c0_51, %c0_52], %98 {strides = array<i32>} : memref<8x128xf32, #tpu.memory_space<vmem>>, vector<8x128xf32>,
    %c0_53 = arith.constant 0 : index
    %c0_54 = arith.constant 0 : index
    %102 = vector.load %arg9[%c0_53, %c0_54] : memref<8x128xf32, #tpu.memory_space<vmem>>, vector<8x128xf32>
    tpu.vector_store %arg9[%c0_53, %c0_54], %100 {strides = array<i32>} : memref<8x128xf32, #tpu.memory_space<vmem>>, vector<8x128xf32>,
    %c1_i32 = arith.constant 1 : i32
    %103 = arith.cmpi eq, %arg0, %c1_i32 : i32
    %104 = arith.extui %103 : i1 to i32
    %c0_i32_55 = arith.constant 0 : i32
    %105 = arith.cmpi ne, %104, %c0_i32_55 : i32
    scf.if %105 {
      %c0_56 = arith.constant 0 : index
      %c0_57 = arith.constant 0 : index
      %106 = vector.load %arg9[%c0_56, %c0_57] : memref<8x128xf32, #tpu.memory_space<vmem>>, vector<8x128xf32>
      %c0_58 = arith.constant 0 : index
      %c0_59 = arith.constant 0 : index
      %107 = vector.load %arg5[%c0_58, %c0_59] : memref<128x4xf32, #tpu.memory_space<vmem>>, vector<128x4xf32>
      %cst_60 = arith.constant dense<0.000000e+00> : vector<8x4xf32>
      %108 = tpu.matmul %106, %107, %cst_60 {dimension_numbers = #tpu.dot_dimension_numbers<[1], [0], [0], [1], [0, 0, 1, 1], [], []>} : vector<8x128xf32>, vector<128x4xf32>, vector<8x4xf32> -> vector<8x4xf32>
      %c0_61 = arith.constant 0 : index
      %c0_62 = arith.constant 0 : index
      %109 = vector.load %arg6[%c0_61, %c0_62] : memref<1x4xf32, #tpu.memory_space<vmem>>, vector<1x4xf32>
      %110 = vector.broadcast %109 : vector<1x4xf32> to vector<8x4xf32>
      %111 = arith.addf %108, %110 : vector<8x4xf32>
      %c0_63 = arith.constant 0 : index
      %c0_64 = arith.constant 0 : index
      %112 = vector.load %arg7[%c0_63, %c0_64] : memref<8x4xf32, #tpu.memory_space<vmem>>, vector<8x4xf32>
      tpu.vector_store %arg7[%c0_63, %c0_64], %111 {strides = array<i32>} : memref<8x4xf32, #tpu.memory_space<vmem>>, vector<8x4xf32>,
    } else {
    }
    return
  }
  func.func @transform_0(%arg0: i32) -> (i32, i32) {
    %c0_i32 = arith.constant 0 : i32
    %c0_i32_0 = arith.constant 0 : i32
    return %arg0, %c0_i32 : i32, i32
  }
  func.func @transform_1(%arg0: i32) -> (i32, i32) {
    %c0_i32 = arith.constant 0 : i32
    %c0_i32_0 = arith.constant 0 : i32
    %c0_i32_1 = arith.constant 0 : i32
    return %c0_i32, %c0_i32_0 : i32, i32
  }
  func.func @transform_2(%arg0: i32) -> (i32, i32) {
    %c0_i32 = arith.constant 0 : i32
    %c0_i32_0 = arith.constant 0 : i32
    %c0_i32_1 = arith.constant 0 : i32
    return %c0_i32, %c0_i32_0 : i32, i32
  }
  func.func @transform_3(%arg0: i32) -> (i32, i32) {
    %c0_i32 = arith.constant 0 : i32
    %c0_i32_0 = arith.constant 0 : i32
    %c0_i32_1 = arith.constant 0 : i32
    return %c0_i32, %c0_i32_0 : i32, i32
  }
  func.func @transform_4(%arg0: i32) -> (i32, i32) {
    %c0_i32 = arith.constant 0 : i32
    %c0_i32_0 = arith.constant 0 : i32
    %c0_i32_1 = arith.constant 0 : i32
    return %c0_i32, %c0_i32_0 : i32, i32
  }
  func.func @transform_5(%arg0: i32) -> (i32, i32) {
    %c0_i32 = arith.constant 0 : i32
    %c0_i32_0 = arith.constant 0 : i32
    %c0_i32_1 = arith.constant 0 : i32
    return %c0_i32, %c0_i32_0 : i32, i32
  }
  func.func @transform_6(%arg0: i32) -> (i32, i32) {
    %c0_i32 = arith.constant 0 : i32
    %c0_i32_0 = arith.constant 0 : i32
    %c0_i32_1 = arith.constant 0 : i32
    return %c0_i32, %c0_i32_0 : i32, i32
  }
}

</mosaic_0001>

<llo_original>
// kernel: lstm_model_forward.2
$region0: #{lstm_model_forward.2}
  #allocation0 [shape = 'u32[]', space=smem, size = 0x4, offset = 0x4, fixed_abs, tag = 'smem constant byte address 0x4 - core index']
  #allocation1 [shape = 'u32[144,128]{1,0:T(1,128)}', space=vmem, size = 0x12000, scoped, tag = 'internal scratch']
  #allocation2 [shape = 'f32[32,512]{1,0:T(8,128)}', space=vmem, size = 0x10000, scoped, tag = 'scratch operand']
  #allocation3 [shape = 'f32[8,128]{1,0:T(8,128)}', space=vmem, size = 0x1000, scoped, tag = 'scratch operand']
  #allocation4 [shape = 'f32[8,128]{1,0:T(8,128)}', space=vmem, size = 0x1000, scoped, tag = 'scratch operand']
  %s0 = inlined_call_operand.vmem [shape: f32[64,8], index: 0, kind: input, shape index: {}]
  %s1 = inlined_call_operand.hbm [shape: f32[8,512], index: 1, kind: input, shape index: {}]
  %s2 = inlined_call_operand.hbm [shape: f32[128,512], index: 2, kind: input, shape index: {}]
  %s3 = inlined_call_operand.hbm [shape: f32[1,512], index: 3, kind: input, shape index: {}]
  %s4 = inlined_call_operand.vmem [shape: f32[64,128], index: 4, kind: output, shape index: {}]
  %s5 = sld [smem:[#allocation0]]
  $region65: #{lstm_model_forward.2} parent=0
    _
  %s7 = ssub.s32 1, %s5
  %s8 = scalar_select 0, %s7, %s5
  $region1: #{lstm_model_forward.2} parent=0
    #allocation5 [shape = 'u8[16384]{0}', space=vmem, size = 0x4000, scoped, tag = 'input window, operand 1, single buffered']
    #allocation6 [shape = 's32[2]{0}', space=sflag, size = 0x8, scoped, tag = 'scoped memory for lstm_model_forward.2']
    #allocation7 [shape = 'u8[262144]{0}', space=vmem, size = 0x40000, scoped, tag = 'input window, operand 2, single buffered']
    #allocation8 [shape = 's32[1]{0}', space=sflag, size = 0x4, scoped, tag = 'scoped memory for lstm_model_forward.2']
    #allocation9 [shape = 'u8[2048]{0}', space=vmem, size = 0x800, scoped, tag = 'input window, operand 3, single buffered']
    %9 = vsyncpa [#allocation6], 0
    %10 = vsyncpa [#allocation8], 0
    loop: start=0, step=1, limit=4
    $region2: #{lstm_model_forward.2} parent=1 // loop_pre_header
      _
    $region3: #{lstm_model_forward.2} parent=1 // loop_header
      %s12 = sphi 0, %s16
      %p13 = scmp.ge.s32.totalorder %s12, 4
      %s22 = sphi 0, %s24
      %s25 = sphi 0, %s22
      %s26 = sphi 0, %s25
      %s42 = sphi 0, %s26
      %s46 = sphi 0, %s46
      %s48 = sphi 0, %s46
      %s49 = sphi 0, %s48
      %s63 = sphi 0, %s49
      %s67 = sphi 0, %s67
      %s69 = sphi 0, %s67
      %s70 = sphi 0, %s69
      %s84 = sphi 0, %s70
      %s88 = sphi 0, %s88
      %s90 = sphi 0, %s88
      %s91 = sphi 0, %s90
      %s105 = sphi 0, %s91
      %s111 = sphi 0, %s113
      %s114 = sphi 0, %s111
      %s115 = sphi 0, %s114
      %s131 = sphi 0, %s115
    $region4: #{lstm_model_forward.2} parent=1 // loop_header_branch
      %15 = sbr.rel (%p13) target = $region8
    $region5: #{lstm_model_forward.2} parent=1 // loop_body
      %s17 = ssub.s32 %s12, 1
      %s18 = ssub.s32 %s12, 2
      %s19 = sadd.s32 %s12, 1
      %s20 = ssub.s32 %s12, %s19
      %p21 = scmp.eq.s32.totalorder %s20, 0
      %s23 = sadd.s32 %s22, 1
      %s24 = scalar_select %p21, %s22, %s23
      %p27 = pneg %p21
      %p28 = scmp.eq.s32.totalorder %s12, 1
      %p29 = por %p27, %p28
      %p30 = scmp.ne.s32.totalorder %s22, %s25
      %p31 = scmp.eq.s32.totalorder %s12, 0
      %p32 = por %p30, %p31
      %p33 = scmp.ne.s32.totalorder %s22, %s25
      %p34 = scmp.eq.s32.totalorder %s17, 1
      %p35 = por %p33, %p34
      %p36 = scmp.ne.s32.totalorder %s25, %s26
      %p37 = scmp.eq.s32.totalorder %s17, 0
      %p38 = por %p36, %p37
      %p39 = scmp.ne.s32.totalorder %s25, %s26
      %p40 = scmp.eq.s32.totalorder %s18, 1
      %p41 = por %p39, %p40
      %p43 = scmp.ne.s32.totalorder %s26, %s42
      %p44 = scmp.eq.s32.totalorder %s18, 0
      %p45 = por %p43, %p44
      %s47 = sadd.s32 %s46, 1
      %p50 = scmp.eq.s32.totalorder %s12, 1
      %p51 = scmp.ne.s32.totalorder %s46, %s48
      %p52 = scmp.eq.s32.totalorder %s12, 0
      %p53 = por %p51, %p52
      %p54 = scmp.ne.s32.totalorder %s46, %s48
      %p55 = scmp.eq.s32.totalorder %s17, 1
      %p56 = por %p54, %p55
      %p57 = scmp.ne.s32.totalorder %s48, %s49
      %p58 = scmp.eq.s32.totalorder %s17, 0
      %p59 = por %p57, %p58
      %p60 = scmp.ne.s32.totalorder %s48, %s49
      %p61 = scmp.eq.s32.totalorder %s18, 1
      %p62 = por %p60, %p61
      %p64 = scmp.ne.s32.totalorder %s49, %s63
      %p65 = scmp.eq.s32.totalorder %s18, 0
      %p66 = por %p64, %p65
      %s68 = sadd.s32 %s67, 1
      %p71 = scmp.eq.s32.totalorder %s12, 1
      %p72 = scmp.ne.s32.totalorder %s67, %s69
      %p73 = scmp.eq.s32.totalorder %s12, 0
      %p74 = por %p72, %p73
      %p75 = scmp.ne.s32.totalorder %s67, %s69
      %p76 = scmp.eq.s32.totalorder %s17, 1
      %p77 = por %p75, %p76
      %p78 = scmp.ne.s32.totalorder %s69, %s70
      %p79 = scmp.eq.s32.totalorder %s17, 0
      %p80 = por %p78, %p79
      %p81 = scmp.ne.s32.totalorder %s69, %s70
      %p82 = scmp.eq.s32.totalorder %s18, 1
      %p83 = por %p81, %p82
      %p85 = scmp.ne.s32.totalorder %s70, %s84
      %p86 = scmp.eq.s32.totalorder %s18, 0
      %p87 = por %p85, %p86
      %s89 = sadd.s32 %s88, 1
      %p92 = scmp.eq.s32.totalorder %s12, 1
      %p93 = scmp.ne.s32.totalorder %s88, %s90
      %p94 = scmp.eq.s32.totalorder %s12, 0
      %p95 = por %p93, %p94
      %p96 = scmp.ne.s32.totalorder %s88, %s90
      %p97 = scmp.eq.s32.totalorder %s17, 1
      %p98 = por %p96, %p97
      %p99 = scmp.ne.s32.totalorder %s90, %s91
      %p100 = scmp.eq.s32.totalorder %s17, 0
      %p101 = por %p99, %p100
      %p102 = scmp.ne.s32.totalorder %s90, %s91
      %p103 = scmp.eq.s32.totalorder %s18, 1
      %p104 = por %p102, %p103
      %p106 = scmp.ne.s32.totalorder %s91, %s105
      %p107 = scmp.eq.s32.totalorder %s18, 0
      %p108 = por %p106, %p107
      %s109 = ssub.s32 %s12, %s19
      %p110 = scmp.eq.s32.totalorder %s109, 0
      %s112 = sadd.s32 %s111, 1
      %s113 = scalar_select %p110, %s111, %s112
      %p116 = pneg %p110
      %p117 = scmp.eq.s32.totalorder %s12, 1
      %p118 = por %p116, %p117
      %p119 = scmp.ne.s32.totalorder %s111, %s114
      %p120 = scmp.eq.s32.totalorder %s12, 0
      %p121 = por %p119, %p120
      %p122 = scmp.ne.s32.totalorder %s111, %s114
      %p123 = scmp.eq.s32.totalorder %s17, 1
      %p124 = por %p122, %p123
      %p125 = scmp.ne.s32.totalorder %s114, %s115
      %p126 = scmp.eq.s32.totalorder %s17, 0
      %p127 = por %p125, %p126
      %p128 = scmp.ne.s32.totalorder %s114, %s115
      %p129 = scmp.eq.s32.totalorder %s18, 1
      %p130 = por %p128, %p129
      %p132 = scmp.ne.s32.totalorder %s115, %s131
      %p133 = scmp.eq.s32.totalorder %s18, 0
      %p134 = por %p132, %p133
      %p135 = scmp.le.s32.totalorder 1, %s12
      %p136 = scmp.lt.s32.totalorder %s12, 3
      %p137 = pnand %p135, %p136
      %p138 = pneg %p137
      // Predicated region
      $region9: #{lstm_model_forward.2} parent=5 // pred_check
        _
      $region10: #{lstm_model_forward.2} parent=5 // pred_check_branch
        %140 = sbr.rel (%p137) target = $region12
      $region11: #{lstm_model_forward.2} parent=5 // pred_region
        %s141 = ssub.s32 %s12, 1
        // Predicated region
        $region13: #{lstm_model_forward.2} parent=11 // pred_check
          %p142 = pneg %p59
        $region14: #{lstm_model_forward.2} parent=11 // pred_check_branch
          %144 = sbr.rel (%p142) target = $region16
        $region15: #{lstm_model_forward.2} parent=11 // pred_region
          %s146 = ssub.s32 512, 512
          %147 = vsyncadd [#allocation6], %s146
          %s149 = sshll.u32 [#allocation5], 4
          %s150 = int_to_ptr.vmem [resolvable:$true] %s149
          %152 = dma.hbm_to_vmem [thread:$0]  %s1, 512, %s150, [#allocation6]
        $region16: #{lstm_model_forward.2} parent=11 // pred_fallthru
          _
        // Predicated region
        $region17: #{lstm_model_forward.2} parent=11 // pred_check
          %p153 = pneg %p80
        $region18: #{lstm_model_forward.2} parent=11 // pred_check_branch
          %155 = sbr.rel (%p153) target = $region20
        $region19: #{lstm_model_forward.2} parent=11 // pred_region
          %s157 = ssub.s32 8192, 8192
          %158 = vsyncadd [#allocation8], %s157
          %s159 = sshll.u32 [#allocation7], 4
          %s160 = int_to_ptr.vmem [resolvable:$true] %s159
          %165 = dma.hbm_to_vmem [thread:$0]  %s2, 8192, %s160, [#allocation8], 512, 512, 32
        $region20: #{lstm_model_forward.2} parent=11 // pred_fallthru
          _
        // Predicated region
        $region21: #{lstm_model_forward.2} parent=11 // pred_check
          %p166 = pneg %p101
        $region22: #{lstm_model_forward.2} parent=11 // pred_check_branch
          %168 = sbr.rel (%p166) target = $region24
        $region23: #{lstm_model_forward.2} parent=11 // pred_region
          %s170 = ssub.s32 64, 64
          %171 = vsyncadd [#allocation8], %s170
          %s173 = sshll.u32 [#allocation9], 4
          %s174 = int_to_ptr.vmem [resolvable:$true] %s173
          %176 = dma.hbm_to_vmem [thread:$0]  %s3, 64, %s174, [#allocation8]
        $region24: #{lstm_model_forward.2} parent=11 // pred_fallthru
          _
      $region12: #{lstm_model_forward.2} parent=5 // pred_fallthru
        _
      %p177 = scmp.lt.s32.totalorder %s12, 2
      // Predicated region
      $region25: #{lstm_model_forward.2} parent=5 // pred_check
        %p178 = pneg %p177
      $region26: #{lstm_model_forward.2} parent=5 // pred_check_branch
        %180 = sbr.rel (%p178) target = $region28
      $region27: #{lstm_model_forward.2} parent=5 // pred_region
        // Predicated region
        $region29: #{lstm_model_forward.2} parent=27 // pred_check
          %p181 = pneg %p32
        $region30: #{lstm_model_forward.2} parent=27 // pred_check_branch
          %183 = sbr.rel (%p181) target = $region32
        $region31: #{lstm_model_forward.2} parent=27 // pred_region
          %s184 = smul.u32 4, %s12
          %p185 = scmp.lt.s32.totalorder %s184, 7
          %s186 = scalar_select %p185, %s184, 7
          %s187 = smul.addr %s186, 8
          %s188 = scalar_lea.vmem %s0, %s187
          %s189 = smul.u32 4, %s12
        $region32: #{lstm_model_forward.2} parent=27 // pred_fallthru
          _
      $region28: #{lstm_model_forward.2} parent=5 // pred_fallthru
        _
      %p190 = scmp.le.s32.totalorder 1, %s12
      %p191 = scmp.lt.s32.totalorder %s12, 3
      %p192 = pnand %p190, %p191
      %p193 = pneg %p192
      // Predicated region
      $region33: #{lstm_model_forward.2} parent=5 // pred_check
        _
      $region34: #{lstm_model_forward.2} parent=5 // pred_check_branch
        %195 = sbr.rel (%p192) target = $region36
      $region35: #{lstm_model_forward.2} parent=5 // pred_region
        %s196 = ssub.s32 %s12, 1
        // Predicated region
        $region37: #{lstm_model_forward.2} parent=35 // pred_check
          %p197 = pneg %p59
        $region38: #{lstm_model_forward.2} parent=35 // pred_check_branch
          %199 = sbr.rel (%p197) target = $region40
        $region39: #{lstm_model_forward.2} parent=35 // pred_region
          %200 = dma.done [#allocation6], 512
        $region40: #{lstm_model_forward.2} parent=35 // pred_fallthru
          _
        // Predicated region
        $region41: #{lstm_model_forward.2} parent=35 // pred_check
          %p201 = pneg %p80
        $region42: #{lstm_model_forward.2} parent=35 // pred_check_branch
          %203 = sbr.rel (%p201) target = $region44
        $region43: #{lstm_model_forward.2} parent=35 // pred_region
          %204 = dma.done [#allocation8], 8192
        $region44: #{lstm_model_forward.2} parent=35 // pred_fallthru
          _
        // Predicated region
        $region45: #{lstm_model_forward.2} parent=35 // pred_check
          %p205 = pneg %p101
        $region46: #{lstm_model_forward.2} parent=35 // pred_check_branch
          %207 = sbr.rel (%p205) target = $region48
        $region47: #{lstm_model_forward.2} parent=35 // pred_region
          %208 = dma.done [#allocation8], 64
        $region48: #{lstm_model_forward.2} parent=35 // pred_fallthru
          _
        %s209 = smul.u32 4, %s17
        %p210 = scmp.lt.s32.totalorder %s209, 7
        %s211 = scalar_select %p210, %s209, 7
        %s212 = smul.addr %s211, 8
        %s213 = scalar_lea.vmem %s0, %s212
        %p214 = pneg %p38
        %p215 = pneg %p35
        %p216 = pneg %p59
        %p217 = pneg %p56
        %p218 = pneg %p80
        %p219 = pneg %p77
        %p220 = pneg %p101
        %p221 = pneg %p98
        %p222 = pneg %p127
        %p223 = pneg %p124
        %s224 = smul.u32 4, %s17
        %p225 = scmp.lt.s32.totalorder %s224, 7
        %s226 = scalar_select %p225, %s224, 7
        %s227 = smul.addr %s226, 8
        %s228 = scalar_lea.vmem %s4, %s227
        %s229 = smul.u32 4, %s17
        %p230 = scmp.lt.s32.totalorder %s229, 7
        %s231 = scalar_select %p230, %s229, 7
        %s232 = smul.addr %s231, 8
        %s233 = scalar_lea.vmem %s0, %s232
        %s234 = smul.u32 4, %s17
        %s235 = smul.u32 4, %s17
        %p236 = scmp.lt.s32.totalorder %s235, 7
        %s237 = scalar_select %p236, %s235, 7
        %s238 = smul.addr %s237, 8
        %s239 = scalar_lea.vmem %s4, %s238
        %s240 = smul.u32 4, %s17
        %p241 = scmp.eq.s32.totalorder %s17, 0
        // Predicated region
        $region49: #{lstm_model_forward.2} parent=35 // pred_check
          %p242 = pneg %p241
        $region50: #{lstm_model_forward.2} parent=35 // pred_check_branch
          %244 = sbr.rel (%p242) target = $region52
        $region51: #{lstm_model_forward.2} parent=35 // pred_region
          %245 = vst [vmem:[#allocation3] sm:$0xff] 0.0
          %246 = vst [vmem:[#allocation4] sm:$0xff] 0.0
        $region52: #{lstm_model_forward.2} parent=35 // pred_fallthru
          _
        %v247 = vld [vmem:[%s233] sm:$0xff]
        %v248 = vld [vmem:[%s233 + $0x8] sm:$0xff]
        %v249 = vld [vmem:[%s233 + $0x10] sm:$0xff]
        %v250 = vld [vmem:[%s233 + $0x18] sm:$0xff]
        %v251 = vld [vmem:[#allocation5] sm:$0xff]
        %v252 = vld [vmem:[#allocation5 + $0x8] sm:$0xff]
        %v253 = vld [vmem:[#allocation5 + $0x10] sm:$0xff]
        %v254 = vld [vmem:[#allocation5 + $0x18] sm:$0xff]
        %v255 = vld [vmem:[#allocation9] sm:$0xf]
        %v257 = vlaneseq
        %v258 = vshrl.u32 %v257, 7
        %v259 = vsub.s32 0, %v258
        %v260 = vrot.slane %v255, %v259
        %v261 = vlaneseq
        %v262 = vshrl.u32 %v261, 7
        %v263 = vsub.s32 1, %v262
        %v264 = vrot.slane %v255, %v263
        %v265 = vlaneseq
        %v266 = vshrl.u32 %v265, 7
        %v267 = vsub.s32 2, %v266
        %v268 = vrot.slane %v255, %v267
        %v269 = vlaneseq
        %v270 = vshrl.u32 %v269, 7
        %v271 = vsub.s32 3, %v270
        %v272 = vrot.slane %v255, %v271
        %vm277 = vcmask 64512
        %v279 = vsel %vm277, %v247, 0
        %v282 = vsel %vm277, %v248, 0
        %v285 = vsel %vm277, %v249, 0
        %v288 = vsel %vm277, %v250, 0
        %290 = vmatprep.subr.mxu0 %v252
        %291 = vmatpush1.msra.mxu0 %v251
        %292 = vmatprep.subr.mxu0 0.0
        %293 = vmatpush1.msra.mxu0 0.0
        %294 = vmatprep.subr.mxu0 0.0
        %295 = vmatpush1.msra.mxu0 0.0
        %296 = vmatprep.subr.mxu0 0.0
        %297 = vmatpush1.msra.mxu0 0.0
        %298 = vmatprep.subr.mxu0 0.0
        %299 = vmatpush1.msra.mxu0 0.0
        %300 = vmatprep.subr.mxu0 0.0
        %301 = vmatpush1.msra.mxu0 0.0
        %302 = vmatprep.subr.mxu0 0.0
        %303 = vmatpush1.msra.mxu0 0.0
        %304 = vmatprep.subr.mxu0 0.0
        %305 = vmatpush1.msra.mxu0 0.0
        %306 = vmatprep.subr.mxu0 0.0
        %307 = vmatpush1.msra.mxu0 0.0
        %308 = vmatprep.subr.mxu0 0.0
        %309 = vmatpush1.msra.mxu0 0.0
        %310 = vmatprep.subr.mxu0 0.0
        %311 = vmatpush1.msra.mxu0 0.0
        %312 = vmatprep.subr.mxu0 0.0
        %313 = vmatpush1.msra.mxu0 0.0
        %314 = vmatprep.subr.mxu0 0.0
        %315 = vmatpush1.msra.mxu0 0.0
        %316 = vmatprep.subr.mxu0 0.0
        %317 = vmatpush1.msra.mxu0 0.0
        %318 = vmatprep.subr.mxu0 0.0
        %319 = vmatpush1.msra.mxu0 0.0
        %320 = vmatprep.subr.mxu0 0.0
        %321 = vmatpush1.msra.mxu0 0.0
        %322 = vmatprep.subr.mxu0 0.0
        %323 = vmatpush1.msra.mxu0 0.0
        %324 = vmatprep.subr.mxu0 0.0
        %325 = vmatpush1.msra.mxu0 0.0
        %326 = vmatprep.subr.mxu0 0.0
        %327 = vmatpush1.msra.mxu0 0.0
        %328 = vmatprep.subr.mxu0 0.0
        %329 = vmatpush1.msra.mxu0 0.0
        %330 = vmatprep.subr.mxu0 0.0
        %331 = vmatpush1.msra.mxu0 0.0
        %332 = vmatprep.subr.mxu0 0.0
        %333 = vmatpush1.msra.mxu0 0.0
        %334 = vmatprep.subr.mxu0 0.0
        %335 = vmatpush1.msra.mxu0 0.0
        %336 = vmatprep.subr.mxu0 0.0
        %337 = vmatpush1.msra.mxu0 0.0
        %338 = vmatprep.subr.mxu0 0.0
        %339 = vmatpush1.msra.mxu0 0.0
        %340 = vmatprep.subr.mxu0 0.0
        %341 = vmatpush1.msra.mxu0 0.0
        %342 = vmatprep.subr.mxu0 0.0
        %343 = vmatpush1.msra.mxu0 0.0
        %344 = vmatprep.subr.mxu0 0.0
        %345 = vmatpush1.msra.mxu0 0.0
        %346 = vmatprep.subr.mxu0 0.0
        %347 = vmatpush1.msra.mxu0 0.0
        %348 = vmatprep.subr.mxu0 0.0
        %349 = vmatpush1.msra.mxu0 0.0
        %350 = vmatprep.subr.mxu0 0.0
        %351 = vmatpush1.msra.mxu0 0.0
        %352 = vmatprep.subr.mxu0 0.0
        %353 = vmatpush1.msra.mxu0 0.0
        %354 = vmatprep.mubr.f32.mxu0 0.0
        %355 = vmatmul.mubr.f32.gmra.mrb[0].mxu0 %v279
        %v356 = vpop.f32.mrb[0].mxu0
        %v357 = vadd.f32 %v260, %v356
        %v358 = vpop.f32.mrb[0].mxu0
        %v359 = vadd.f32 %v264, %v358
        %360 = vmatprep.mubr.f32.mxu0 0.0
        %361 = vmatmul.mubr.f32.gmra.mrb[0].mxu0 %v282
        %v362 = vpop.f32.mrb[0].mxu0
        %v363 = vadd.f32 %v260, %v362
        %v364 = vpop.f32.mrb[0].mxu0
        %v365 = vadd.f32 %v264, %v364
        %366 = vmatprep.mubr.f32.mxu0 0.0
        %367 = vmatmul.mubr.f32.gmra.mrb[0].mxu0 %v285
        %v368 = vpop.f32.mrb[0].mxu0
        %v369 = vadd.f32 %v260, %v368
        %v370 = vpop.f32.mrb[0].mxu0
        %v371 = vadd.f32 %v264, %v370
        %372 = vmatprep.mubr.f32.mxu0 0.0
        %373 = vmatmul.mubr.f32.gmra.mrb[0].mxu0 %v288
        %v374 = vpop.f32.mrb[0].mxu0
        %v375 = vadd.f32 %v260, %v374
        %v376 = vpop.f32.mrb[0].mxu0
        %v377 = vadd.f32 %v264, %v376
        %378 = vdwg.mxu0
        %379 = vmatprep.subr.mxu0 %v254
        %380 = vmatpush1.msra.mxu0 %v253
        %381 = vmatprep.subr.mxu0 0.0
        %382 = vmatpush1.msra.mxu0 0.0
        %383 = vmatprep.subr.mxu0 0.0
        %384 = vmatpush1.msra.mxu0 0.0
        %385 = vmatprep.subr.mxu0 0.0
        %386 = vmatpush1.msra.mxu0 0.0
        %387 = vmatprep.subr.mxu0 0.0
        %388 = vmatpush1.msra.mxu0 0.0
        %389 = vmatprep.subr.mxu0 0.0
        %390 = vmatpush1.msra.mxu0 0.0
        %391 = vmatprep.subr.mxu0 0.0
        %392 = vmatpush1.msra.mxu0 0.0
        %393 = vmatprep.subr.mxu0 0.0
        %394 = vmatpush1.msra.mxu0 0.0
        %395 = vmatprep.subr.mxu0 0.0
        %396 = vmatpush1.msra.mxu0 0.0
        %397 = vmatprep.subr.mxu0 0.0
        %398 = vmatpush1.msra.mxu0 0.0
        %399 = vmatprep.subr.mxu0 0.0
        %400 = vmatpush1.msra.mxu0 0.0
        %401 = vmatprep.subr.mxu0 0.0
        %402 = vmatpush1.msra.mxu0 0.0
        %403 = vmatprep.subr.mxu0 0.0
        %404 = vmatpush1.msra.mxu0 0.0
        %405 = vmatprep.subr.mxu0 0.0
        %406 = vmatpush1.msra.mxu0 0.0
        %407 = vmatprep.subr.mxu0 0.0
        %408 = vmatpush1.msra.mxu0 0.0
        %409 = vmatprep.subr.mxu0 0.0
        %410 = vmatpush1.msra.mxu0 0.0
        %411 = vmatprep.subr.mxu0 0.0
        %412 = vmatpush1.msra.mxu0 0.0
        %413 = vmatprep.subr.mxu0 0.0
        %414 = vmatpush1.msra.mxu0 0.0
        %415 = vmatprep.subr.mxu0 0.0
        %416 = vmatpush1.msra.mxu0 0.0
        %417 = vmatprep.subr.mxu0 0.0
        %418 = vmatpush1.msra.mxu0 0.0
        %419 = vmatprep.subr.mxu0 0.0
        %420 = vmatpush1.msra.mxu0 0.0
        %421 = vmatprep.subr.mxu0 0.0
        %422 = vmatpush1.msra.mxu0 0.0
        %423 = vmatprep.subr.mxu0 0.0
        %424 = vmatpush1.msra.mxu0 0.0
        %425 = vmatprep.subr.mxu0 0.0
        %426 = vmatpush1.msra.mxu0 0.0
        %427 = vmatprep.subr.mxu0 0.0
        %428 = vmatpush1.msra.mxu0 0.0
        %429 = vmatprep.subr.mxu0 0.0
        %430 = vmatpush1.msra.mxu0 0.0
        %431 = vmatprep.subr.mxu0 0.0
        %432 = vmatpush1.msra.mxu0 0.0
        %433 = vmatprep.subr.mxu0 0.0
        %434 = vmatpush1.msra.mxu0 0.0
        %435 = vmatprep.subr.mxu0 0.0
        %436 = vmatpush1.msra.mxu0 0.0
        %437 = vmatprep.subr.mxu0 0.0
        %438 = vmatpush1.msra.mxu0 0.0
        %439 = vmatprep.subr.mxu0 0.0
        %440 = vmatpush1.msra.mxu0 0.0
        %441 = vmatprep.subr.mxu0 0.0
        %442 = vmatpush1.msra.mxu0 0.0
        %443 = vmatprep.mubr.f32.mxu0 0.0
        %444 = vmatmul.mubr.f32.gmra.mrb[0].mxu0 %v279
        %v445 = vpop.f32.mrb[0].mxu0
        %v446 = vadd.f32 %v268, %v445
        %v447 = vpop.f32.mrb[0].mxu0
        %v448 = vadd.f32 %v272, %v447
        %449 = vmatprep.mubr.f32.mxu0 0.0
        %450 = vmatmul.mubr.f32.gmra.mrb[0].mxu0 %v282
        %v451 = vpop.f32.mrb[0].mxu0
        %v452 = vadd.f32 %v268, %v451
        %v453 = vpop.f32.mrb[0].mxu0
        %v454 = vadd.f32 %v272, %v453
        %455 = vmatprep.mubr.f32.mxu0 0.0
        %456 = vmatmul.mubr.f32.gmra.mrb[0].mxu0 %v285
        %v457 = vpop.f32.mrb[0].mxu0
        %v458 = vadd.f32 %v268, %v457
        %v459 = vpop.f32.mrb[0].mxu0
        %v460 = vadd.f32 %v272, %v459
        %461 = vmatprep.mubr.f32.mxu0 0.0
        %462 = vmatmul.mubr.f32.gmra.mrb[0].mxu0 %v288
        %v463 = vpop.f32.mrb[0].mxu0
        %v464 = vadd.f32 %v268, %v463
        %v465 = vpop.f32.mrb[0].mxu0
        %v466 = vadd.f32 %v272, %v465
        %467 = vdwg.mxu0
        %468 = vst [vmem:[#allocation2] sm:$0xff] %v357
        %469 = vst [vmem:[#allocation2 + $0x8] sm:$0xff] %v359
        %470 = vst [vmem:[#allocation2 + $0x10] sm:$0xff] %v446
        %471 = vst [vmem:[#allocation2 + $0x18] sm:$0xff] %v448
        %472 = vst [vmem:[#allocation2 + $0x20] sm:$0xff] %v363
        %473 = vst [vmem:[#allocation2 + $0x28] sm:$0xff] %v365
        %474 = vst [vmem:[#allocation2 + $0x30] sm:$0xff] %v452
        %475 = vst [vmem:[#allocation2 + $0x38] sm:$0xff] %v454
        %476 = vst [vmem:[#allocation2 + $0x40] sm:$0xff] %v369
        %477 = vst [vmem:[#allocation2 + $0x48] sm:$0xff] %v371
        %478 = vst [vmem:[#allocation2 + $0x50] sm:$0xff] %v458
        %479 = vst [vmem:[#allocation2 + $0x58] sm:$0xff] %v460
        %480 = vst [vmem:[#allocation2 + $0x60] sm:$0xff] %v375
        %481 = vst [vmem:[#allocation2 + $0x68] sm:$0xff] %v377
        %482 = vst [vmem:[#allocation2 + $0x70] sm:$0xff] %v464
        %483 = vst [vmem:[#allocation2 + $0x78] sm:$0xff] %v466
        %v484 = vld [vmem:[#allocation7] sm:$0xff]
        %v485 = vld [vmem:[#allocation7 + $0x8] sm:$0xff]
        %v486 = vld [vmem:[#allocation7 + $0x10] sm:$0xff]
        %v487 = vld [vmem:[#allocation7 + $0x18] sm:$0xff]
        %v488 = vld [vmem:[#allocation7 + $0x20] sm:$0xff]
        %v489 = vld [vmem:[#allocation7 + $0x28] sm:$0xff]
        %v490 = vld [vmem:[#allocation7 + $0x30] sm:$0xff]
        %v491 = vld [vmem:[#allocation7 + $0x38] sm:$0xff]
        %v492 = vld [vmem:[#allocation7 + $0x40] sm:$0xff]
        %v493 = vld [vmem:[#allocation7 + $0x48] sm:$0xff]
        %v494 = vld [vmem:[#allocation7 + $0x50] sm:$0xff]
        %v495 = vld [vmem:[#allocation7 + $0x58] sm:$0xff]
        %v496 = vld [vmem:[#allocation7 + $0x60] sm:$0xff]
        %v497 = vld [vmem:[#allocation7 + $0x68] sm:$0xff]
        %v498 = vld [vmem:[#allocation7 + $0x70] sm:$0xff]
        %v499 = vld [vmem:[#allocation7 + $0x78] sm:$0xff]
        %v500 = vld [vmem:[#allocation7 + $0x80] sm:$0xff]
        %v501 = vld [vmem:[#allocation7 + $0x88] sm:$0xff]
        %v502 = vld [vmem:[#allocation7 + $0x90] sm:$0xff]
        %v503 = vld [vmem:[#allocation7 + $0x98] sm:$0xff]
        %v504 = vld [vmem:[#allocation7 + $0xa0] sm:$0xff]
        %v505 = vld [vmem:[#allocation7 + $0xa8] sm:$0xff]
        %v506 = vld [vmem:[#allocation7 + $0xb0] sm:$0xff]
        %v507 = vld [vmem:[#allocation7 + $0xb8] sm:$0xff]
        %v508 = vld [vmem:[#allocation7 + $0xc0] sm:$0xff]
        %v509 = vld [vmem:[#allocation7 + $0xc8] sm:$0xff]
        %v510 = vld [vmem:[#allocation7 + $0xd0] sm:$0xff]
        %v511 = vld [vmem:[#allocation7 + $0xd8] sm:$0xff]
        %v512 = vld [vmem:[#allocation7 + $0xe0] sm:$0xff]
        %v513 = vld [vmem:[#allocation7 + $0xe8] sm:$0xff]
        %v514 = vld [vmem:[#allocation7 + $0xf0] sm:$0xff]
        %v515 = vld [vmem:[#allocation7 + $0xf8] sm:$0xff]
        %v516 = vld [vmem:[#allocation7 + $0x100] sm:$0xff]
        %v517 = vld [vmem:[#allocation7 + $0x108] sm:$0xff]
        %v518 = vld [vmem:[#allocation7 + $0x110] sm:$0xff]
        %v519 = vld [vmem:[#allocation7 + $0x118] sm:$0xff]
        %v520 = vld [vmem:[#allocation7 + $0x120] sm:$0xff]
        %v521 = vld [vmem:[#allocation7 + $0x128] sm:$0xff]
        %v522 = vld [vmem:[#allocation7 + $0x130] sm:$0xff]
        %v523 = vld [vmem:[#allocation7 + $0x138] sm:$0xff]
        %v524 = vld [vmem:[#allocation7 + $0x140] sm:$0xff]
        %v525 = vld [vmem:[#allocation7 + $0x148] sm:$0xff]
        %v526 = vld [vmem:[#allocation7 + $0x150] sm:$0xff]
        %v527 = vld [vmem:[#allocation7 + $0x158] sm:$0xff]
        %v528 = vld [vmem:[#allocation7 + $0x160] sm:$0xff]
        %v529 = vld [vmem:[#allocation7 + $0x168] sm:$0xff]
        %v530 = vld [vmem:[#allocation7 + $0x170] sm:$0xff]
        %v531 = vld [vmem:[#allocation7 + $0x178] sm:$0xff]
        %v532 = vld [vmem:[#allocation7 + $0x180] sm:$0xff]
        %v533 = vld [vmem:[#allocation7 + $0x188] sm:$0xff]
        %v534 = vld [vmem:[#allocation7 + $0x190] sm:$0xff]
        %v535 = vld [vmem:[#allocation7 + $0x198] sm:$0xff]
        %v536 = vld [vmem:[#allocation7 + $0x1a0] sm:$0xff]
        %v537 = vld [vmem:[#allocation7 + $0x1a8] sm:$0xff]
        %v538 = vld [vmem:[#allocation7 + $0x1b0] sm:$0xff]
        %v539 = vld [vmem:[#allocation7 + $0x1b8] sm:$0xff]
        %v540 = vld [vmem:[#allocation7 + $0x1c0] sm:$0xff]
        %v541 = vld [vmem:[#allocation7 + $0x1c8] sm:$0xff]
        %v542 = vld [vmem:[#allocation7 + $0x1d0] sm:$0xff]
        %v543 = vld [vmem:[#allocation7 + $0x1d8] sm:$0xff]
        %v544 = vld [vmem:[#allocation7 + $0x1e0] sm:$0xff]
        %v545 = vld [vmem:[#allocation7 + $0x1e8] sm:$0xff]
        %v546 = vld [vmem:[#allocation7 + $0x1f0] sm:$0xff]
        %v547 = vld [vmem:[#allocation7 + $0x1f8] sm:$0xff]
        %v548 = vld [vmem:[#allocation2] sm:$0xff]
        %v549 = vld [vmem:[#allocation2 + $0x8] sm:$0xff]
        %v550 = vld [vmem:[#allocation2 + $0x10] sm:$0xff]
        %v551 = vld [vmem:[#allocation2 + $0x18] sm:$0xff]
        %v552 = vld [vmem:[#allocation3] sm:$0xff]
        %553 = vmatprep.subr.mxu0 %v485
        %554 = vmatpush1.msra.mxu0 %v484
        %555 = vmatprep.subr.mxu0 %v489
        %556 = vmatpush1.msra.mxu0 %v488
        %557 = vmatprep.subr.mxu0 %v493
        %558 = vmatpush1.msra.mxu0 %v492
        %559 = vmatprep.subr.mxu0 %v497
        %560 = vmatpush1.msra.mxu0 %v496
        %561 = vmatprep.subr.mxu0 %v501
        %562 = vmatpush1.msra.mxu0 %v500
        %563 = vmatprep.subr.mxu0 %v505
        %564 = vmatpush1.msra.mxu0 %v504
        %565 = vmatprep.subr.mxu0 %v509
        %566 = vmatpush1.msra.mxu0 %v508
        %567 = vmatprep.subr.mxu0 %v513
        %568 = vmatpush1.msra.mxu0 %v512
        %569 = vmatprep.subr.mxu0 %v517
        %570 = vmatpush1.msra.mxu0 %v516
        %571 = vmatprep.subr.mxu0 %v521
        %572 = vmatpush1.msra.mxu0 %v520
        %573 = vmatprep.subr.mxu0 %v525
        %574 = vmatpush1.msra.mxu0 %v524
        %575 = vmatprep.subr.mxu0 %v529
        %576 = vmatpush1.msra.mxu0 %v528
        %577 = vmatprep.subr.mxu0 %v533
        %578 = vmatpush1.msra.mxu0 %v532
        %579 = vmatprep.subr.mxu0 %v537
        %580 = vmatpush1.msra.mxu0 %v536
        %581 = vmatprep.subr.mxu0 %v541
        %582 = vmatpush1.msra.mxu0 %v540
        %583 = vmatprep.subr.mxu0 %v545
        %584 = vmatpush1.msra.mxu0 %v544
        %585 = vmatprep.subr.mxu0 0.0
        %586 = vmatpush1.msra.mxu0 0.0
        %587 = vmatprep.subr.mxu0 0.0
        %588 = vmatpush1.msra.mxu0 0.0
        %589 = vmatprep.subr.mxu0 0.0
        %590 = vmatpush1.msra.mxu0 0.0
        %591 = vmatprep.subr.mxu0 0.0
        %592 = vmatpush1.msra.mxu0 0.0
        %593 = vmatprep.subr.mxu0 0.0
        %594 = vmatpush1.msra.mxu0 0.0
        %595 = vmatprep.subr.mxu0 0.0
        %596 = vmatpush1.msra.mxu0 0.0
        %597 = vmatprep.subr.mxu0 0.0
        %598 = vmatpush1.msra.mxu0 0.0
        %599 = vmatprep.subr.mxu0 0.0
        %600 = vmatpush1.msra.mxu0 0.0
        %601 = vmatprep.subr.mxu0 0.0
        %602 = vmatpush1.msra.mxu0 0.0
        %603 = vmatprep.subr.mxu0 0.0
        %604 = vmatpush1.msra.mxu0 0.0
        %605 = vmatprep.subr.mxu0 0.0
        %606 = vmatpush1.msra.mxu0 0.0
        %607 = vmatprep.subr.mxu0 0.0
        %608 = vmatpush1.msra.mxu0 0.0
        %609 = vmatprep.subr.mxu0 0.0
        %610 = vmatpush1.msra.mxu0 0.0
        %611 = vmatprep.subr.mxu0 0.0
        %612 = vmatpush1.msra.mxu0 0.0
        %613 = vmatprep.subr.mxu0 0.0
        %614 = vmatpush1.msra.mxu0 0.0
        %615 = vmatprep.subr.mxu0 0.0
        %616 = vmatpush1.msra.mxu0 0.0
        %617 = vmatprep.mubr.f32.mxu0 0.0
        %618 = vmatmul.mubr.f32.gmra.mrb[0].mxu0 %v552
        %v619 = vpop.f32.mrb[0].mxu0
        %v620 = vadd.f32 0.0, %v619
        %v621 = vpop.f32.mrb[0].mxu0
        %v622 = vadd.f32 0.0, %v621
        %623 = vdwg.mxu0
        %624 = vmatprep.subr.mxu0 %v487
        %625 = vmatpush1.msra.mxu0 %v486
        %626 = vmatprep.subr.mxu0 %v491
        %627 = vmatpush1.msra.mxu0 %v490
        %628 = vmatprep.subr.mxu0 %v495
        %629 = vmatpush1.msra.mxu0 %v494
        %630 = vmatprep.subr.mxu0 %v499
        %631 = vmatpush1.msra.mxu0 %v498
        %632 = vmatprep.subr.mxu0 %v503
        %633 = vmatpush1.msra.mxu0 %v502
        %634 = vmatprep.subr.mxu0 %v507
        %635 = vmatpush1.msra.mxu0 %v506
        %636 = vmatprep.subr.mxu0 %v511
        %637 = vmatpush1.msra.mxu0 %v510
        %638 = vmatprep.subr.mxu0 %v515
        %639 = vmatpush1.msra.mxu0 %v514
        %640 = vmatprep.subr.mxu0 %v519
        %641 = vmatpush1.msra.mxu0 %v518
        %642 = vmatprep.subr.mxu0 %v523
        %643 = vmatpush1.msra.mxu0 %v522
        %644 = vmatprep.subr.mxu0 %v527
        %645 = vmatpush1.msra.mxu0 %v526
        %646 = vmatprep.subr.mxu0 %v531
        %647 = vmatpush1.msra.mxu0 %v530
        %648 = vmatprep.subr.mxu0 %v535
        %649 = vmatpush1.msra.mxu0 %v534
        %650 = vmatprep.subr.mxu0 %v539
        %651 = vmatpush1.msra.mxu0 %v538
        %652 = vmatprep.subr.mxu0 %v543
        %653 = vmatpush1.msra.mxu0 %v542
        %654 = vmatprep.subr.mxu0 %v547
        %655 = vmatpush1.msra.mxu0 %v546
        %656 = vmatprep.subr.mxu0 0.0
        %657 = vmatpush1.msra.mxu0 0.0
        %658 = vmatprep.subr.mxu0 0.0
        %659 = vmatpush1.msra.mxu0 0.0
        %660 = vmatprep.subr.mxu0 0.0
        %661 = vmatpush1.msra.mxu0 0.0
        %662 = vmatprep.subr.mxu0 0.0
        %663 = vmatpush1.msra.mxu0 0.0
        %664 = vmatprep.subr.mxu0 0.0
        %665 = vmatpush1.msra.mxu0 0.0
        %666 = vmatprep.subr.mxu0 0.0
        %667 = vmatpush1.msra.mxu0 0.0
        %668 = vmatprep.subr.mxu0 0.0
        %669 = vmatpush1.msra.mxu0 0.0
        %670 = vmatprep.subr.mxu0 0.0
        %671 = vmatpush1.msra.mxu0 0.0
        %672 = vmatprep.subr.mxu0 0.0
        %673 = vmatpush1.msra.mxu0 0.0
        %674 = vmatprep.subr.mxu0 0.0
        %675 = vmatpush1.msra.mxu0 0.0
        %676 = vmatprep.subr.mxu0 0.0
        %677 = vmatpush1.msra.mxu0 0.0
        %678 = vmatprep.subr.mxu0 0.0
        %679 = vmatpush1.msra.mxu0 0.0
        %680 = vmatprep.subr.mxu0 0.0
        %681 = vmatpush1.msra.mxu0 0.0
        %682 = vmatprep.subr.mxu0 0.0
        %683 = vmatpush1.msra.mxu0 0.0
        %684 = vmatprep.subr.mxu0 0.0
        %685 = vmatpush1.msra.mxu0 0.0
        %686 = vmatprep.subr.mxu0 0.0
        %687 = vmatpush1.msra.mxu0 0.0
        %688 = vmatprep.mubr.f32.mxu0 0.0
        %689 = vmatmul.mubr.f32.gmra.mrb[0].mxu0 %v552
        %v690 = vpop.f32.mrb[0].mxu0
        %v691 = vadd.f32 0.0, %v690
        %v692 = vpop.f32.mrb[0].mxu0
        %v693 = vadd.f32 0.0, %v692
        %694 = vdwg.mxu0
        %v695 = vadd.f32 %v548, %v620
        %v696 = vadd.f32 %v549, %v622
        %v697 = vadd.f32 %v550, %v691
        %v698 = vadd.f32 %v551, %v693
        %v699 = vxor.u32 %v695, 2147483648
        %v700 = vxor.u32 %v696, 2147483648
        %v701 = vxor.u32 %v697, 2147483648
        %v702 = vmul.f32 %v699, 1.442695
        %v703 = vpow.pop %v702
        %v704 = vmul.f32 %v700, 1.442695
        %v705 = vpow.pop %v704
        %v706 = vmul.f32 %v701, 1.442695
        %v707 = vpow.pop %v706
        %v708 = vadd.f32 %v703, 1.0
        %v709 = vadd.f32 %v705, 1.0
        %v710 = vadd.f32 %v707, 1.0
        %v711 = vrcp.pop %v708
        %v712 = vmul.f32 1.0, %v711
        %v713 = vrcp.pop %v709
        %v714 = vmul.f32 1.0, %v713
        %v715 = vrcp.pop %v710
        %v716 = vmul.f32 1.0, %v715
        %v717 = vtanh.pop %v698
        %v718 = vld [vmem:[#allocation4] sm:$0xff]
        %v719 = vmul.f32 %v714, %v718
        %v720 = vmul.f32 %v712, %v717
        %v721 = vadd.f32 %v719, %v720
        %v722 = vtanh.pop %v721
        %v723 = vmul.f32 %v716, %v722
        %724 = vst [vmem:[#allocation4] sm:$0xff] %v721
        %725 = vst [vmem:[#allocation3] sm:$0xff] %v723
        %726 = vst [vmem:[%s239] sm:$0xff] %v723
        %v727 = vld [vmem:[#allocation2 + $0x20] sm:$0xff]
        %v728 = vld [vmem:[#allocation2 + $0x28] sm:$0xff]
        %v729 = vld [vmem:[#allocation2 + $0x30] sm:$0xff]
        %v730 = vld [vmem:[#allocation2 + $0x38] sm:$0xff]
        %v731 = vld [vmem:[#allocation3] sm:$0xff]
        %732 = vmatprep.subr.mxu0 %v485
        %733 = vmatpush1.msra.mxu0 %v484
        %734 = vmatprep.subr.mxu0 %v489
        %735 = vmatpush1.msra.mxu0 %v488
        %736 = vmatprep.subr.mxu0 %v493
        %737 = vmatpush1.msra.mxu0 %v492
        %738 = vmatprep.subr.mxu0 %v497
        %739 = vmatpush1.msra.mxu0 %v496
        %740 = vmatprep.subr.mxu0 %v501
        %741 = vmatpush1.msra.mxu0 %v500
        %742 = vmatprep.subr.mxu0 %v505
        %743 = vmatpush1.msra.mxu0 %v504
        %744 = vmatprep.subr.mxu0 %v509
        %745 = vmatpush1.msra.mxu0 %v508
        %746 = vmatprep.subr.mxu0 %v513
        %747 = vmatpush1.msra.mxu0 %v512
        %748 = vmatprep.subr.mxu0 %v517
        %749 = vmatpush1.msra.mxu0 %v516
        %750 = vmatprep.subr.mxu0 %v521
        %751 = vmatpush1.msra.mxu0 %v520
        %752 = vmatprep.subr.mxu0 %v525
        %753 = vmatpush1.msra.mxu0 %v524
        %754 = vmatprep.subr.mxu0 %v529
        %755 = vmatpush1.msra.mxu0 %v528
        %756 = vmatprep.subr.mxu0 %v533
        %757 = vmatpush1.msra.mxu0 %v532
        %758 = vmatprep.subr.mxu0 %v537
        %759 = vmatpush1.msra.mxu0 %v536
        %760 = vmatprep.subr.mxu0 %v541
        %761 = vmatpush1.msra.mxu0 %v540
        %762 = vmatprep.subr.mxu0 %v545
        %763 = vmatpush1.msra.mxu0 %v544
        %764 = vmatprep.subr.mxu0 0.0
        %765 = vmatpush1.msra.mxu0 0.0
        %766 = vmatprep.subr.mxu0 0.0
        %767 = vmatpush1.msra.mxu0 0.0
        %768 = vmatprep.subr.mxu0 0.0
        %769 = vmatpush1.msra.mxu0 0.0
        %770 = vmatprep.subr.mxu0 0.0
        %771 = vmatpush1.msra.mxu0 0.0
        %772 = vmatprep.subr.mxu0 0.0
        %773 = vmatpush1.msra.mxu0 0.0
        %774 = vmatprep.subr.mxu0 0.0
        %775 = vmatpush1.msra.mxu0 0.0
        %776 = vmatprep.subr.mxu0 0.0
        %777 = vmatpush1.msra.mxu0 0.0
        %778 = vmatprep.subr.mxu0 0.0
        %779 = vmatpush1.msra.mxu0 0.0
        %780 = vmatprep.subr.mxu0 0.0
        %781 = vmatpush1.msra.mxu0 0.0
        %782 = vmatprep.subr.mxu0 0.0
        %783 = vmatpush1.msra.mxu0 0.0
        %784 = vmatprep.subr.mxu0 0.0
        %785 = vmatpush1.msra.mxu0 0.0
        %786 = vmatprep.subr.mxu0 0.0
        %787 = vmatpush1.msra.mxu0 0.0
        %788 = vmatprep.subr.mxu0 0.0
        %789 = vmatpush1.msra.mxu0 0.0
        %790 = vmatprep.subr.mxu0 0.0
        %791 = vmatpush1.msra.mxu0 0.0
        %792 = vmatprep.subr.mxu0 0.0
        %793 = vmatpush1.msra.mxu0 0.0
        %794 = vmatprep.subr.mxu0 0.0
        %795 = vmatpush1.msra.mxu0 0.0
        %796 = vmatprep.mubr.f32.mxu0 0.0
        %797 = vmatmul.mubr.f32.gmra.mrb[0].mxu0 %v731
        %v798 = vpop.f32.mrb[0].mxu0
        %v799 = vadd.f32 0.0, %v798
        %v800 = vpop.f32.mrb[0].mxu0
        %v801 = vadd.f32 0.0, %v800
        %802 = vdwg.mxu0
        %803 = vmatprep.subr.mxu0 %v487
        %804 = vmatpush1.msra.mxu0 %v486
        %805 = vmatprep.subr.mxu0 %v491
        %806 = vmatpush1.msra.mxu0 %v490
        %807 = vmatprep.subr.mxu0 %v495
        %808 = vmatpush1.msra.mxu0 %v494
        %809 = vmatprep.subr.mxu0 %v499
        %810 = vmatpush1.msra.mxu0 %v498
        %811 = vmatprep.subr.mxu0 %v503
        %812 = vmatpush1.msra.mxu0 %v502
        %813 = vmatprep.subr.mxu0 %v507
        %814 = vmatpush1.msra.mxu0 %v506
        %815 = vmatprep.subr.mxu0 %v511
        %816 = vmatpush1.msra.mxu0 %v510
        %817 = vmatprep.subr.mxu0 %v515
        %818 = vmatpush1.msra.mxu0 %v514
        %819 = vmatprep.subr.mxu0 %v519
        %820 = vmatpush1.msra.mxu0 %v518
        %821 = vmatprep.subr.mxu0 %v523
        %822 = vmatpush1.msra.mxu0 %v522
        %823 = vmatprep.subr.mxu0 %v527
        %824 = vmatpush1.msra.mxu0 %v526
        %825 = vmatprep.subr.mxu0 %v531
        %826 = vmatpush1.msra.mxu0 %v530
        %827 = vmatprep.subr.mxu0 %v535
        %828 = vmatpush1.msra.mxu0 %v534
        %829 = vmatprep.subr.mxu0 %v539
        %830 = vmatpush1.msra.mxu0 %v538
        %831 = vmatprep.subr.mxu0 %v543
        %832 = vmatpush1.msra.mxu0 %v542
        %833 = vmatprep.subr.mxu0 %v547
        %834 = vmatpush1.msra.mxu0 %v546
        %835 = vmatprep.subr.mxu0 0.0
        %836 = vmatpush1.msra.mxu0 0.0
        %837 = vmatprep.subr.mxu0 0.0
        %838 = vmatpush1.msra.mxu0 0.0
        %839 = vmatprep.subr.mxu0 0.0
        %840 = vmatpush1.msra.mxu0 0.0
        %841 = vmatprep.subr.mxu0 0.0
        %842 = vmatpush1.msra.mxu0 0.0
        %843 = vmatprep.subr.mxu0 0.0
        %844 = vmatpush1.msra.mxu0 0.0
        %845 = vmatprep.subr.mxu0 0.0
        %846 = vmatpush1.msra.mxu0 0.0
        %847 = vmatprep.subr.mxu0 0.0
        %848 = vmatpush1.msra.mxu0 0.0
        %849 = vmatprep.subr.mxu0 0.0
        %850 = vmatpush1.msra.mxu0 0.0
        %851 = vmatprep.subr.mxu0 0.0
        %852 = vmatpush1.msra.mxu0 0.0
        %853 = vmatprep.subr.mxu0 0.0
        %854 = vmatpush1.msra.mxu0 0.0
        %855 = vmatprep.subr.mxu0 0.0
        %856 = vmatpush1.msra.mxu0 0.0
        %857 = vmatprep.subr.mxu0 0.0
        %858 = vmatpush1.msra.mxu0 0.0
        %859 = vmatprep.subr.mxu0 0.0
        %860 = vmatpush1.msra.mxu0 0.0
        %861 = vmatprep.subr.mxu0 0.0
        %862 = vmatpush1.msra.mxu0 0.0
        %863 = vmatprep.subr.mxu0 0.0
        %864 = vmatpush1.msra.mxu0 0.0
        %865 = vmatprep.subr.mxu0 0.0
        %866 = vmatpush1.msra.mxu0 0.0
        %867 = vmatprep.mubr.f32.mxu0 0.0
        %868 = vmatmul.mubr.f32.gmra.mrb[0].mxu0 %v731
        %v869 = vpop.f32.mrb[0].mxu0
        %v870 = vadd.f32 0.0, %v869
        %v871 = vpop.f32.mrb[0].mxu0
        %v872 = vadd.f32 0.0, %v871
        %873 = vdwg.mxu0
        %v874 = vadd.f32 %v727, %v799
        %v875 = vadd.f32 %v728, %v801
        %v876 = vadd.f32 %v729, %v870
        %v877 = vadd.f32 %v730, %v872
        %v878 = vxor.u32 %v874, 2147483648
        %v879 = vxor.u32 %v875, 2147483648
        %v880 = vxor.u32 %v876, 2147483648
        %v881 = vmul.f32 %v878, 1.442695
        %v882 = vpow.pop %v881
        %v883 = vmul.f32 %v879, 1.442695
        %v884 = vpow.pop %v883
        %v885 = vmul.f32 %v880, 1.442695
        %v886 = vpow.pop %v885
        %v887 = vadd.f32 %v882, 1.0
        %v888 = vadd.f32 %v884, 1.0
        %v889 = vadd.f32 %v886, 1.0
        %v890 = vrcp.pop %v887
        %v891 = vmul.f32 1.0, %v890
        %v892 = vrcp.pop %v888
        %v893 = vmul.f32 1.0, %v892
        %v894 = vrcp.pop %v889
        %v895 = vmul.f32 1.0, %v894
        %v896 = vtanh.pop %v877
        %v897 = vld [vmem:[#allocation4] sm:$0xff]
        %v898 = vmul.f32 %v893, %v897
        %v899 = vmul.f32 %v891, %v896
        %v900 = vadd.f32 %v898, %v899
        %v901 = vtanh.pop %v900
        %v902 = vmul.f32 %v895, %v901
        %903 = vst [vmem:[#allocation4] sm:$0xff] %v900
        %904 = vst [vmem:[#allocation3] sm:$0xff] %v902
        %905 = vst [vmem:[%s239 + $0x8] sm:$0xff] %v902
        %v906 = vld [vmem:[#allocation2 + $0x40] sm:$0xff]
        %v907 = vld [vmem:[#allocation2 + $0x48] sm:$0xff]
        %v908 = vld [vmem:[#allocation2 + $0x50] sm:$0xff]
        %v909 = vld [vmem:[#allocation2 + $0x58] sm:$0xff]
        %v910 = vld [vmem:[#allocation3] sm:$0xff]
        %911 = vmatprep.subr.mxu0 %v485
        %912 = vmatpush1.msra.mxu0 %v484
        %913 = vmatprep.subr.mxu0 %v489
        %914 = vmatpush1.msra.mxu0 %v488
        %915 = vmatprep.subr.mxu0 %v493
        %916 = vmatpush1.msra.mxu0 %v492
        %917 = vmatprep.subr.mxu0 %v497
        %918 = vmatpush1.msra.mxu0 %v496
        %919 = vmatprep.subr.mxu0 %v501
        %920 = vmatpush1.msra.mxu0 %v500
        %921 = vmatprep.subr.mxu0 %v505
        %922 = vmatpush1.msra.mxu0 %v504
        %923 = vmatprep.subr.mxu0 %v509
        %924 = vmatpush1.msra.mxu0 %v508
        %925 = vmatprep.subr.mxu0 %v513
        %926 = vmatpush1.msra.mxu0 %v512
        %927 = vmatprep.subr.mxu0 %v517
        %928 = vmatpush1.msra.mxu0 %v516
        %929 = vmatprep.subr.mxu0 %v521
        %930 = vmatpush1.msra.mxu0 %v520
        %931 = vmatprep.subr.mxu0 %v525
        %932 = vmatpush1.msra.mxu0 %v524
        %933 = vmatprep.subr.mxu0 %v529
        %934 = vmatpush1.msra.mxu0 %v528
        %935 = vmatprep.subr.mxu0 %v533
        %936 = vmatpush1.msra.mxu0 %v532
        %937 = vmatprep.subr.mxu0 %v537
        %938 = vmatpush1.msra.mxu0 %v536
        %939 = vmatprep.subr.mxu0 %v541
        %940 = vmatpush1.msra.mxu0 %v540
        %941 = vmatprep.subr.mxu0 %v545
        %942 = vmatpush1.msra.mxu0 %v544
        %943 = vmatprep.subr.mxu0 0.0
        %944 = vmatpush1.msra.mxu0 0.0
        %945 = vmatprep.subr.mxu0 0.0
        %946 = vmatpush1.msra.mxu0 0.0
        %947 = vmatprep.subr.mxu0 0.0
        %948 = vmatpush1.msra.mxu0 0.0
        %949 = vmatprep.subr.mxu0 0.0
        %950 = vmatpush1.msra.mxu0 0.0
        %951 = vmatprep.subr.mxu0 0.0
        %952 = vmatpush1.msra.mxu0 0.0
        %953 = vmatprep.subr.mxu0 0.0
        %954 = vmatpush1.msra.mxu0 0.0
        %955 = vmatprep.subr.mxu0 0.0
        %956 = vmatpush1.msra.mxu0 0.0
        %957 = vmatprep.subr.mxu0 0.0
        %958 = vmatpush1.msra.mxu0 0.0
        %959 = vmatprep.subr.mxu0 0.0
        %960 = vmatpush1.msra.mxu0 0.0
        %961 = vmatprep.subr.mxu0 0.0
        %962 = vmatpush1.msra.mxu0 0.0
        %963 = vmatprep.subr.mxu0 0.0
        %964 = vmatpush1.msra.mxu0 0.0
        %965 = vmatprep.subr.mxu0 0.0
        %966 = vmatpush1.msra.mxu0 0.0
        %967 = vmatprep.subr.mxu0 0.0
        %968 = vmatpush1.msra.mxu0 0.0
        %969 = vmatprep.subr.mxu0 0.0
        %970 = vmatpush1.msra.mxu0 0.0
        %971 = vmatprep.subr.mxu0 0.0
        %972 = vmatpush1.msra.mxu0 0.0
        %973 = vmatprep.subr.mxu0 0.0
        %974 = vmatpush1.msra.mxu0 0.0
        %975 = vmatprep.mubr.f32.mxu0 0.0
        %976 = vmatmul.mubr.f32.gmra.mrb[0].mxu0 %v910
        %v977 = vpop.f32.mrb[0].mxu0
        %v978 = vadd.f32 0.0, %v977
        %v979 = vpop.f32.mrb[0].mxu0
        %v980 = vadd.f32 0.0, %v979
        %981 = vdwg.mxu0
        %982 = vmatprep.subr.mxu0 %v487
        %983 = vmatpush1.msra.mxu0 %v486
        %984 = vmatprep.subr.mxu0 %v491
        %985 = vmatpush1.msra.mxu0 %v490
        %986 = vmatprep.subr.mxu0 %v495
        %987 = vmatpush1.msra.mxu0 %v494
        %988 = vmatprep.subr.mxu0 %v499
        %989 = vmatpush1.msra.mxu0 %v498
        %990 = vmatprep.subr.mxu0 %v503
        %991 = vmatpush1.msra.mxu0 %v502
        %992 = vmatprep.subr.mxu0 %v507
        %993 = vmatpush1.msra.mxu0 %v506
        %994 = vmatprep.subr.mxu0 %v511
        %995 = vmatpush1.msra.mxu0 %v510
        %996 = vmatprep.subr.mxu0 %v515
        %997 = vmatpush1.msra.mxu0 %v514
        %998 = vmatprep.subr.mxu0 %v519
        %999 = vmatpush1.msra.mxu0 %v518
        %1000 = vmatprep.subr.mxu0 %v523
        %1001 = vmatpush1.msra.mxu0 %v522
        %1002 = vmatprep.subr.mxu0 %v527
        %1003 = vmatpush1.msra.mxu0 %v526
        %1004 = vmatprep.subr.mxu0 %v531
        %1005 = vmatpush1.msra.mxu0 %v530
        %1006 = vmatprep.subr.mxu0 %v535
        %1007 = vmatpush1.msra.mxu0 %v534
        %1008 = vmatprep.subr.mxu0 %v539
        %1009 = vmatpush1.msra.mxu0 %v538
        %1010 = vmatprep.subr.mxu0 %v543
        %1011 = vmatpush1.msra.mxu0 %v542
        %1012 = vmatprep.subr.mxu0 %v547
        %1013 = vmatpush1.msra.mxu0 %v546
        %1014 = vmatprep.subr.mxu0 0.0
        %1015 = vmatpush1.msra.mxu0 0.0
        %1016 = vmatprep.subr.mxu0 0.0
        %1017 = vmatpush1.msra.mxu0 0.0
        %1018 = vmatprep.subr.mxu0 0.0
        %1019 = vmatpush1.msra.mxu0 0.0
        %1020 = vmatprep.subr.mxu0 0.0
        %1021 = vmatpush1.msra.mxu0 0.0
        %1022 = vmatprep.subr.mxu0 0.0
        %1023 = vmatpush1.msra.mxu0 0.0
        %1024 = vmatprep.subr.mxu0 0.0
        %1025 = vmatpush1.msra.mxu0 0.0
        %1026 = vmatprep.subr.mxu0 0.0
        %1027 = vmatpush1.msra.mxu0 0.0
        %1028 = vmatprep.subr.mxu0 0.0
        %1029 = vmatpush1.msra.mxu0 0.0
        %1030 = vmatprep.subr.mxu0 0.0
        %1031 = vmatpush1.msra.mxu0 0.0
        %1032 = vmatprep.subr.mxu0 0.0
        %1033 = vmatpush1.msra.mxu0 0.0
        %1034 = vmatprep.subr.mxu0 0.0
        %1035 = vmatpush1.msra.mxu0 0.0
        %1036 = vmatprep.subr.mxu0 0.0
        %1037 = vmatpush1.msra.mxu0 0.0
        %1038 = vmatprep.subr.mxu0 0.0
        %1039 = vmatpush1.msra.mxu0 0.0
        %1040 = vmatprep.subr.mxu0 0.0
        %1041 = vmatpush1.msra.mxu0 0.0
        %1042 = vmatprep.subr.mxu0 0.0
        %1043 = vmatpush1.msra.mxu0 0.0
        %1044 = vmatprep.subr.mxu0 0.0
        %1045 = vmatpush1.msra.mxu0 0.0
        %1046 = vmatprep.mubr.f32.mxu0 0.0
        %1047 = vmatmul.mubr.f32.gmra.mrb[0].mxu0 %v910
        %v1048 = vpop.f32.mrb[0].mxu0
        %v1049 = vadd.f32 0.0, %v1048
        %v1050 = vpop.f32.mrb[0].mxu0
        %v1051 = vadd.f32 0.0, %v1050
        %1052 = vdwg.mxu0
        %v1053 = vadd.f32 %v906, %v978
        %v1054 = vadd.f32 %v907, %v980
        %v1055 = vadd.f32 %v908, %v1049
        %v1056 = vadd.f32 %v909, %v1051
        %v1057 = vxor.u32 %v1053, 2147483648
        %v1058 = vxor.u32 %v1054, 2147483648
        %v1059 = vxor.u32 %v1055, 2147483648
        %v1060 = vmul.f32 %v1057, 1.442695
        %v1061 = vpow.pop %v1060
        %v1062 = vmul.f32 %v1058, 1.442695
        %v1063 = vpow.pop %v1062
        %v1064 = vmul.f32 %v1059, 1.442695
        %v1065 = vpow.pop %v1064
        %v1066 = vadd.f32 %v1061, 1.0
        %v1067 = vadd.f32 %v1063, 1.0
        %v1068 = vadd.f32 %v1065, 1.0
        %v1069 = vrcp.pop %v1066
        %v1070 = vmul.f32 1.0, %v1069
        %v1071 = vrcp.pop %v1067
        %v1072 = vmul.f32 1.0, %v1071
        %v1073 = vrcp.pop %v1068
        %v1074 = vmul.f32 1.0, %v1073
        %v1075 = vtanh.pop %v1056
        %v1076 = vld [vmem:[#allocation4] sm:$0xff]
        %v1077 = vmul.f32 %v1072, %v1076
        %v1078 = vmul.f32 %v1070, %v1075
        %v1079 = vadd.f32 %v1077, %v1078
        %v1080 = vtanh.pop %v1079
        %v1081 = vmul.f32 %v1074, %v1080
        %1082 = vst [vmem:[#allocation4] sm:$0xff] %v1079
        %1083 = vst [vmem:[#allocation3] sm:$0xff] %v1081
        %1084 = vst [vmem:[%s239 + $0x10] sm:$0xff] %v1081
        %v1085 = vld [vmem:[#allocation2 + $0x60] sm:$0xff]
        %v1086 = vld [vmem:[#allocation2 + $0x68] sm:$0xff]
        %v1087 = vld [vmem:[#allocation2 + $0x70] sm:$0xff]
        %v1088 = vld [vmem:[#allocation2 + $0x78] sm:$0xff]
        %v1089 = vld [vmem:[#allocation3] sm:$0xff]
        %1090 = vmatprep.subr.mxu0 %v485
        %1091 = vmatpush1.msra.mxu0 %v484
        %1092 = vmatprep.subr.mxu0 %v489
        %1093 = vmatpush1.msra.mxu0 %v488
        %1094 = vmatprep.subr.mxu0 %v493
        %1095 = vmatpush1.msra.mxu0 %v492
        %1096 = vmatprep.subr.mxu0 %v497
        %1097 = vmatpush1.msra.mxu0 %v496
        %1098 = vmatprep.subr.mxu0 %v501
        %1099 = vmatpush1.msra.mxu0 %v500
        %1100 = vmatprep.subr.mxu0 %v505
        %1101 = vmatpush1.msra.mxu0 %v504
        %1102 = vmatprep.subr.mxu0 %v509
        %1103 = vmatpush1.msra.mxu0 %v508
        %1104 = vmatprep.subr.mxu0 %v513
        %1105 = vmatpush1.msra.mxu0 %v512
        %1106 = vmatprep.subr.mxu0 %v517
        %1107 = vmatpush1.msra.mxu0 %v516
        %1108 = vmatprep.subr.mxu0 %v521
        %1109 = vmatpush1.msra.mxu0 %v520
        %1110 = vmatprep.subr.mxu0 %v525
        %1111 = vmatpush1.msra.mxu0 %v524
        %1112 = vmatprep.subr.mxu0 %v529
        %1113 = vmatpush1.msra.mxu0 %v528
        %1114 = vmatprep.subr.mxu0 %v533
        %1115 = vmatpush1.msra.mxu0 %v532
        %1116 = vmatprep.subr.mxu0 %v537
        %1117 = vmatpush1.msra.mxu0 %v536
        %1118 = vmatprep.subr.mxu0 %v541
        %1119 = vmatpush1.msra.mxu0 %v540
        %1120 = vmatprep.subr.mxu0 %v545
        %1121 = vmatpush1.msra.mxu0 %v544
        %1122 = vmatprep.subr.mxu0 0.0
        %1123 = vmatpush1.msra.mxu0 0.0
        %1124 = vmatprep.subr.mxu0 0.0
        %1125 = vmatpush1.msra.mxu0 0.0
        %1126 = vmatprep.subr.mxu0 0.0
        %1127 = vmatpush1.msra.mxu0 0.0
        %1128 = vmatprep.subr.mxu0 0.0
        %1129 = vmatpush1.msra.mxu0 0.0
        %1130 = vmatprep.subr.mxu0 0.0
        %1131 = vmatpush1.msra.mxu0 0.0
        %1132 = vmatprep.subr.mxu0 0.0
        %1133 = vmatpush1.msra.mxu0 0.0
        %1134 = vmatprep.subr.mxu0 0.0
        %1135 = vmatpush1.msra.mxu0 0.0
        %1136 = vmatprep.subr.mxu0 0.0
        %1137 = vmatpush1.msra.mxu0 0.0
        %1138 = vmatprep.subr.mxu0 0.0
        %1139 = vmatpush1.msra.mxu0 0.0
        %1140 = vmatprep.subr.mxu0 0.0
        %1141 = vmatpush1.msra.mxu0 0.0
        %1142 = vmatprep.subr.mxu0 0.0
        %1143 = vmatpush1.msra.mxu0 0.0
        %1144 = vmatprep.subr.mxu0 0.0
        %1145 = vmatpush1.msra.mxu0 0.0
        %1146 = vmatprep.subr.mxu0 0.0
        %1147 = vmatpush1.msra.mxu0 0.0
        %1148 = vmatprep.subr.mxu0 0.0
        %1149 = vmatpush1.msra.mxu0 0.0
        %1150 = vmatprep.subr.mxu0 0.0
        %1151 = vmatpush1.msra.mxu0 0.0
        %1152 = vmatprep.subr.mxu0 0.0
        %1153 = vmatpush1.msra.mxu0 0.0
        %1154 = vmatprep.mubr.f32.mxu0 0.0
        %1155 = vmatmul.mubr.f32.gmra.mrb[0].mxu0 %v1089
        %v1156 = vpop.f32.mrb[0].mxu0
        %v1157 = vadd.f32 0.0, %v1156
        %v1158 = vpop.f32.mrb[0].mxu0
        %v1159 = vadd.f32 0.0, %v1158
        %1160 = vdwg.mxu0
        %1161 = vmatprep.subr.mxu0 %v487
        %1162 = vmatpush1.msra.mxu0 %v486
        %1163 = vmatprep.subr.mxu0 %v491
        %1164 = vmatpush1.msra.mxu0 %v490
        %1165 = vmatprep.subr.mxu0 %v495
        %1166 = vmatpush1.msra.mxu0 %v494
        %1167 = vmatprep.subr.mxu0 %v499
        %1168 = vmatpush1.msra.mxu0 %v498
        %1169 = vmatprep.subr.mxu0 %v503
        %1170 = vmatpush1.msra.mxu0 %v502
        %1171 = vmatprep.subr.mxu0 %v507
        %1172 = vmatpush1.msra.mxu0 %v506
        %1173 = vmatprep.subr.mxu0 %v511
        %1174 = vmatpush1.msra.mxu0 %v510
        %1175 = vmatprep.subr.mxu0 %v515
        %1176 = vmatpush1.msra.mxu0 %v514
        %1177 = vmatprep.subr.mxu0 %v519
        %1178 = vmatpush1.msra.mxu0 %v518
        %1179 = vmatprep.subr.mxu0 %v523
        %1180 = vmatpush1.msra.mxu0 %v522
        %1181 = vmatprep.subr.mxu0 %v527
        %1182 = vmatpush1.msra.mxu0 %v526
        %1183 = vmatprep.subr.mxu0 %v531
        %1184 = vmatpush1.msra.mxu0 %v530
        %1185 = vmatprep.subr.mxu0 %v535
        %1186 = vmatpush1.msra.mxu0 %v534
        %1187 = vmatprep.subr.mxu0 %v539
        %1188 = vmatpush1.msra.mxu0 %v538
        %1189 = vmatprep.subr.mxu0 %v543
        %1190 = vmatpush1.msra.mxu0 %v542
        %1191 = vmatprep.subr.mxu0 %v547
        %1192 = vmatpush1.msra.mxu0 %v546
        %1193 = vmatprep.subr.mxu0 0.0
        %1194 = vmatpush1.msra.mxu0 0.0
        %1195 = vmatprep.subr.mxu0 0.0
        %1196 = vmatpush1.msra.mxu0 0.0
        %1197 = vmatprep.subr.mxu0 0.0
        %1198 = vmatpush1.msra.mxu0 0.0
        %1199 = vmatprep.subr.mxu0 0.0
        %1200 = vmatpush1.msra.mxu0 0.0
        %1201 = vmatprep.subr.mxu0 0.0
        %1202 = vmatpush1.msra.mxu0 0.0
        %1203 = vmatprep.subr.mxu0 0.0
        %1204 = vmatpush1.msra.mxu0 0.0
        %1205 = vmatprep.subr.mxu0 0.0
        %1206 = vmatpush1.msra.mxu0 0.0
        %1207 = vmatprep.subr.mxu0 0.0
        %1208 = vmatpush1.msra.mxu0 0.0
        %1209 = vmatprep.subr.mxu0 0.0
        %1210 = vmatpush1.msra.mxu0 0.0
        %1211 = vmatprep.subr.mxu0 0.0
        %1212 = vmatpush1.msra.mxu0 0.0
        %1213 = vmatprep.subr.mxu0 0.0
        %1214 = vmatpush1.msra.mxu0 0.0
        %1215 = vmatprep.subr.mxu0 0.0
        %1216 = vmatpush1.msra.mxu0 0.0
        %1217 = vmatprep.subr.mxu0 0.0
        %1218 = vmatpush1.msra.mxu0 0.0
        %1219 = vmatprep.subr.mxu0 0.0
        %1220 = vmatpush1.msra.mxu0 0.0
        %1221 = vmatprep.subr.mxu0 0.0
        %1222 = vmatpush1.msra.mxu0 0.0
        %1223 = vmatprep.subr.mxu0 0.0
        %1224 = vmatpush1.msra.mxu0 0.0
        %1225 = vmatprep.mubr.f32.mxu0 0.0
        %1226 = vmatmul.mubr.f32.gmra.mrb[0].mxu0 %v1089
        %v1227 = vpop.f32.mrb[0].mxu0
        %v1228 = vadd.f32 0.0, %v1227
        %v1229 = vpop.f32.mrb[0].mxu0
        %v1230 = vadd.f32 0.0, %v1229
        %1231 = vdwg.mxu0
        %v1232 = vadd.f32 %v1085, %v1157
        %v1233 = vadd.f32 %v1086, %v1159
        %v1234 = vadd.f32 %v1087, %v1228
        %v1235 = vadd.f32 %v1088, %v1230
        %v1236 = vxor.u32 %v1232, 2147483648
        %v1237 = vxor.u32 %v1233, 2147483648
        %v1238 = vxor.u32 %v1234, 2147483648
        %v1239 = vmul.f32 %v1236, 1.442695
        %v1240 = vpow.pop %v1239
        %v1241 = vmul.f32 %v1237, 1.442695
        %v1242 = vpow.pop %v1241
        %v1243 = vmul.f32 %v1238, 1.442695
        %v1244 = vpow.pop %v1243
        %v1245 = vadd.f32 %v1240, 1.0
        %v1246 = vadd.f32 %v1242, 1.0
        %v1247 = vadd.f32 %v1244, 1.0
        %v1248 = vrcp.pop %v1245
        %v1249 = vmul.f32 1.0, %v1248
        %v1250 = vrcp.pop %v1246
        %v1251 = vmul.f32 1.0, %v1250
        %v1252 = vrcp.pop %v1247
        %v1253 = vmul.f32 1.0, %v1252
        %v1254 = vtanh.pop %v1235
        %v1255 = vld [vmem:[#allocation4] sm:$0xff]
        %v1256 = vmul.f32 %v1251, %v1255
        %v1257 = vmul.f32 %v1249, %v1254
        %v1258 = vadd.f32 %v1256, %v1257
        %v1259 = vtanh.pop %v1258
        %v1260 = vmul.f32 %v1253, %v1259
        %1261 = vst [vmem:[#allocation4] sm:$0xff] %v1258
        %1262 = vst [vmem:[#allocation3] sm:$0xff] %v1260
        %1263 = vst [vmem:[%s239 + $0x18] sm:$0xff] %v1260
        %s1264 = smul.u32 4, %s17
        %p1265 = scmp.lt.s32.totalorder %s1264, 7
        %s1266 = scalar_select %p1265, %s1264, 7
        %s1267 = smul.addr %s1266, 8
        %s1268 = scalar_lea.vmem %s4, %s1267
        // Predicated region
        $region53: #{lstm_model_forward.2} parent=35 // pred_check
          %p1269 = pneg %p124
        $region54: #{lstm_model_forward.2} parent=35 // pred_check_branch
          %1271 = sbr.rel (%p1269) target = $region56
        $region55: #{lstm_model_forward.2} parent=35 // pred_region
          %s1272 = smul.u32 4, %s17
        $region56: #{lstm_model_forward.2} parent=35 // pred_fallthru
          _
      $region36: #{lstm_model_forward.2} parent=5 // pred_fallthru
        _
      %p1273 = scmp.le.s32.totalorder 2, %s12
      // Predicated region
      $region57: #{lstm_model_forward.2} parent=5 // pred_check
        %p1274 = pneg %p1273
      $region58: #{lstm_model_forward.2} parent=5 // pred_check_branch
        %1276 = sbr.rel (%p1274) target = $region60
      $region59: #{lstm_model_forward.2} parent=5 // pred_region
        %s1277 = ssub.s32 %s12, 2
        // Predicated region
        $region61: #{lstm_model_forward.2} parent=59 // pred_check
          %p1278 = pneg %p130
        $region62: #{lstm_model_forward.2} parent=59 // pred_check_branch
          %1280 = sbr.rel (%p1278) target = $region64
        $region63: #{lstm_model_forward.2} parent=59 // pred_region
          %s1281 = smul.u32 4, %s18
          %p1282 = scmp.lt.s32.totalorder %s1281, 7
          %s1283 = scalar_select %p1282, %s1281, 7
          %s1284 = smul.addr %s1283, 8
          %s1285 = scalar_lea.vmem %s4, %s1284
        $region64: #{lstm_model_forward.2} parent=59 // pred_fallthru
          _
      $region60: #{lstm_model_forward.2} parent=5 // pred_fallthru
        _
    $region6: #{lstm_model_forward.2} parent=1 // loop_footer
      %s16 = sadd.s32 1, %s12
    $region7: #{lstm_model_forward.2} parent=1 // loop_footer_branch
      %11 = sbr.rel target = $region3
    $region8: #{lstm_model_forward.2} parent=1 // loop_exit
      _
    %1286 = vsyncpa [#allocation6], 1
    %s1287 = scalar_lea.sflag [#allocation6], 1
    %1288 = vsyncpa %s1287, 1
    %1289 = vsyncpa [#allocation8], 1

// kernel: lstm_model_forward.3
$region0: #{lstm_model_forward.3}
  #allocation0 [shape = 'u32[]', space=smem, size = 0x4, offset = 0x4, fixed_abs, tag = 'smem constant byte address 0x4 - core index']
  #allocation1 [shape = 'u32[144,128]{1,0:T(1,128)}', space=vmem, size = 0x12000, scoped, tag = 'internal scratch']
  #allocation2 [shape = 'f32[32,512]{1,0:T(8,128)}', space=vmem, size = 0x10000, scoped, tag = 'scratch operand']
  #allocation3 [shape = 'f32[8,128]{1,0:T(8,128)}', space=vmem, size = 0x1000, scoped, tag = 'scratch operand']
  #allocation4 [shape = 'f32[8,128]{1,0:T(8,128)}', space=vmem, size = 0x1000, scoped, tag = 'scratch operand']
  %s0 = inlined_call_operand.vmem [shape: f32[64,128], index: 0, kind: input, shape index: {}]
  %s1 = inlined_call_operand.vmem [shape: f32[128,512], index: 1, kind: input, shape index: {}]
  %s2 = inlined_call_operand.hbm [shape: f32[128,512], index: 2, kind: input, shape index: {}]
  %s3 = inlined_call_operand.vmem [shape: f32[1,512], index: 3, kind: input, shape index: {}]
  %s4 = inlined_call_operand.vmem [shape: f32[128,4], index: 4, kind: input, shape index: {}]
  %s5 = inlined_call_operand.vmem [shape: f32[1,4], index: 5, kind: input, shape index: {}]
  %s6 = inlined_call_operand.vmem [shape: f32[8,4], index: 6, kind: output, shape index: {}]
  %s7 = sld [smem:[#allocation0]]
  $region69: #{lstm_model_forward.3} parent=0
    _
  %s9 = ssub.s32 1, %s7
  %s10 = scalar_select 0, %s9, %s7
  $region1: #{lstm_model_forward.3} parent=0
    #allocation5 [shape = 'u8[262144]{0}', space=vmem, size = 0x40000, scoped, tag = 'input window, operand 2, single buffered']
    #allocation6 [shape = 's32[2]{0}', space=sflag, size = 0x8, scoped, tag = 'scoped memory for lstm_model_forward.3']
    %11 = vsyncpa [#allocation6], 0
    loop: start=0, step=1, limit=4
    $region2: #{lstm_model_forward.3} parent=1 // loop_pre_header
      _
    $region3: #{lstm_model_forward.3} parent=1 // loop_header
      %s13 = sphi 0, %s17
      %p14 = scmp.ge.s32.totalorder %s13, 4
      %s23 = sphi 0, %s25
      %s26 = sphi 0, %s23
      %s27 = sphi 0, %s26
      %s43 = sphi 0, %s27
      %s47 = sphi 0, %s47
      %s49 = sphi 0, %s47
      %s50 = sphi 0, %s49
      %s64 = sphi 0, %s50
      %s68 = sphi 0, %s68
      %s70 = sphi 0, %s68
      %s71 = sphi 0, %s70
      %s85 = sphi 0, %s71
      %s89 = sphi 0, %s89
      %s91 = sphi 0, %s89
      %s92 = sphi 0, %s91
      %s106 = sphi 0, %s92
      %s110 = sphi 0, %s110
      %s112 = sphi 0, %s110
      %s113 = sphi 0, %s112
      %s127 = sphi 0, %s113
      %s131 = sphi 0, %s131
      %s133 = sphi 0, %s131
      %s134 = sphi 0, %s133
      %s148 = sphi 0, %s134
      %s152 = sphi 0, %s152
      %s154 = sphi 0, %s152
      %s155 = sphi 0, %s154
      %s169 = sphi 0, %s155
    $region4: #{lstm_model_forward.3} parent=1 // loop_header_branch
      %16 = sbr.rel (%p14) target = $region8
    $region5: #{lstm_model_forward.3} parent=1 // loop_body
      %s18 = ssub.s32 %s13, 1
      %s19 = ssub.s32 %s13, 2
      %s20 = sadd.s32 %s13, 1
      %s21 = ssub.s32 %s13, %s20
      %p22 = scmp.eq.s32.totalorder %s21, 0
      %s24 = sadd.s32 %s23, 1
      %s25 = scalar_select %p22, %s23, %s24
      %p28 = pneg %p22
      %p29 = scmp.eq.s32.totalorder %s13, 1
      %p30 = por %p28, %p29
      %p31 = scmp.ne.s32.totalorder %s23, %s26
      %p32 = scmp.eq.s32.totalorder %s13, 0
      %p33 = por %p31, %p32
      %p34 = scmp.ne.s32.totalorder %s23, %s26
      %p35 = scmp.eq.s32.totalorder %s18, 1
      %p36 = por %p34, %p35
      %p37 = scmp.ne.s32.totalorder %s26, %s27
      %p38 = scmp.eq.s32.totalorder %s18, 0
      %p39 = por %p37, %p38
      %p40 = scmp.ne.s32.totalorder %s26, %s27
      %p41 = scmp.eq.s32.totalorder %s19, 1
      %p42 = por %p40, %p41
      %p44 = scmp.ne.s32.totalorder %s27, %s43
      %p45 = scmp.eq.s32.totalorder %s19, 0
      %p46 = por %p44, %p45
      %s48 = sadd.s32 %s47, 1
      %p51 = scmp.eq.s32.totalorder %s13, 1
      %p52 = scmp.ne.s32.totalorder %s47, %s49
      %p53 = scmp.eq.s32.totalorder %s13, 0
      %p54 = por %p52, %p53
      %p55 = scmp.ne.s32.totalorder %s47, %s49
      %p56 = scmp.eq.s32.totalorder %s18, 1
      %p57 = por %p55, %p56
      %p58 = scmp.ne.s32.totalorder %s49, %s50
      %p59 = scmp.eq.s32.totalorder %s18, 0
      %p60 = por %p58, %p59
      %p61 = scmp.ne.s32.totalorder %s49, %s50
      %p62 = scmp.eq.s32.totalorder %s19, 1
      %p63 = por %p61, %p62
      %p65 = scmp.ne.s32.totalorder %s50, %s64
      %p66 = scmp.eq.s32.totalorder %s19, 0
      %p67 = por %p65, %p66
      %s69 = sadd.s32 %s68, 1
      %p72 = scmp.eq.s32.totalorder %s13, 1
      %p73 = scmp.ne.s32.totalorder %s68, %s70
      %p74 = scmp.eq.s32.totalorder %s13, 0
      %p75 = por %p73, %p74
      %p76 = scmp.ne.s32.totalorder %s68, %s70
      %p77 = scmp.eq.s32.totalorder %s18, 1
      %p78 = por %p76, %p77
      %p79 = scmp.ne.s32.totalorder %s70, %s71
      %p80 = scmp.eq.s32.totalorder %s18, 0
      %p81 = por %p79, %p80
      %p82 = scmp.ne.s32.totalorder %s70, %s71
      %p83 = scmp.eq.s32.totalorder %s19, 1
      %p84 = por %p82, %p83
      %p86 = scmp.ne.s32.totalorder %s71, %s85
      %p87 = scmp.eq.s32.totalorder %s19, 0
      %p88 = por %p86, %p87
      %s90 = sadd.s32 %s89, 1
      %p93 = scmp.eq.s32.totalorder %s13, 1
      %p94 = scmp.ne.s32.totalorder %s89, %s91
      %p95 = scmp.eq.s32.totalorder %s13, 0
      %p96 = por %p94, %p95
      %p97 = scmp.ne.s32.totalorder %s89, %s91
      %p98 = scmp.eq.s32.totalorder %s18, 1
      %p99 = por %p97, %p98
      %p100 = scmp.ne.s32.totalorder %s91, %s92
      %p101 = scmp.eq.s32.totalorder %s18, 0
      %p102 = por %p100, %p101
      %p103 = scmp.ne.s32.totalorder %s91, %s92
      %p104 = scmp.eq.s32.totalorder %s19, 1
      %p105 = por %p103, %p104
      %p107 = scmp.ne.s32.totalorder %s92, %s106
      %p108 = scmp.eq.s32.totalorder %s19, 0
      %p109 = por %p107, %p108
      %s111 = sadd.s32 %s110, 1
      %p114 = scmp.eq.s32.totalorder %s13, 1
      %p115 = scmp.ne.s32.totalorder %s110, %s112
      %p116 = scmp.eq.s32.totalorder %s13, 0
      %p117 = por %p115, %p116
      %p118 = scmp.ne.s32.totalorder %s110, %s112
      %p119 = scmp.eq.s32.totalorder %s18, 1
      %p120 = por %p118, %p119
      %p121 = scmp.ne.s32.totalorder %s112, %s113
      %p122 = scmp.eq.s32.totalorder %s18, 0
      %p123 = por %p121, %p122
      %p124 = scmp.ne.s32.totalorder %s112, %s113
      %p125 = scmp.eq.s32.totalorder %s19, 1
      %p126 = por %p124, %p125
      %p128 = scmp.ne.s32.totalorder %s113, %s127
      %p129 = scmp.eq.s32.totalorder %s19, 0
      %p130 = por %p128, %p129
      %s132 = sadd.s32 %s131, 1
      %p135 = scmp.eq.s32.totalorder %s13, 1
      %p136 = scmp.ne.s32.totalorder %s131, %s133
      %p137 = scmp.eq.s32.totalorder %s13, 0
      %p138 = por %p136, %p137
      %p139 = scmp.ne.s32.totalorder %s131, %s133
      %p140 = scmp.eq.s32.totalorder %s18, 1
      %p141 = por %p139, %p140
      %p142 = scmp.ne.s32.totalorder %s133, %s134
      %p143 = scmp.eq.s32.totalorder %s18, 0
      %p144 = por %p142, %p143
      %p145 = scmp.ne.s32.totalorder %s133, %s134
      %p146 = scmp.eq.s32.totalorder %s19, 1
      %p147 = por %p145, %p146
      %p149 = scmp.ne.s32.totalorder %s134, %s148
      %p150 = scmp.eq.s32.totalorder %s19, 0
      %p151 = por %p149, %p150
      %s153 = sadd.s32 %s152, 1
      %p156 = scmp.eq.s32.totalorder %s13, 1
      %p157 = scmp.ne.s32.totalorder %s152, %s154
      %p158 = scmp.eq.s32.totalorder %s13, 0
      %p159 = por %p157, %p158
      %p160 = scmp.ne.s32.totalorder %s152, %s154
      %p161 = scmp.eq.s32.totalorder %s18, 1
      %p162 = por %p160, %p161
      %p163 = scmp.ne.s32.totalorder %s154, %s155
      %p164 = scmp.eq.s32.totalorder %s18, 0
      %p165 = por %p163, %p164
      %p166 = scmp.ne.s32.totalorder %s154, %s155
      %p167 = scmp.eq.s32.totalorder %s19, 1
      %p168 = por %p166, %p167
      %p170 = scmp.ne.s32.totalorder %s155, %s169
      %p171 = scmp.eq.s32.totalorder %s19, 0
      %p172 = por %p170, %p171
      %p173 = scmp.le.s32.totalorder 1, %s13
      %p174 = scmp.lt.s32.totalorder %s13, 3
      %p175 = pnand %p173, %p174
      %p176 = pneg %p175
      // Predicated region
      $region9: #{lstm_model_forward.3} parent=5 // pred_check
        _
      $region10: #{lstm_model_forward.3} parent=5 // pred_check_branch
        %178 = sbr.rel (%p175) target = $region12
      $region11: #{lstm_model_forward.3} parent=5 // pred_region
        %s179 = ssub.s32 %s13, 1
        // Predicated region
        $region13: #{lstm_model_forward.3} parent=11 // pred_check
          %p180 = pneg %p60
        $region14: #{lstm_model_forward.3} parent=11 // pred_check_branch
          %182 = sbr.rel (%p180) target = $region16
        $region15: #{lstm_model_forward.3} parent=11 // pred_region
          _
        $region16: #{lstm_model_forward.3} parent=11 // pred_fallthru
          _
        // Predicated region
        $region17: #{lstm_model_forward.3} parent=11 // pred_check
          %p183 = pneg %p81
        $region18: #{lstm_model_forward.3} parent=11 // pred_check_branch
          %185 = sbr.rel (%p183) target = $region20
        $region19: #{lstm_model_forward.3} parent=11 // pred_region
          %s187 = ssub.s32 8192, 8192
          %188 = vsyncadd [#allocation6], %s187
          %s189 = sshll.u32 [#allocation5], 4
          %s190 = int_to_ptr.vmem [resolvable:$true] %s189
          %195 = dma.hbm_to_vmem [thread:$0]  %s2, 8192, %s190, [#allocation6], 512, 512, 32
        $region20: #{lstm_model_forward.3} parent=11 // pred_fallthru
          _
        // Predicated region
        $region21: #{lstm_model_forward.3} parent=11 // pred_check
          %p196 = pneg %p102
        $region22: #{lstm_model_forward.3} parent=11 // pred_check_branch
          %198 = sbr.rel (%p196) target = $region24
        $region23: #{lstm_model_forward.3} parent=11 // pred_region
          _
        $region24: #{lstm_model_forward.3} parent=11 // pred_fallthru
          _
        // Predicated region
        $region25: #{lstm_model_forward.3} parent=11 // pred_check
          %p199 = pneg %p123
        $region26: #{lstm_model_forward.3} parent=11 // pred_check_branch
          %201 = sbr.rel (%p199) target = $region28
        $region27: #{lstm_model_forward.3} parent=11 // pred_region
          _
        $region28: #{lstm_model_forward.3} parent=11 // pred_fallthru
          _
        // Predicated region
        $region29: #{lstm_model_forward.3} parent=11 // pred_check
          %p202 = pneg %p144
        $region30: #{lstm_model_forward.3} parent=11 // pred_check_branch
          %204 = sbr.rel (%p202) target = $region32
        $region31: #{lstm_model_forward.3} parent=11 // pred_region
          _
        $region32: #{lstm_model_forward.3} parent=11 // pred_fallthru
          _
      $region12: #{lstm_model_forward.3} parent=5 // pred_fallthru
        _
      %p205 = scmp.lt.s32.totalorder %s13, 2
      // Predicated region
      $region33: #{lstm_model_forward.3} parent=5 // pred_check
        %p206 = pneg %p205
      $region34: #{lstm_model_forward.3} parent=5 // pred_check_branch
        %208 = sbr.rel (%p206) target = $region36
      $region35: #{lstm_model_forward.3} parent=5 // pred_region
        // Predicated region
        $region37: #{lstm_model_forward.3} parent=35 // pred_check
          %p209 = pneg %p33
        $region38: #{lstm_model_forward.3} parent=35 // pred_check_branch
          %211 = sbr.rel (%p209) target = $region40
        $region39: #{lstm_model_forward.3} parent=35 // pred_region
          %s212 = smul.u32 4, %s13
          %p213 = scmp.lt.s32.totalorder %s212, 7
          %s214 = scalar_select %p213, %s212, 7
          %s215 = smul.addr %s214, 8
          %s216 = scalar_lea.vmem %s0, %s215
          %s217 = smul.u32 4, %s13
        $region40: #{lstm_model_forward.3} parent=35 // pred_fallthru
          _
      $region36: #{lstm_model_forward.3} parent=5 // pred_fallthru
        _
      %p218 = scmp.le.s32.totalorder 1, %s13
      %p219 = scmp.lt.s32.totalorder %s13, 3
      %p220 = pnand %p218, %p219
      %p221 = pneg %p220
      // Predicated region
      $region41: #{lstm_model_forward.3} parent=5 // pred_check
        _
      $region42: #{lstm_model_forward.3} parent=5 // pred_check_branch
        %223 = sbr.rel (%p220) target = $region44
      $region43: #{lstm_model_forward.3} parent=5 // pred_region
        %s224 = ssub.s32 %s13, 1
        // Predicated region
        $region45: #{lstm_model_forward.3} parent=43 // pred_check
          %p225 = pneg %p81
        $region46: #{lstm_model_forward.3} parent=43 // pred_check_branch
          %227 = sbr.rel (%p225) target = $region48
        $region47: #{lstm_model_forward.3} parent=43 // pred_region
          %228 = dma.done [#allocation6], 8192
        $region48: #{lstm_model_forward.3} parent=43 // pred_fallthru
          _
        %s229 = smul.u32 4, %s18
        %p230 = scmp.lt.s32.totalorder %s229, 7
        %s231 = scalar_select %p230, %s229, 7
        %s232 = smul.addr %s231, 8
        %s233 = scalar_lea.vmem %s0, %s232
        %p234 = pneg %p39
        %p235 = pneg %p36
        %p236 = pneg %p60
        %p237 = pneg %p57
        %p238 = pneg %p81
        %p239 = pneg %p78
        %p240 = pneg %p102
        %p241 = pneg %p99
        %p242 = pneg %p123
        %p243 = pneg %p120
        %p244 = pneg %p144
        %p245 = pneg %p141
        %p246 = pneg %p165
        %p247 = pneg %p162
        %s248 = smul.u32 4, %s18
        %p249 = scmp.lt.s32.totalorder %s248, 7
        %s250 = scalar_select %p249, %s248, 7
        %s251 = smul.addr %s250, 8
        %s252 = scalar_lea.vmem %s0, %s251
        %s253 = smul.u32 4, %s18
        %p254 = scmp.eq.s32.totalorder %s18, 0
        // Predicated region
        $region49: #{lstm_model_forward.3} parent=43 // pred_check
          %p255 = pneg %p254
        $region50: #{lstm_model_forward.3} parent=43 // pred_check_branch
          %257 = sbr.rel (%p255) target = $region52
        $region51: #{lstm_model_forward.3} parent=43 // pred_region
          %258 = vst [vmem:[#allocation3] sm:$0xff] 0.0
          %259 = vst [vmem:[#allocation4] sm:$0xff] 0.0
        $region52: #{lstm_model_forward.3} parent=43 // pred_fallthru
          _
        %v260 = vld [vmem:[%s252] sm:$0xff]
        %v261 = vld [vmem:[%s252 + $0x8] sm:$0xff]
        %v262 = vld [vmem:[%s252 + $0x10] sm:$0xff]
        %v263 = vld [vmem:[%s252 + $0x18] sm:$0xff]
        %v264 = vld [vmem:[%s1] sm:$0xff]
        %v265 = vld [vmem:[%s1 + $0x8] sm:$0xff]
        %v266 = vld [vmem:[%s1 + $0x10] sm:$0xff]
        %v267 = vld [vmem:[%s1 + $0x18] sm:$0xff]
        %v268 = vld [vmem:[%s1 + $0x20] sm:$0xff]
        %v269 = vld [vmem:[%s1 + $0x28] sm:$0xff]
        %v270 = vld [vmem:[%s1 + $0x30] sm:$0xff]
        %v271 = vld [vmem:[%s1 + $0x38] sm:$0xff]
        %v272 = vld [vmem:[%s1 + $0x40] sm:$0xff]
        %v273 = vld [vmem:[%s1 + $0x48] sm:$0xff]
        %v274 = vld [vmem:[%s1 + $0x50] sm:$0xff]
        %v275 = vld [vmem:[%s1 + $0x58] sm:$0xff]
        %v276 = vld [vmem:[%s1 + $0x60] sm:$0xff]
        %v277 = vld [vmem:[%s1 + $0x68] sm:$0xff]
        %v278 = vld [vmem:[%s1 + $0x70] sm:$0xff]
        %v279 = vld [vmem:[%s1 + $0x78] sm:$0xff]
        %v280 = vld [vmem:[%s1 + $0x80] sm:$0xff]
        %v281 = vld [vmem:[%s1 + $0x88] sm:$0xff]
        %v282 = vld [vmem:[%s1 + $0x90] sm:$0xff]
        %v283 = vld [vmem:[%s1 + $0x98] sm:$0xff]
        %v284 = vld [vmem:[%s1 + $0xa0] sm:$0xff]
        %v285 = vld [vmem:[%s1 + $0xa8] sm:$0xff]
        %v286 = vld [vmem:[%s1 + $0xb0] sm:$0xff]
        %v287 = vld [vmem:[%s1 + $0xb8] sm:$0xff]
        %v288 = vld [vmem:[%s1 + $0xc0] sm:$0xff]
        %v289 = vld [vmem:[%s1 + $0xc8] sm:$0xff]
        %v290 = vld [vmem:[%s1 + $0xd0] sm:$0xff]
        %v291 = vld [vmem:[%s1 + $0xd8] sm:$0xff]
        %v292 = vld [vmem:[%s1 + $0xe0] sm:$0xff]
        %v293 = vld [vmem:[%s1 + $0xe8] sm:$0xff]
        %v294 = vld [vmem:[%s1 + $0xf0] sm:$0xff]
        %v295 = vld [vmem:[%s1 + $0xf8] sm:$0xff]
        %v296 = vld [vmem:[%s1 + $0x100] sm:$0xff]
        %v297 = vld [vmem:[%s1 + $0x108] sm:$0xff]
        %v298 = vld [vmem:[%s1 + $0x110] sm:$0xff]
        %v299 = vld [vmem:[%s1 + $0x118] sm:$0xff]
        %v300 = vld [vmem:[%s1 + $0x120] sm:$0xff]
        %v301 = vld [vmem:[%s1 + $0x128] sm:$0xff]
        %v302 = vld [vmem:[%s1 + $0x130] sm:$0xff]
        %v303 = vld [vmem:[%s1 + $0x138] sm:$0xff]
        %v304 = vld [vmem:[%s1 + $0x140] sm:$0xff]
        %v305 = vld [vmem:[%s1 + $0x148] sm:$0xff]
        %v306 = vld [vmem:[%s1 + $0x150] sm:$0xff]
        %v307 = vld [vmem:[%s1 + $0x158] sm:$0xff]
        %v308 = vld [vmem:[%s1 + $0x160] sm:$0xff]
        %v309 = vld [vmem:[%s1 + $0x168] sm:$0xff]
        %v310 = vld [vmem:[%s1 + $0x170] sm:$0xff]
        %v311 = vld [vmem:[%s1 + $0x178] sm:$0xff]
        %v312 = vld [vmem:[%s1 + $0x180] sm:$0xff]
        %v313 = vld [vmem:[%s1 + $0x188] sm:$0xff]
        %v314 = vld [vmem:[%s1 + $0x190] sm:$0xff]
        %v315 = vld [vmem:[%s1 + $0x198] sm:$0xff]
        %v316 = vld [vmem:[%s1 + $0x1a0] sm:$0xff]
        %v317 = vld [vmem:[%s1 + $0x1a8] sm:$0xff]
        %v318 = vld [vmem:[%s1 + $0x1b0] sm:$0xff]
        %v319 = vld [vmem:[%s1 + $0x1b8] sm:$0xff]
        %v320 = vld [vmem:[%s1 + $0x1c0] sm:$0xff]
        %v321 = vld [vmem:[%s1 + $0x1c8] sm:$0xff]
        %v322 = vld [vmem:[%s1 + $0x1d0] sm:$0xff]
        %v323 = vld [vmem:[%s1 + $0x1d8] sm:$0xff]
        %v324 = vld [vmem:[%s1 + $0x1e0] sm:$0xff]
        %v325 = vld [vmem:[%s1 + $0x1e8] sm:$0xff]
        %v326 = vld [vmem:[%s1 + $0x1f0] sm:$0xff]
        %v327 = vld [vmem:[%s1 + $0x1f8] sm:$0xff]
        %v328 = vld [vmem:[%s3] sm:$0xf]
        %v330 = vlaneseq
        %v331 = vshrl.u32 %v330, 7
        %v332 = vsub.s32 0, %v331
        %v333 = vrot.slane %v328, %v332
        %v334 = vlaneseq
        %v335 = vshrl.u32 %v334, 7
        %v336 = vsub.s32 1, %v335
        %v337 = vrot.slane %v328, %v336
        %v338 = vlaneseq
        %v339 = vshrl.u32 %v338, 7
        %v340 = vsub.s32 2, %v339
        %v341 = vrot.slane %v328, %v340
        %v342 = vlaneseq
        %v343 = vshrl.u32 %v342, 7
        %v344 = vsub.s32 3, %v343
        %v345 = vrot.slane %v328, %v344
        %350 = vmatprep.subr.mxu0 %v265
        %351 = vmatpush1.msra.mxu0 %v264
        %352 = vmatprep.subr.mxu0 %v269
        %353 = vmatpush1.msra.mxu0 %v268
        %354 = vmatprep.subr.mxu0 %v273
        %355 = vmatpush1.msra.mxu0 %v272
        %356 = vmatprep.subr.mxu0 %v277
        %357 = vmatpush1.msra.mxu0 %v276
        %358 = vmatprep.subr.mxu0 %v281
        %359 = vmatpush1.msra.mxu0 %v280
        %360 = vmatprep.subr.mxu0 %v285
        %361 = vmatpush1.msra.mxu0 %v284
        %362 = vmatprep.subr.mxu0 %v289
        %363 = vmatpush1.msra.mxu0 %v288
        %364 = vmatprep.subr.mxu0 %v293
        %365 = vmatpush1.msra.mxu0 %v292
        %366 = vmatprep.subr.mxu0 %v297
        %367 = vmatpush1.msra.mxu0 %v296
        %368 = vmatprep.subr.mxu0 %v301
        %369 = vmatpush1.msra.mxu0 %v300
        %370 = vmatprep.subr.mxu0 %v305
        %371 = vmatpush1.msra.mxu0 %v304
        %372 = vmatprep.subr.mxu0 %v309
        %373 = vmatpush1.msra.mxu0 %v308
        %374 = vmatprep.subr.mxu0 %v313
        %375 = vmatpush1.msra.mxu0 %v312
        %376 = vmatprep.subr.mxu0 %v317
        %377 = vmatpush1.msra.mxu0 %v316
        %378 = vmatprep.subr.mxu0 %v321
        %379 = vmatpush1.msra.mxu0 %v320
        %380 = vmatprep.subr.mxu0 %v325
        %381 = vmatpush1.msra.mxu0 %v324
        %382 = vmatprep.subr.mxu0 0.0
        %383 = vmatpush1.msra.mxu0 0.0
        %384 = vmatprep.subr.mxu0 0.0
        %385 = vmatpush1.msra.mxu0 0.0
        %386 = vmatprep.subr.mxu0 0.0
        %387 = vmatpush1.msra.mxu0 0.0
        %388 = vmatprep.subr.mxu0 0.0
        %389 = vmatpush1.msra.mxu0 0.0
        %390 = vmatprep.subr.mxu0 0.0
        %391 = vmatpush1.msra.mxu0 0.0
        %392 = vmatprep.subr.mxu0 0.0
        %393 = vmatpush1.msra.mxu0 0.0
        %394 = vmatprep.subr.mxu0 0.0
        %395 = vmatpush1.msra.mxu0 0.0
        %396 = vmatprep.subr.mxu0 0.0
        %397 = vmatpush1.msra.mxu0 0.0
        %398 = vmatprep.subr.mxu0 0.0
        %399 = vmatpush1.msra.mxu0 0.0
        %400 = vmatprep.subr.mxu0 0.0
        %401 = vmatpush1.msra.mxu0 0.0
        %402 = vmatprep.subr.mxu0 0.0
        %403 = vmatpush1.msra.mxu0 0.0
        %404 = vmatprep.subr.mxu0 0.0
        %405 = vmatpush1.msra.mxu0 0.0
        %406 = vmatprep.subr.mxu0 0.0
        %407 = vmatpush1.msra.mxu0 0.0
        %408 = vmatprep.subr.mxu0 0.0
        %409 = vmatpush1.msra.mxu0 0.0
        %410 = vmatprep.subr.mxu0 0.0
        %411 = vmatpush1.msra.mxu0 0.0
        %412 = vmatprep.subr.mxu0 0.0
        %413 = vmatpush1.msra.mxu0 0.0
        %414 = vmatprep.mubr.f32.mxu0 0.0
        %415 = vmatmul.mubr.f32.gmra.mrb[0].mxu0 %v260
        %v416 = vpop.f32.mrb[0].mxu0
        %v417 = vadd.f32 %v333, %v416
        %v418 = vpop.f32.mrb[0].mxu0
        %v419 = vadd.f32 %v337, %v418
        %420 = vmatprep.mubr.f32.mxu0 0.0
        %421 = vmatmul.mubr.f32.gmra.mrb[0].mxu0 %v261
        %v422 = vpop.f32.mrb[0].mxu0
        %v423 = vadd.f32 %v333, %v422
        %v424 = vpop.f32.mrb[0].mxu0
        %v425 = vadd.f32 %v337, %v424
        %426 = vmatprep.mubr.f32.mxu0 0.0
        %427 = vmatmul.mubr.f32.gmra.mrb[0].mxu0 %v262
        %v428 = vpop.f32.mrb[0].mxu0
        %v429 = vadd.f32 %v333, %v428
        %v430 = vpop.f32.mrb[0].mxu0
        %v431 = vadd.f32 %v337, %v430
        %432 = vmatprep.mubr.f32.mxu0 0.0
        %433 = vmatmul.mubr.f32.gmra.mrb[0].mxu0 %v263
        %v434 = vpop.f32.mrb[0].mxu0
        %v435 = vadd.f32 %v333, %v434
        %v436 = vpop.f32.mrb[0].mxu0
        %v437 = vadd.f32 %v337, %v436
        %438 = vdwg.mxu0
        %439 = vmatprep.subr.mxu0 %v267
        %440 = vmatpush1.msra.mxu0 %v266
        %441 = vmatprep.subr.mxu0 %v271
        %442 = vmatpush1.msra.mxu0 %v270
        %443 = vmatprep.subr.mxu0 %v275
        %444 = vmatpush1.msra.mxu0 %v274
        %445 = vmatprep.subr.mxu0 %v279
        %446 = vmatpush1.msra.mxu0 %v278
        %447 = vmatprep.subr.mxu0 %v283
        %448 = vmatpush1.msra.mxu0 %v282
        %449 = vmatprep.subr.mxu0 %v287
        %450 = vmatpush1.msra.mxu0 %v286
        %451 = vmatprep.subr.mxu0 %v291
        %452 = vmatpush1.msra.mxu0 %v290
        %453 = vmatprep.subr.mxu0 %v295
        %454 = vmatpush1.msra.mxu0 %v294
        %455 = vmatprep.subr.mxu0 %v299
        %456 = vmatpush1.msra.mxu0 %v298
        %457 = vmatprep.subr.mxu0 %v303
        %458 = vmatpush1.msra.mxu0 %v302
        %459 = vmatprep.subr.mxu0 %v307
        %460 = vmatpush1.msra.mxu0 %v306
        %461 = vmatprep.subr.mxu0 %v311
        %462 = vmatpush1.msra.mxu0 %v310
        %463 = vmatprep.subr.mxu0 %v315
        %464 = vmatpush1.msra.mxu0 %v314
        %465 = vmatprep.subr.mxu0 %v319
        %466 = vmatpush1.msra.mxu0 %v318
        %467 = vmatprep.subr.mxu0 %v323
        %468 = vmatpush1.msra.mxu0 %v322
        %469 = vmatprep.subr.mxu0 %v327
        %470 = vmatpush1.msra.mxu0 %v326
        %471 = vmatprep.subr.mxu0 0.0
        %472 = vmatpush1.msra.mxu0 0.0
        %473 = vmatprep.subr.mxu0 0.0
        %474 = vmatpush1.msra.mxu0 0.0
        %475 = vmatprep.subr.mxu0 0.0
        %476 = vmatpush1.msra.mxu0 0.0
        %477 = vmatprep.subr.mxu0 0.0
        %478 = vmatpush1.msra.mxu0 0.0
        %479 = vmatprep.subr.mxu0 0.0
        %480 = vmatpush1.msra.mxu0 0.0
        %481 = vmatprep.subr.mxu0 0.0
        %482 = vmatpush1.msra.mxu0 0.0
        %483 = vmatprep.subr.mxu0 0.0
        %484 = vmatpush1.msra.mxu0 0.0
        %485 = vmatprep.subr.mxu0 0.0
        %486 = vmatpush1.msra.mxu0 0.0
        %487 = vmatprep.subr.mxu0 0.0
        %488 = vmatpush1.msra.mxu0 0.0
        %489 = vmatprep.subr.mxu0 0.0
        %490 = vmatpush1.msra.mxu0 0.0
        %491 = vmatprep.subr.mxu0 0.0
        %492 = vmatpush1.msra.mxu0 0.0
        %493 = vmatprep.subr.mxu0 0.0
        %494 = vmatpush1.msra.mxu0 0.0
        %495 = vmatprep.subr.mxu0 0.0
        %496 = vmatpush1.msra.mxu0 0.0
        %497 = vmatprep.subr.mxu0 0.0
        %498 = vmatpush1.msra.mxu0 0.0
        %499 = vmatprep.subr.mxu0 0.0
        %500 = vmatpush1.msra.mxu0 0.0
        %501 = vmatprep.subr.mxu0 0.0
        %502 = vmatpush1.msra.mxu0 0.0
        %503 = vmatprep.mubr.f32.mxu0 0.0
        %504 = vmatmul.mubr.f32.gmra.mrb[0].mxu0 %v260
        %v505 = vpop.f32.mrb[0].mxu0
        %v506 = vadd.f32 %v341, %v505
        %v507 = vpop.f32.mrb[0].mxu0
        %v508 = vadd.f32 %v345, %v507
        %509 = vmatprep.mubr.f32.mxu0 0.0
        %510 = vmatmul.mubr.f32.gmra.mrb[0].mxu0 %v261
        %v511 = vpop.f32.mrb[0].mxu0
        %v512 = vadd.f32 %v341, %v511
        %v513 = vpop.f32.mrb[0].mxu0
        %v514 = vadd.f32 %v345, %v513
        %515 = vmatprep.mubr.f32.mxu0 0.0
        %516 = vmatmul.mubr.f32.gmra.mrb[0].mxu0 %v262
        %v517 = vpop.f32.mrb[0].mxu0
        %v518 = vadd.f32 %v341, %v517
        %v519 = vpop.f32.mrb[0].mxu0
        %v520 = vadd.f32 %v345, %v519
        %521 = vmatprep.mubr.f32.mxu0 0.0
        %522 = vmatmul.mubr.f32.gmra.mrb[0].mxu0 %v263
        %v523 = vpop.f32.mrb[0].mxu0
        %v524 = vadd.f32 %v341, %v523
        %v525 = vpop.f32.mrb[0].mxu0
        %v526 = vadd.f32 %v345, %v525
        %527 = vdwg.mxu0
        %528 = vst [vmem:[#allocation2] sm:$0xff] %v417
        %529 = vst [vmem:[#allocation2 + $0x8] sm:$0xff] %v419
        %530 = vst [vmem:[#allocation2 + $0x10] sm:$0xff] %v506
        %531 = vst [vmem:[#allocation2 + $0x18] sm:$0xff] %v508
        %532 = vst [vmem:[#allocation2 + $0x20] sm:$0xff] %v423
        %533 = vst [vmem:[#allocation2 + $0x28] sm:$0xff] %v425
        %534 = vst [vmem:[#allocation2 + $0x30] sm:$0xff] %v512
        %535 = vst [vmem:[#allocation2 + $0x38] sm:$0xff] %v514
        %536 = vst [vmem:[#allocation2 + $0x40] sm:$0xff] %v429
        %537 = vst [vmem:[#allocation2 + $0x48] sm:$0xff] %v431
        %538 = vst [vmem:[#allocation2 + $0x50] sm:$0xff] %v518
        %539 = vst [vmem:[#allocation2 + $0x58] sm:$0xff] %v520
        %540 = vst [vmem:[#allocation2 + $0x60] sm:$0xff] %v435
        %541 = vst [vmem:[#allocation2 + $0x68] sm:$0xff] %v437
        %542 = vst [vmem:[#allocation2 + $0x70] sm:$0xff] %v524
        %543 = vst [vmem:[#allocation2 + $0x78] sm:$0xff] %v526
        %v544 = vld [vmem:[#allocation5] sm:$0xff]
        %v545 = vld [vmem:[#allocation5 + $0x8] sm:$0xff]
        %v546 = vld [vmem:[#allocation5 + $0x10] sm:$0xff]
        %v547 = vld [vmem:[#allocation5 + $0x18] sm:$0xff]
        %v548 = vld [vmem:[#allocation5 + $0x20] sm:$0xff]
        %v549 = vld [vmem:[#allocation5 + $0x28] sm:$0xff]
        %v550 = vld [vmem:[#allocation5 + $0x30] sm:$0xff]
        %v551 = vld [vmem:[#allocation5 + $0x38] sm:$0xff]
        %v552 = vld [vmem:[#allocation5 + $0x40] sm:$0xff]
        %v553 = vld [vmem:[#allocation5 + $0x48] sm:$0xff]
        %v554 = vld [vmem:[#allocation5 + $0x50] sm:$0xff]
        %v555 = vld [vmem:[#allocation5 + $0x58] sm:$0xff]
        %v556 = vld [vmem:[#allocation5 + $0x60] sm:$0xff]
        %v557 = vld [vmem:[#allocation5 + $0x68] sm:$0xff]
        %v558 = vld [vmem:[#allocation5 + $0x70] sm:$0xff]
        %v559 = vld [vmem:[#allocation5 + $0x78] sm:$0xff]
        %v560 = vld [vmem:[#allocation5 + $0x80] sm:$0xff]
        %v561 = vld [vmem:[#allocation5 + $0x88] sm:$0xff]
        %v562 = vld [vmem:[#allocation5 + $0x90] sm:$0xff]
        %v563 = vld [vmem:[#allocation5 + $0x98] sm:$0xff]
        %v564 = vld [vmem:[#allocation5 + $0xa0] sm:$0xff]
        %v565 = vld [vmem:[#allocation5 + $0xa8] sm:$0xff]
        %v566 = vld [vmem:[#allocation5 + $0xb0] sm:$0xff]
        %v567 = vld [vmem:[#allocation5 + $0xb8] sm:$0xff]
        %v568 = vld [vmem:[#allocation5 + $0xc0] sm:$0xff]
        %v569 = vld [vmem:[#allocation5 + $0xc8] sm:$0xff]
        %v570 = vld [vmem:[#allocation5 + $0xd0] sm:$0xff]
        %v571 = vld [vmem:[#allocation5 + $0xd8] sm:$0xff]
        %v572 = vld [vmem:[#allocation5 + $0xe0] sm:$0xff]
        %v573 = vld [vmem:[#allocation5 + $0xe8] sm:$0xff]
        %v574 = vld [vmem:[#allocation5 + $0xf0] sm:$0xff]
        %v575 = vld [vmem:[#allocation5 + $0xf8] sm:$0xff]
        %v576 = vld [vmem:[#allocation5 + $0x100] sm:$0xff]
        %v577 = vld [vmem:[#allocation5 + $0x108] sm:$0xff]
        %v578 = vld [vmem:[#allocation5 + $0x110] sm:$0xff]
        %v579 = vld [vmem:[#allocation5 + $0x118] sm:$0xff]
        %v580 = vld [vmem:[#allocation5 + $0x120] sm:$0xff]
        %v581 = vld [vmem:[#allocation5 + $0x128] sm:$0xff]
        %v582 = vld [vmem:[#allocation5 + $0x130] sm:$0xff]
        %v583 = vld [vmem:[#allocation5 + $0x138] sm:$0xff]
        %v584 = vld [vmem:[#allocation5 + $0x140] sm:$0xff]
        %v585 = vld [vmem:[#allocation5 + $0x148] sm:$0xff]
        %v586 = vld [vmem:[#allocation5 + $0x150] sm:$0xff]
        %v587 = vld [vmem:[#allocation5 + $0x158] sm:$0xff]
        %v588 = vld [vmem:[#allocation5 + $0x160] sm:$0xff]
        %v589 = vld [vmem:[#allocation5 + $0x168] sm:$0xff]
        %v590 = vld [vmem:[#allocation5 + $0x170] sm:$0xff]
        %v591 = vld [vmem:[#allocation5 + $0x178] sm:$0xff]
        %v592 = vld [vmem:[#allocation5 + $0x180] sm:$0xff]
        %v593 = vld [vmem:[#allocation5 + $0x188] sm:$0xff]
        %v594 = vld [vmem:[#allocation5 + $0x190] sm:$0xff]
        %v595 = vld [vmem:[#allocation5 + $0x198] sm:$0xff]
        %v596 = vld [vmem:[#allocation5 + $0x1a0] sm:$0xff]
        %v597 = vld [vmem:[#allocation5 + $0x1a8] sm:$0xff]
        %v598 = vld [vmem:[#allocation5 + $0x1b0] sm:$0xff]
        %v599 = vld [vmem:[#allocation5 + $0x1b8] sm:$0xff]
        %v600 = vld [vmem:[#allocation5 + $0x1c0] sm:$0xff]
        %v601 = vld [vmem:[#allocation5 + $0x1c8] sm:$0xff]
        %v602 = vld [vmem:[#allocation5 + $0x1d0] sm:$0xff]
        %v603 = vld [vmem:[#allocation5 + $0x1d8] sm:$0xff]
        %v604 = vld [vmem:[#allocation5 + $0x1e0] sm:$0xff]
        %v605 = vld [vmem:[#allocation5 + $0x1e8] sm:$0xff]
        %v606 = vld [vmem:[#allocation5 + $0x1f0] sm:$0xff]
        %v607 = vld [vmem:[#allocation5 + $0x1f8] sm:$0xff]
        %v608 = vld [vmem:[#allocation2] sm:$0xff]
        %v609 = vld [vmem:[#allocation2 + $0x8] sm:$0xff]
        %v610 = vld [vmem:[#allocation2 + $0x10] sm:$0xff]
        %v611 = vld [vmem:[#allocation2 + $0x18] sm:$0xff]
        %v612 = vld [vmem:[#allocation3] sm:$0xff]
        %613 = vmatprep.subr.mxu0 %v545
        %614 = vmatpush1.msra.mxu0 %v544
        %615 = vmatprep.subr.mxu0 %v549
        %616 = vmatpush1.msra.mxu0 %v548
        %617 = vmatprep.subr.mxu0 %v553
        %618 = vmatpush1.msra.mxu0 %v552
        %619 = vmatprep.subr.mxu0 %v557
        %620 = vmatpush1.msra.mxu0 %v556
        %621 = vmatprep.subr.mxu0 %v561
        %622 = vmatpush1.msra.mxu0 %v560
        %623 = vmatprep.subr.mxu0 %v565
        %624 = vmatpush1.msra.mxu0 %v564
        %625 = vmatprep.subr.mxu0 %v569
        %626 = vmatpush1.msra.mxu0 %v568
        %627 = vmatprep.subr.mxu0 %v573
        %628 = vmatpush1.msra.mxu0 %v572
        %629 = vmatprep.subr.mxu0 %v577
        %630 = vmatpush1.msra.mxu0 %v576
        %631 = vmatprep.subr.mxu0 %v581
        %632 = vmatpush1.msra.mxu0 %v580
        %633 = vmatprep.subr.mxu0 %v585
        %634 = vmatpush1.msra.mxu0 %v584
        %635 = vmatprep.subr.mxu0 %v589
        %636 = vmatpush1.msra.mxu0 %v588
        %637 = vmatprep.subr.mxu0 %v593
        %638 = vmatpush1.msra.mxu0 %v592
        %639 = vmatprep.subr.mxu0 %v597
        %640 = vmatpush1.msra.mxu0 %v596
        %641 = vmatprep.subr.mxu0 %v601
        %642 = vmatpush1.msra.mxu0 %v600
        %643 = vmatprep.subr.mxu0 %v605
        %644 = vmatpush1.msra.mxu0 %v604
        %645 = vmatprep.subr.mxu0 0.0
        %646 = vmatpush1.msra.mxu0 0.0
        %647 = vmatprep.subr.mxu0 0.0
        %648 = vmatpush1.msra.mxu0 0.0
        %649 = vmatprep.subr.mxu0 0.0
        %650 = vmatpush1.msra.mxu0 0.0
        %651 = vmatprep.subr.mxu0 0.0
        %652 = vmatpush1.msra.mxu0 0.0
        %653 = vmatprep.subr.mxu0 0.0
        %654 = vmatpush1.msra.mxu0 0.0
        %655 = vmatprep.subr.mxu0 0.0
        %656 = vmatpush1.msra.mxu0 0.0
        %657 = vmatprep.subr.mxu0 0.0
        %658 = vmatpush1.msra.mxu0 0.0
        %659 = vmatprep.subr.mxu0 0.0
        %660 = vmatpush1.msra.mxu0 0.0
        %661 = vmatprep.subr.mxu0 0.0
        %662 = vmatpush1.msra.mxu0 0.0
        %663 = vmatprep.subr.mxu0 0.0
        %664 = vmatpush1.msra.mxu0 0.0
        %665 = vmatprep.subr.mxu0 0.0
        %666 = vmatpush1.msra.mxu0 0.0
        %667 = vmatprep.subr.mxu0 0.0
        %668 = vmatpush1.msra.mxu0 0.0
        %669 = vmatprep.subr.mxu0 0.0
        %670 = vmatpush1.msra.mxu0 0.0
        %671 = vmatprep.subr.mxu0 0.0
        %672 = vmatpush1.msra.mxu0 0.0
        %673 = vmatprep.subr.mxu0 0.0
        %674 = vmatpush1.msra.mxu0 0.0
        %675 = vmatprep.subr.mxu0 0.0
        %676 = vmatpush1.msra.mxu0 0.0
        %677 = vmatprep.mubr.f32.mxu0 0.0
        %678 = vmatmul.mubr.f32.gmra.mrb[0].mxu0 %v612
        %v679 = vpop.f32.mrb[0].mxu0
        %v680 = vadd.f32 0.0, %v679
        %v681 = vpop.f32.mrb[0].mxu0
        %v682 = vadd.f32 0.0, %v681
        %683 = vdwg.mxu0
        %684 = vmatprep.subr.mxu0 %v547
        %685 = vmatpush1.msra.mxu0 %v546
        %686 = vmatprep.subr.mxu0 %v551
        %687 = vmatpush1.msra.mxu0 %v550
        %688 = vmatprep.subr.mxu0 %v555
        %689 = vmatpush1.msra.mxu0 %v554
        %690 = vmatprep.subr.mxu0 %v559
        %691 = vmatpush1.msra.mxu0 %v558
        %692 = vmatprep.subr.mxu0 %v563
        %693 = vmatpush1.msra.mxu0 %v562
        %694 = vmatprep.subr.mxu0 %v567
        %695 = vmatpush1.msra.mxu0 %v566
        %696 = vmatprep.subr.mxu0 %v571
        %697 = vmatpush1.msra.mxu0 %v570
        %698 = vmatprep.subr.mxu0 %v575
        %699 = vmatpush1.msra.mxu0 %v574
        %700 = vmatprep.subr.mxu0 %v579
        %701 = vmatpush1.msra.mxu0 %v578
        %702 = vmatprep.subr.mxu0 %v583
        %703 = vmatpush1.msra.mxu0 %v582
        %704 = vmatprep.subr.mxu0 %v587
        %705 = vmatpush1.msra.mxu0 %v586
        %706 = vmatprep.subr.mxu0 %v591
        %707 = vmatpush1.msra.mxu0 %v590
        %708 = vmatprep.subr.mxu0 %v595
        %709 = vmatpush1.msra.mxu0 %v594
        %710 = vmatprep.subr.mxu0 %v599
        %711 = vmatpush1.msra.mxu0 %v598
        %712 = vmatprep.subr.mxu0 %v603
        %713 = vmatpush1.msra.mxu0 %v602
        %714 = vmatprep.subr.mxu0 %v607
        %715 = vmatpush1.msra.mxu0 %v606
        %716 = vmatprep.subr.mxu0 0.0
        %717 = vmatpush1.msra.mxu0 0.0
        %718 = vmatprep.subr.mxu0 0.0
        %719 = vmatpush1.msra.mxu0 0.0
        %720 = vmatprep.subr.mxu0 0.0
        %721 = vmatpush1.msra.mxu0 0.0
        %722 = vmatprep.subr.mxu0 0.0
        %723 = vmatpush1.msra.mxu0 0.0
        %724 = vmatprep.subr.mxu0 0.0
        %725 = vmatpush1.msra.mxu0 0.0
        %726 = vmatprep.subr.mxu0 0.0
        %727 = vmatpush1.msra.mxu0 0.0
        %728 = vmatprep.subr.mxu0 0.0
        %729 = vmatpush1.msra.mxu0 0.0
        %730 = vmatprep.subr.mxu0 0.0
        %731 = vmatpush1.msra.mxu0 0.0
        %732 = vmatprep.subr.mxu0 0.0
        %733 = vmatpush1.msra.mxu0 0.0
        %734 = vmatprep.subr.mxu0 0.0
        %735 = vmatpush1.msra.mxu0 0.0
        %736 = vmatprep.subr.mxu0 0.0
        %737 = vmatpush1.msra.mxu0 0.0
        %738 = vmatprep.subr.mxu0 0.0
        %739 = vmatpush1.msra.mxu0 0.0
        %740 = vmatprep.subr.mxu0 0.0
        %741 = vmatpush1.msra.mxu0 0.0
        %742 = vmatprep.subr.mxu0 0.0
        %743 = vmatpush1.msra.mxu0 0.0
        %744 = vmatprep.subr.mxu0 0.0
        %745 = vmatpush1.msra.mxu0 0.0
        %746 = vmatprep.subr.mxu0 0.0
        %747 = vmatpush1.msra.mxu0 0.0
        %748 = vmatprep.mubr.f32.mxu0 0.0
        %749 = vmatmul.mubr.f32.gmra.mrb[0].mxu0 %v612
        %v750 = vpop.f32.mrb[0].mxu0
        %v751 = vadd.f32 0.0, %v750
        %v752 = vpop.f32.mrb[0].mxu0
        %v753 = vadd.f32 0.0, %v752
        %754 = vdwg.mxu0
        %v755 = vadd.f32 %v608, %v680
        %v756 = vadd.f32 %v609, %v682
        %v757 = vadd.f32 %v610, %v751
        %v758 = vadd.f32 %v611, %v753
        %v759 = vxor.u32 %v755, 2147483648
        %v760 = vxor.u32 %v756, 2147483648
        %v761 = vxor.u32 %v757, 2147483648
        %v762 = vmul.f32 %v759, 1.442695
        %v763 = vpow.pop %v762
        %v764 = vmul.f32 %v760, 1.442695
        %v765 = vpow.pop %v764
        %v766 = vmul.f32 %v761, 1.442695
        %v767 = vpow.pop %v766
        %v768 = vadd.f32 %v763, 1.0
        %v769 = vadd.f32 %v765, 1.0
        %v770 = vadd.f32 %v767, 1.0
        %v771 = vrcp.pop %v768
        %v772 = vmul.f32 1.0, %v771
        %v773 = vrcp.pop %v769
        %v774 = vmul.f32 1.0, %v773
        %v775 = vrcp.pop %v770
        %v776 = vmul.f32 1.0, %v775
        %v777 = vtanh.pop %v758
        %v778 = vld [vmem:[#allocation4] sm:$0xff]
        %v779 = vmul.f32 %v774, %v778
        %v780 = vmul.f32 %v772, %v777
        %v781 = vadd.f32 %v779, %v780
        %v782 = vtanh.pop %v781
        %v783 = vmul.f32 %v776, %v782
        %784 = vst [vmem:[#allocation4] sm:$0xff] %v781
        %785 = vst [vmem:[#allocation3] sm:$0xff] %v783
        %v786 = vld [vmem:[#allocation2 + $0x20] sm:$0xff]
        %v787 = vld [vmem:[#allocation2 + $0x28] sm:$0xff]
        %v788 = vld [vmem:[#allocation2 + $0x30] sm:$0xff]
        %v789 = vld [vmem:[#allocation2 + $0x38] sm:$0xff]
        %v790 = vld [vmem:[#allocation3] sm:$0xff]
        %791 = vmatprep.subr.mxu0 %v545
        %792 = vmatpush1.msra.mxu0 %v544
        %793 = vmatprep.subr.mxu0 %v549
        %794 = vmatpush1.msra.mxu0 %v548
        %795 = vmatprep.subr.mxu0 %v553
        %796 = vmatpush1.msra.mxu0 %v552
        %797 = vmatprep.subr.mxu0 %v557
        %798 = vmatpush1.msra.mxu0 %v556
        %799 = vmatprep.subr.mxu0 %v561
        %800 = vmatpush1.msra.mxu0 %v560
        %801 = vmatprep.subr.mxu0 %v565
        %802 = vmatpush1.msra.mxu0 %v564
        %803 = vmatprep.subr.mxu0 %v569
        %804 = vmatpush1.msra.mxu0 %v568
        %805 = vmatprep.subr.mxu0 %v573
        %806 = vmatpush1.msra.mxu0 %v572
        %807 = vmatprep.subr.mxu0 %v577
        %808 = vmatpush1.msra.mxu0 %v576
        %809 = vmatprep.subr.mxu0 %v581
        %810 = vmatpush1.msra.mxu0 %v580
        %811 = vmatprep.subr.mxu0 %v585
        %812 = vmatpush1.msra.mxu0 %v584
        %813 = vmatprep.subr.mxu0 %v589
        %814 = vmatpush1.msra.mxu0 %v588
        %815 = vmatprep.subr.mxu0 %v593
        %816 = vmatpush1.msra.mxu0 %v592
        %817 = vmatprep.subr.mxu0 %v597
        %818 = vmatpush1.msra.mxu0 %v596
        %819 = vmatprep.subr.mxu0 %v601
        %820 = vmatpush1.msra.mxu0 %v600
        %821 = vmatprep.subr.mxu0 %v605
        %822 = vmatpush1.msra.mxu0 %v604
        %823 = vmatprep.subr.mxu0 0.0
        %824 = vmatpush1.msra.mxu0 0.0
        %825 = vmatprep.subr.mxu0 0.0
        %826 = vmatpush1.msra.mxu0 0.0
        %827 = vmatprep.subr.mxu0 0.0
        %828 = vmatpush1.msra.mxu0 0.0
        %829 = vmatprep.subr.mxu0 0.0
        %830 = vmatpush1.msra.mxu0 0.0
        %831 = vmatprep.subr.mxu0 0.0
        %832 = vmatpush1.msra.mxu0 0.0
        %833 = vmatprep.subr.mxu0 0.0
        %834 = vmatpush1.msra.mxu0 0.0
        %835 = vmatprep.subr.mxu0 0.0
        %836 = vmatpush1.msra.mxu0 0.0
        %837 = vmatprep.subr.mxu0 0.0
        %838 = vmatpush1.msra.mxu0 0.0
        %839 = vmatprep.subr.mxu0 0.0
        %840 = vmatpush1.msra.mxu0 0.0
        %841 = vmatprep.subr.mxu0 0.0
        %842 = vmatpush1.msra.mxu0 0.0
        %843 = vmatprep.subr.mxu0 0.0
        %844 = vmatpush1.msra.mxu0 0.0
        %845 = vmatprep.subr.mxu0 0.0
        %846 = vmatpush1.msra.mxu0 0.0
        %847 = vmatprep.subr.mxu0 0.0
        %848 = vmatpush1.msra.mxu0 0.0
        %849 = vmatprep.subr.mxu0 0.0
        %850 = vmatpush1.msra.mxu0 0.0
        %851 = vmatprep.subr.mxu0 0.0
        %852 = vmatpush1.msra.mxu0 0.0
        %853 = vmatprep.subr.mxu0 0.0
        %854 = vmatpush1.msra.mxu0 0.0
        %855 = vmatprep.mubr.f32.mxu0 0.0
        %856 = vmatmul.mubr.f32.gmra.mrb[0].mxu0 %v790
        %v857 = vpop.f32.mrb[0].mxu0
        %v858 = vadd.f32 0.0, %v857
        %v859 = vpop.f32.mrb[0].mxu0
        %v860 = vadd.f32 0.0, %v859
        %861 = vdwg.mxu0
        %862 = vmatprep.subr.mxu0 %v547
        %863 = vmatpush1.msra.mxu0 %v546
        %864 = vmatprep.subr.mxu0 %v551
        %865 = vmatpush1.msra.mxu0 %v550
        %866 = vmatprep.subr.mxu0 %v555
        %867 = vmatpush1.msra.mxu0 %v554
        %868 = vmatprep.subr.mxu0 %v559
        %869 = vmatpush1.msra.mxu0 %v558
        %870 = vmatprep.subr.mxu0 %v563
        %871 = vmatpush1.msra.mxu0 %v562
        %872 = vmatprep.subr.mxu0 %v567
        %873 = vmatpush1.msra.mxu0 %v566
        %874 = vmatprep.subr.mxu0 %v571
        %875 = vmatpush1.msra.mxu0 %v570
        %876 = vmatprep.subr.mxu0 %v575
        %877 = vmatpush1.msra.mxu0 %v574
        %878 = vmatprep.subr.mxu0 %v579
        %879 = vmatpush1.msra.mxu0 %v578
        %880 = vmatprep.subr.mxu0 %v583
        %881 = vmatpush1.msra.mxu0 %v582
        %882 = vmatprep.subr.mxu0 %v587
        %883 = vmatpush1.msra.mxu0 %v586
        %884 = vmatprep.subr.mxu0 %v591
        %885 = vmatpush1.msra.mxu0 %v590
        %886 = vmatprep.subr.mxu0 %v595
        %887 = vmatpush1.msra.mxu0 %v594
        %888 = vmatprep.subr.mxu0 %v599
        %889 = vmatpush1.msra.mxu0 %v598
        %890 = vmatprep.subr.mxu0 %v603
        %891 = vmatpush1.msra.mxu0 %v602
        %892 = vmatprep.subr.mxu0 %v607
        %893 = vmatpush1.msra.mxu0 %v606
        %894 = vmatprep.subr.mxu0 0.0
        %895 = vmatpush1.msra.mxu0 0.0
        %896 = vmatprep.subr.mxu0 0.0
        %897 = vmatpush1.msra.mxu0 0.0
        %898 = vmatprep.subr.mxu0 0.0
        %899 = vmatpush1.msra.mxu0 0.0
        %900 = vmatprep.subr.mxu0 0.0
        %901 = vmatpush1.msra.mxu0 0.0
        %902 = vmatprep.subr.mxu0 0.0
        %903 = vmatpush1.msra.mxu0 0.0
        %904 = vmatprep.subr.mxu0 0.0
        %905 = vmatpush1.msra.mxu0 0.0
        %906 = vmatprep.subr.mxu0 0.0
        %907 = vmatpush1.msra.mxu0 0.0
        %908 = vmatprep.subr.mxu0 0.0
        %909 = vmatpush1.msra.mxu0 0.0
        %910 = vmatprep.subr.mxu0 0.0
        %911 = vmatpush1.msra.mxu0 0.0
        %912 = vmatprep.subr.mxu0 0.0
        %913 = vmatpush1.msra.mxu0 0.0
        %914 = vmatprep.subr.mxu0 0.0
        %915 = vmatpush1.msra.mxu0 0.0
        %916 = vmatprep.subr.mxu0 0.0
        %917 = vmatpush1.msra.mxu0 0.0
        %918 = vmatprep.subr.mxu0 0.0
        %919 = vmatpush1.msra.mxu0 0.0
        %920 = vmatprep.subr.mxu0 0.0
        %921 = vmatpush1.msra.mxu0 0.0
        %922 = vmatprep.subr.mxu0 0.0
        %923 = vmatpush1.msra.mxu0 0.0
        %924 = vmatprep.subr.mxu0 0.0
        %925 = vmatpush1.msra.mxu0 0.0
        %926 = vmatprep.mubr.f32.mxu0 0.0
        %927 = vmatmul.mubr.f32.gmra.mrb[0].mxu0 %v790
        %v928 = vpop.f32.mrb[0].mxu0
        %v929 = vadd.f32 0.0, %v928
        %v930 = vpop.f32.mrb[0].mxu0
        %v931 = vadd.f32 0.0, %v930
        %932 = vdwg.mxu0
        %v933 = vadd.f32 %v786, %v858
        %v934 = vadd.f32 %v787, %v860
        %v935 = vadd.f32 %v788, %v929
        %v936 = vadd.f32 %v789, %v931
        %v937 = vxor.u32 %v933, 2147483648
        %v938 = vxor.u32 %v934, 2147483648
        %v939 = vxor.u32 %v935, 2147483648
        %v940 = vmul.f32 %v937, 1.442695
        %v941 = vpow.pop %v940
        %v942 = vmul.f32 %v938, 1.442695
        %v943 = vpow.pop %v942
        %v944 = vmul.f32 %v939, 1.442695
        %v945 = vpow.pop %v944
        %v946 = vadd.f32 %v941, 1.0
        %v947 = vadd.f32 %v943, 1.0
        %v948 = vadd.f32 %v945, 1.0
        %v949 = vrcp.pop %v946
        %v950 = vmul.f32 1.0, %v949
        %v951 = vrcp.pop %v947
        %v952 = vmul.f32 1.0, %v951
        %v953 = vrcp.pop %v948
        %v954 = vmul.f32 1.0, %v953
        %v955 = vtanh.pop %v936
        %v956 = vld [vmem:[#allocation4] sm:$0xff]
        %v957 = vmul.f32 %v952, %v956
        %v958 = vmul.f32 %v950, %v955
        %v959 = vadd.f32 %v957, %v958
        %v960 = vtanh.pop %v959
        %v961 = vmul.f32 %v954, %v960
        %962 = vst [vmem:[#allocation4] sm:$0xff] %v959
        %963 = vst [vmem:[#allocation3] sm:$0xff] %v961
        %v964 = vld [vmem:[#allocation2 + $0x40] sm:$0xff]
        %v965 = vld [vmem:[#allocation2 + $0x48] sm:$0xff]
        %v966 = vld [vmem:[#allocation2 + $0x50] sm:$0xff]
        %v967 = vld [vmem:[#allocation2 + $0x58] sm:$0xff]
        %v968 = vld [vmem:[#allocation3] sm:$0xff]
        %969 = vmatprep.subr.mxu0 %v545
        %970 = vmatpush1.msra.mxu0 %v544
        %971 = vmatprep.subr.mxu0 %v549
        %972 = vmatpush1.msra.mxu0 %v548
        %973 = vmatprep.subr.mxu0 %v553
        %974 = vmatpush1.msra.mxu0 %v552
        %975 = vmatprep.subr.mxu0 %v557
        %976 = vmatpush1.msra.mxu0 %v556
        %977 = vmatprep.subr.mxu0 %v561
        %978 = vmatpush1.msra.mxu0 %v560
        %979 = vmatprep.subr.mxu0 %v565
        %980 = vmatpush1.msra.mxu0 %v564
        %981 = vmatprep.subr.mxu0 %v569
        %982 = vmatpush1.msra.mxu0 %v568
        %983 = vmatprep.subr.mxu0 %v573
        %984 = vmatpush1.msra.mxu0 %v572
        %985 = vmatprep.subr.mxu0 %v577
        %986 = vmatpush1.msra.mxu0 %v576
        %987 = vmatprep.subr.mxu0 %v581
        %988 = vmatpush1.msra.mxu0 %v580
        %989 = vmatprep.subr.mxu0 %v585
        %990 = vmatpush1.msra.mxu0 %v584
        %991 = vmatprep.subr.mxu0 %v589
        %992 = vmatpush1.msra.mxu0 %v588
        %993 = vmatprep.subr.mxu0 %v593
        %994 = vmatpush1.msra.mxu0 %v592
        %995 = vmatprep.subr.mxu0 %v597
        %996 = vmatpush1.msra.mxu0 %v596
        %997 = vmatprep.subr.mxu0 %v601
        %998 = vmatpush1.msra.mxu0 %v600
        %999 = vmatprep.subr.mxu0 %v605
        %1000 = vmatpush1.msra.mxu0 %v604
        %1001 = vmatprep.subr.mxu0 0.0
        %1002 = vmatpush1.msra.mxu0 0.0
        %1003 = vmatprep.subr.mxu0 0.0
        %1004 = vmatpush1.msra.mxu0 0.0
        %1005 = vmatprep.subr.mxu0 0.0
        %1006 = vmatpush1.msra.mxu0 0.0
        %1007 = vmatprep.subr.mxu0 0.0
        %1008 = vmatpush1.msra.mxu0 0.0
        %1009 = vmatprep.subr.mxu0 0.0
        %1010 = vmatpush1.msra.mxu0 0.0
        %1011 = vmatprep.subr.mxu0 0.0
        %1012 = vmatpush1.msra.mxu0 0.0
        %1013 = vmatprep.subr.mxu0 0.0
        %1014 = vmatpush1.msra.mxu0 0.0
        %1015 = vmatprep.subr.mxu0 0.0
        %1016 = vmatpush1.msra.mxu0 0.0
        %1017 = vmatprep.subr.mxu0 0.0
        %1018 = vmatpush1.msra.mxu0 0.0
        %1019 = vmatprep.subr.mxu0 0.0
        %1020 = vmatpush1.msra.mxu0 0.0
        %1021 = vmatprep.subr.mxu0 0.0
        %1022 = vmatpush1.msra.mxu0 0.0
        %1023 = vmatprep.subr.mxu0 0.0
        %1024 = vmatpush1.msra.mxu0 0.0
        %1025 = vmatprep.subr.mxu0 0.0
        %1026 = vmatpush1.msra.mxu0 0.0
        %1027 = vmatprep.subr.mxu0 0.0
        %1028 = vmatpush1.msra.mxu0 0.0
        %1029 = vmatprep.subr.mxu0 0.0
        %1030 = vmatpush1.msra.mxu0 0.0
        %1031 = vmatprep.subr.mxu0 0.0
        %1032 = vmatpush1.msra.mxu0 0.0
        %1033 = vmatprep.mubr.f32.mxu0 0.0
        %1034 = vmatmul.mubr.f32.gmra.mrb[0].mxu0 %v968
        %v1035 = vpop.f32.mrb[0].mxu0
        %v1036 = vadd.f32 0.0, %v1035
        %v1037 = vpop.f32.mrb[0].mxu0
        %v1038 = vadd.f32 0.0, %v1037
        %1039 = vdwg.mxu0
        %1040 = vmatprep.subr.mxu0 %v547
        %1041 = vmatpush1.msra.mxu0 %v546
        %1042 = vmatprep.subr.mxu0 %v551
        %1043 = vmatpush1.msra.mxu0 %v550
        %1044 = vmatprep.subr.mxu0 %v555
        %1045 = vmatpush1.msra.mxu0 %v554
        %1046 = vmatprep.subr.mxu0 %v559
        %1047 = vmatpush1.msra.mxu0 %v558
        %1048 = vmatprep.subr.mxu0 %v563
        %1049 = vmatpush1.msra.mxu0 %v562
        %1050 = vmatprep.subr.mxu0 %v567
        %1051 = vmatpush1.msra.mxu0 %v566
        %1052 = vmatprep.subr.mxu0 %v571
        %1053 = vmatpush1.msra.mxu0 %v570
        %1054 = vmatprep.subr.mxu0 %v575
        %1055 = vmatpush1.msra.mxu0 %v574
        %1056 = vmatprep.subr.mxu0 %v579
        %1057 = vmatpush1.msra.mxu0 %v578
        %1058 = vmatprep.subr.mxu0 %v583
        %1059 = vmatpush1.msra.mxu0 %v582
        %1060 = vmatprep.subr.mxu0 %v587
        %1061 = vmatpush1.msra.mxu0 %v586
        %1062 = vmatprep.subr.mxu0 %v591
        %1063 = vmatpush1.msra.mxu0 %v590
        %1064 = vmatprep.subr.mxu0 %v595
        %1065 = vmatpush1.msra.mxu0 %v594
        %1066 = vmatprep.subr.mxu0 %v599
        %1067 = vmatpush1.msra.mxu0 %v598
        %1068 = vmatprep.subr.mxu0 %v603
        %1069 = vmatpush1.msra.mxu0 %v602
        %1070 = vmatprep.subr.mxu0 %v607
        %1071 = vmatpush1.msra.mxu0 %v606
        %1072 = vmatprep.subr.mxu0 0.0
        %1073 = vmatpush1.msra.mxu0 0.0
        %1074 = vmatprep.subr.mxu0 0.0
        %1075 = vmatpush1.msra.mxu0 0.0
        %1076 = vmatprep.subr.mxu0 0.0
        %1077 = vmatpush1.msra.mxu0 0.0
        %1078 = vmatprep.subr.mxu0 0.0
        %1079 = vmatpush1.msra.mxu0 0.0
        %1080 = vmatprep.subr.mxu0 0.0
        %1081 = vmatpush1.msra.mxu0 0.0
        %1082 = vmatprep.subr.mxu0 0.0
        %1083 = vmatpush1.msra.mxu0 0.0
        %1084 = vmatprep.subr.mxu0 0.0
        %1085 = vmatpush1.msra.mxu0 0.0
        %1086 = vmatprep.subr.mxu0 0.0
        %1087 = vmatpush1.msra.mxu0 0.0
        %1088 = vmatprep.subr.mxu0 0.0
        %1089 = vmatpush1.msra.mxu0 0.0
        %1090 = vmatprep.subr.mxu0 0.0
        %1091 = vmatpush1.msra.mxu0 0.0
        %1092 = vmatprep.subr.mxu0 0.0
        %1093 = vmatpush1.msra.mxu0 0.0
        %1094 = vmatprep.subr.mxu0 0.0
        %1095 = vmatpush1.msra.mxu0 0.0
        %1096 = vmatprep.subr.mxu0 0.0
        %1097 = vmatpush1.msra.mxu0 0.0
        %1098 = vmatprep.subr.mxu0 0.0
        %1099 = vmatpush1.msra.mxu0 0.0
        %1100 = vmatprep.subr.mxu0 0.0
        %1101 = vmatpush1.msra.mxu0 0.0
        %1102 = vmatprep.subr.mxu0 0.0
        %1103 = vmatpush1.msra.mxu0 0.0
        %1104 = vmatprep.mubr.f32.mxu0 0.0
        %1105 = vmatmul.mubr.f32.gmra.mrb[0].mxu0 %v968
        %v1106 = vpop.f32.mrb[0].mxu0
        %v1107 = vadd.f32 0.0, %v1106
        %v1108 = vpop.f32.mrb[0].mxu0
        %v1109 = vadd.f32 0.0, %v1108
        %1110 = vdwg.mxu0
        %v1111 = vadd.f32 %v964, %v1036
        %v1112 = vadd.f32 %v965, %v1038
        %v1113 = vadd.f32 %v966, %v1107
        %v1114 = vadd.f32 %v967, %v1109
        %v1115 = vxor.u32 %v1111, 2147483648
        %v1116 = vxor.u32 %v1112, 2147483648
        %v1117 = vxor.u32 %v1113, 2147483648
        %v1118 = vmul.f32 %v1115, 1.442695
        %v1119 = vpow.pop %v1118
        %v1120 = vmul.f32 %v1116, 1.442695
        %v1121 = vpow.pop %v1120
        %v1122 = vmul.f32 %v1117, 1.442695
        %v1123 = vpow.pop %v1122
        %v1124 = vadd.f32 %v1119, 1.0
        %v1125 = vadd.f32 %v1121, 1.0
        %v1126 = vadd.f32 %v1123, 1.0
        %v1127 = vrcp.pop %v1124
        %v1128 = vmul.f32 1.0, %v1127
        %v1129 = vrcp.pop %v1125
        %v1130 = vmul.f32 1.0, %v1129
        %v1131 = vrcp.pop %v1126
        %v1132 = vmul.f32 1.0, %v1131
        %v1133 = vtanh.pop %v1114
        %v1134 = vld [vmem:[#allocation4] sm:$0xff]
        %v1135 = vmul.f32 %v1130, %v1134
        %v1136 = vmul.f32 %v1128, %v1133
        %v1137 = vadd.f32 %v1135, %v1136
        %v1138 = vtanh.pop %v1137
        %v1139 = vmul.f32 %v1132, %v1138
        %1140 = vst [vmem:[#allocation4] sm:$0xff] %v1137
        %1141 = vst [vmem:[#allocation3] sm:$0xff] %v1139
        %v1142 = vld [vmem:[#allocation2 + $0x60] sm:$0xff]
        %v1143 = vld [vmem:[#allocation2 + $0x68] sm:$0xff]
        %v1144 = vld [vmem:[#allocation2 + $0x70] sm:$0xff]
        %v1145 = vld [vmem:[#allocation2 + $0x78] sm:$0xff]
        %v1146 = vld [vmem:[#allocation3] sm:$0xff]
        %1147 = vmatprep.subr.mxu0 %v545
        %1148 = vmatpush1.msra.mxu0 %v544
        %1149 = vmatprep.subr.mxu0 %v549
        %1150 = vmatpush1.msra.mxu0 %v548
        %1151 = vmatprep.subr.mxu0 %v553
        %1152 = vmatpush1.msra.mxu0 %v552
        %1153 = vmatprep.subr.mxu0 %v557
        %1154 = vmatpush1.msra.mxu0 %v556
        %1155 = vmatprep.subr.mxu0 %v561
        %1156 = vmatpush1.msra.mxu0 %v560
        %1157 = vmatprep.subr.mxu0 %v565
        %1158 = vmatpush1.msra.mxu0 %v564
        %1159 = vmatprep.subr.mxu0 %v569
        %1160 = vmatpush1.msra.mxu0 %v568
        %1161 = vmatprep.subr.mxu0 %v573
        %1162 = vmatpush1.msra.mxu0 %v572
        %1163 = vmatprep.subr.mxu0 %v577
        %1164 = vmatpush1.msra.mxu0 %v576
        %1165 = vmatprep.subr.mxu0 %v581
        %1166 = vmatpush1.msra.mxu0 %v580
        %1167 = vmatprep.subr.mxu0 %v585
        %1168 = vmatpush1.msra.mxu0 %v584
        %1169 = vmatprep.subr.mxu0 %v589
        %1170 = vmatpush1.msra.mxu0 %v588
        %1171 = vmatprep.subr.mxu0 %v593
        %1172 = vmatpush1.msra.mxu0 %v592
        %1173 = vmatprep.subr.mxu0 %v597
        %1174 = vmatpush1.msra.mxu0 %v596
        %1175 = vmatprep.subr.mxu0 %v601
        %1176 = vmatpush1.msra.mxu0 %v600
        %1177 = vmatprep.subr.mxu0 %v605
        %1178 = vmatpush1.msra.mxu0 %v604
        %1179 = vmatprep.subr.mxu0 0.0
        %1180 = vmatpush1.msra.mxu0 0.0
        %1181 = vmatprep.subr.mxu0 0.0
        %1182 = vmatpush1.msra.mxu0 0.0
        %1183 = vmatprep.subr.mxu0 0.0
        %1184 = vmatpush1.msra.mxu0 0.0
        %1185 = vmatprep.subr.mxu0 0.0
        %1186 = vmatpush1.msra.mxu0 0.0
        %1187 = vmatprep.subr.mxu0 0.0
        %1188 = vmatpush1.msra.mxu0 0.0
        %1189 = vmatprep.subr.mxu0 0.0
        %1190 = vmatpush1.msra.mxu0 0.0
        %1191 = vmatprep.subr.mxu0 0.0
        %1192 = vmatpush1.msra.mxu0 0.0
        %1193 = vmatprep.subr.mxu0 0.0
        %1194 = vmatpush1.msra.mxu0 0.0
        %1195 = vmatprep.subr.mxu0 0.0
        %1196 = vmatpush1.msra.mxu0 0.0
        %1197 = vmatprep.subr.mxu0 0.0
        %1198 = vmatpush1.msra.mxu0 0.0
        %1199 = vmatprep.subr.mxu0 0.0
        %1200 = vmatpush1.msra.mxu0 0.0
        %1201 = vmatprep.subr.mxu0 0.0
        %1202 = vmatpush1.msra.mxu0 0.0
        %1203 = vmatprep.subr.mxu0 0.0
        %1204 = vmatpush1.msra.mxu0 0.0
        %1205 = vmatprep.subr.mxu0 0.0
        %1206 = vmatpush1.msra.mxu0 0.0
        %1207 = vmatprep.subr.mxu0 0.0
        %1208 = vmatpush1.msra.mxu0 0.0
        %1209 = vmatprep.subr.mxu0 0.0
        %1210 = vmatpush1.msra.mxu0 0.0
        %1211 = vmatprep.mubr.f32.mxu0 0.0
        %1212 = vmatmul.mubr.f32.gmra.mrb[0].mxu0 %v1146
        %v1213 = vpop.f32.mrb[0].mxu0
        %v1214 = vadd.f32 0.0, %v1213
        %v1215 = vpop.f32.mrb[0].mxu0
        %v1216 = vadd.f32 0.0, %v1215
        %1217 = vdwg.mxu0
        %1218 = vmatprep.subr.mxu0 %v547
        %1219 = vmatpush1.msra.mxu0 %v546
        %1220 = vmatprep.subr.mxu0 %v551
        %1221 = vmatpush1.msra.mxu0 %v550
        %1222 = vmatprep.subr.mxu0 %v555
        %1223 = vmatpush1.msra.mxu0 %v554
        %1224 = vmatprep.subr.mxu0 %v559
        %1225 = vmatpush1.msra.mxu0 %v558
        %1226 = vmatprep.subr.mxu0 %v563
        %1227 = vmatpush1.msra.mxu0 %v562
        %1228 = vmatprep.subr.mxu0 %v567
        %1229 = vmatpush1.msra.mxu0 %v566
        %1230 = vmatprep.subr.mxu0 %v571
        %1231 = vmatpush1.msra.mxu0 %v570
        %1232 = vmatprep.subr.mxu0 %v575
        %1233 = vmatpush1.msra.mxu0 %v574
        %1234 = vmatprep.subr.mxu0 %v579
        %1235 = vmatpush1.msra.mxu0 %v578
        %1236 = vmatprep.subr.mxu0 %v583
        %1237 = vmatpush1.msra.mxu0 %v582
        %1238 = vmatprep.subr.mxu0 %v587
        %1239 = vmatpush1.msra.mxu0 %v586
        %1240 = vmatprep.subr.mxu0 %v591
        %1241 = vmatpush1.msra.mxu0 %v590
        %1242 = vmatprep.subr.mxu0 %v595
        %1243 = vmatpush1.msra.mxu0 %v594
        %1244 = vmatprep.subr.mxu0 %v599
        %1245 = vmatpush1.msra.mxu0 %v598
        %1246 = vmatprep.subr.mxu0 %v603
        %1247 = vmatpush1.msra.mxu0 %v602
        %1248 = vmatprep.subr.mxu0 %v607
        %1249 = vmatpush1.msra.mxu0 %v606
        %1250 = vmatprep.subr.mxu0 0.0
        %1251 = vmatpush1.msra.mxu0 0.0
        %1252 = vmatprep.subr.mxu0 0.0
        %1253 = vmatpush1.msra.mxu0 0.0
        %1254 = vmatprep.subr.mxu0 0.0
        %1255 = vmatpush1.msra.mxu0 0.0
        %1256 = vmatprep.subr.mxu0 0.0
        %1257 = vmatpush1.msra.mxu0 0.0
        %1258 = vmatprep.subr.mxu0 0.0
        %1259 = vmatpush1.msra.mxu0 0.0
        %1260 = vmatprep.subr.mxu0 0.0
        %1261 = vmatpush1.msra.mxu0 0.0
        %1262 = vmatprep.subr.mxu0 0.0
        %1263 = vmatpush1.msra.mxu0 0.0
        %1264 = vmatprep.subr.mxu0 0.0
        %1265 = vmatpush1.msra.mxu0 0.0
        %1266 = vmatprep.subr.mxu0 0.0
        %1267 = vmatpush1.msra.mxu0 0.0
        %1268 = vmatprep.subr.mxu0 0.0
        %1269 = vmatpush1.msra.mxu0 0.0
        %1270 = vmatprep.subr.mxu0 0.0
        %1271 = vmatpush1.msra.mxu0 0.0
        %1272 = vmatprep.subr.mxu0 0.0
        %1273 = vmatpush1.msra.mxu0 0.0
        %1274 = vmatprep.subr.mxu0 0.0
        %1275 = vmatpush1.msra.mxu0 0.0
        %1276 = vmatprep.subr.mxu0 0.0
        %1277 = vmatpush1.msra.mxu0 0.0
        %1278 = vmatprep.subr.mxu0 0.0
        %1279 = vmatpush1.msra.mxu0 0.0
        %1280 = vmatprep.subr.mxu0 0.0
        %1281 = vmatpush1.msra.mxu0 0.0
        %1282 = vmatprep.mubr.f32.mxu0 0.0
        %1283 = vmatmul.mubr.f32.gmra.mrb[0].mxu0 %v1146
        %v1284 = vpop.f32.mrb[0].mxu0
        %v1285 = vadd.f32 0.0, %v1284
        %v1286 = vpop.f32.mrb[0].mxu0
        %v1287 = vadd.f32 0.0, %v1286
        %1288 = vdwg.mxu0
        %v1289 = vadd.f32 %v1142, %v1214
        %v1290 = vadd.f32 %v1143, %v1216
        %v1291 = vadd.f32 %v1144, %v1285
        %v1292 = vadd.f32 %v1145, %v1287
        %v1293 = vxor.u32 %v1289, 2147483648
        %v1294 = vxor.u32 %v1290, 2147483648
        %v1295 = vxor.u32 %v1291, 2147483648
        %v1296 = vmul.f32 %v1293, 1.442695
        %v1297 = vpow.pop %v1296
        %v1298 = vmul.f32 %v1294, 1.442695
        %v1299 = vpow.pop %v1298
        %v1300 = vmul.f32 %v1295, 1.442695
        %v1301 = vpow.pop %v1300
        %v1302 = vadd.f32 %v1297, 1.0
        %v1303 = vadd.f32 %v1299, 1.0
        %v1304 = vadd.f32 %v1301, 1.0
        %v1305 = vrcp.pop %v1302
        %v1306 = vmul.f32 1.0, %v1305
        %v1307 = vrcp.pop %v1303
        %v1308 = vmul.f32 1.0, %v1307
        %v1309 = vrcp.pop %v1304
        %v1310 = vmul.f32 1.0, %v1309
        %v1311 = vtanh.pop %v1292
        %v1312 = vld [vmem:[#allocation4] sm:$0xff]
        %v1313 = vmul.f32 %v1308, %v1312
        %v1314 = vmul.f32 %v1306, %v1311
        %v1315 = vadd.f32 %v1313, %v1314
        %v1316 = vtanh.pop %v1315
        %v1317 = vmul.f32 %v1310, %v1316
        %1318 = vst [vmem:[#allocation4] sm:$0xff] %v1315
        %1319 = vst [vmem:[#allocation3] sm:$0xff] %v1317
        %p1320 = scmp.eq.s32.totalorder %s18, 1
        // Predicated region
        $region53: #{lstm_model_forward.3} parent=43 // pred_check
          %p1321 = pneg %p1320
        $region54: #{lstm_model_forward.3} parent=43 // pred_check_branch
          %1323 = sbr.rel (%p1321) target = $region56
        $region55: #{lstm_model_forward.3} parent=43 // pred_region
          %v1324 = vld [vmem:[#allocation3] sm:$0xff]
          %v1325 = vld [vmem:[%s4] sm:$0xff]
          %v1326 = vld [vmem:[%s4 + $0x8] sm:$0xff]
          %v1327 = vld [vmem:[%s4 + $0x10] sm:$0xff]
          %v1328 = vld [vmem:[%s4 + $0x18] sm:$0xff]
          %v1329 = vld [vmem:[%s4 + $0x20] sm:$0xff]
          %v1330 = vld [vmem:[%s4 + $0x28] sm:$0xff]
          %v1331 = vld [vmem:[%s4 + $0x30] sm:$0xff]
          %v1332 = vld [vmem:[%s4 + $0x38] sm:$0xff]
          %v1333 = vld [vmem:[%s4 + $0x40] sm:$0xff]
          %v1334 = vld [vmem:[%s4 + $0x48] sm:$0xff]
          %v1335 = vld [vmem:[%s4 + $0x50] sm:$0xff]
          %v1336 = vld [vmem:[%s4 + $0x58] sm:$0xff]
          %v1337 = vld [vmem:[%s4 + $0x60] sm:$0xff]
          %v1338 = vld [vmem:[%s4 + $0x68] sm:$0xff]
          %v1339 = vld [vmem:[%s4 + $0x70] sm:$0xff]
          %v1340 = vld [vmem:[%s4 + $0x78] sm:$0xff]
          %v1341 = vld [vmem:[%s5] sm:$0x1]
          %v1343 = vlaneseq
          %v1344 = vshrl.u32 %v1343, 7
          %v1345 = vsub.s32 0, %v1344
          %v1346 = vrot.slane %v1341, %v1345
          %1348 = vmatprep.subr.mxu0 0.0
          %1349 = vmatpush1.msra.mxu0 %v1325
          %1350 = vmatprep.subr.mxu0 0.0
          %1351 = vmatpush1.msra.mxu0 %v1326
          %1352 = vmatprep.subr.mxu0 0.0
          %1353 = vmatpush1.msra.mxu0 %v1327
          %1354 = vmatprep.subr.mxu0 0.0
          %1355 = vmatpush1.msra.mxu0 %v1328
          %1356 = vmatprep.subr.mxu0 0.0
          %1357 = vmatpush1.msra.mxu0 %v1329
          %1358 = vmatprep.subr.mxu0 0.0
          %1359 = vmatpush1.msra.mxu0 %v1330
          %1360 = vmatprep.subr.mxu0 0.0
          %1361 = vmatpush1.msra.mxu0 %v1331
          %1362 = vmatprep.subr.mxu0 0.0
          %1363 = vmatpush1.msra.mxu0 %v1332
          %1364 = vmatprep.subr.mxu0 0.0
          %1365 = vmatpush1.msra.mxu0 %v1333
          %1366 = vmatprep.subr.mxu0 0.0
          %1367 = vmatpush1.msra.mxu0 %v1334
          %1368 = vmatprep.subr.mxu0 0.0
          %1369 = vmatpush1.msra.mxu0 %v1335
          %1370 = vmatprep.subr.mxu0 0.0
          %1371 = vmatpush1.msra.mxu0 %v1336
          %1372 = vmatprep.subr.mxu0 0.0
          %1373 = vmatpush1.msra.mxu0 %v1337
          %1374 = vmatprep.subr.mxu0 0.0
          %1375 = vmatpush1.msra.mxu0 %v1338
          %1376 = vmatprep.subr.mxu0 0.0
          %1377 = vmatpush1.msra.mxu0 %v1339
          %1378 = vmatprep.subr.mxu0 0.0
          %1379 = vmatpush1.msra.mxu0 %v1340
          %1380 = vmatprep.subr.mxu0 0.0
          %1381 = vmatpush1.msra.mxu0 0.0
          %1382 = vmatprep.subr.mxu0 0.0
          %1383 = vmatpush1.msra.mxu0 0.0
          %1384 = vmatprep.subr.mxu0 0.0
          %1385 = vmatpush1.msra.mxu0 0.0
          %1386 = vmatprep.subr.mxu0 0.0
          %1387 = vmatpush1.msra.mxu0 0.0
          %1388 = vmatprep.subr.mxu0 0.0
          %1389 = vmatpush1.msra.mxu0 0.0
          %1390 = vmatprep.subr.mxu0 0.0
          %1391 = vmatpush1.msra.mxu0 0.0
          %1392 = vmatprep.subr.mxu0 0.0
          %1393 = vmatpush1.msra.mxu0 0.0
          %1394 = vmatprep.subr.mxu0 0.0
          %1395 = vmatpush1.msra.mxu0 0.0
          %1396 = vmatprep.subr.mxu0 0.0
          %1397 = vmatpush1.msra.mxu0 0.0
          %1398 = vmatprep.subr.mxu0 0.0
          %1399 = vmatpush1.msra.mxu0 0.0
          %1400 = vmatprep.subr.mxu0 0.0
          %1401 = vmatpush1.msra.mxu0 0.0
          %1402 = vmatprep.subr.mxu0 0.0
          %1403 = vmatpush1.msra.mxu0 0.0
          %1404 = vmatprep.subr.mxu0 0.0
          %1405 = vmatpush1.msra.mxu0 0.0
          %1406 = vmatprep.subr.mxu0 0.0
          %1407 = vmatpush1.msra.mxu0 0.0
          %1408 = vmatprep.subr.mxu0 0.0
          %1409 = vmatpush1.msra.mxu0 0.0
          %1410 = vmatprep.subr.mxu0 0.0
          %1411 = vmatpush1.msra.mxu0 0.0
          %1412 = vmatprep.mubr.f32.mxu0 0.0
          %1413 = vmatmul.mubr.f32.gmra.mrb[0].mxu0 %v1324
          %v1414 = vpop.f32.mrb[0].mxu0
          %v1415 = vadd.f32 %v1346, %v1414
          %v1416 = vpop.f32.mrb[0].mxu0
          %1417 = vdwg.mxu0
          %vm1418 = vcmask 31744
          %1419 = vst.msk [vmem:[%s6] sm:$0xff] %vm1418, %v1415
        $region56: #{lstm_model_forward.3} parent=43 // pred_fallthru
          _
        // Predicated region
        $region57: #{lstm_model_forward.3} parent=43 // pred_check
          %p1420 = pneg %p162
        $region58: #{lstm_model_forward.3} parent=43 // pred_check_branch
          %1422 = sbr.rel (%p1420) target = $region60
        $region59: #{lstm_model_forward.3} parent=43 // pred_region
          _
        $region60: #{lstm_model_forward.3} parent=43 // pred_fallthru
          _
        // Predicated region
        $region61: #{lstm_model_forward.3} parent=43 // pred_check
          %p1423 = pneg %p162
        $region62: #{lstm_model_forward.3} parent=43 // pred_check_branch
          %1425 = sbr.rel (%p1423) target = $region64
        $region63: #{lstm_model_forward.3} parent=43 // pred_region
          _
        $region64: #{lstm_model_forward.3} parent=43 // pred_fallthru
          _
      $region44: #{lstm_model_forward.3} parent=5 // pred_fallthru
        _
      %p1426 = scmp.le.s32.totalorder 2, %s13
      // Predicated region
      $region65: #{lstm_model_forward.3} parent=5 // pred_check
        %p1427 = pneg %p1426
      $region66: #{lstm_model_forward.3} parent=5 // pred_check_branch
        %1429 = sbr.rel (%p1427) target = $region68
      $region67: #{lstm_model_forward.3} parent=5 // pred_region
        %s1430 = ssub.s32 %s13, 2
      $region68: #{lstm_model_forward.3} parent=5 // pred_fallthru
        _
    $region6: #{lstm_model_forward.3} parent=1 // loop_footer
      %s17 = sadd.s32 1, %s13
    $region7: #{lstm_model_forward.3} parent=1 // loop_footer_branch
      %12 = sbr.rel target = $region3
    $region8: #{lstm_model_forward.3} parent=1 // loop_exit
      _
    %1431 = vsyncpa [#allocation6], 1
    %s1432 = scalar_lea.sflag [#allocation6], 1
    %1433 = vsyncpa %s1432, 1

</llo_original>
